<compile_context>
chip_gen: v7x
topology: tpu7x:2x2x1
jax: 0.10.0
libtpu: 0.0.40
codegen_flags: <defaults>
</compile_context>

<pallas_src>
import functools
import math

import jax
import jax.numpy as jnp
from jax.experimental import pallas as pl
from jax.experimental.pallas import tpu as pltpu

# MXU operand dtype.  bf16 operands + f32 accumulate run the MXU at full rate
# and halve weight DMA / resident-weight VMEM.  Set to jnp.float32 for
# bit-tighter parity with the f32 reference.
MXU_DTYPE = jnp.bfloat16


# --------------------------------------------------------------------------
# helpers
# --------------------------------------------------------------------------
def _row_tile(m, target):
    """Largest row tile dividing m, multiple of 8, <= target.

    Falls back to the full extent when no such divisor exists (fine for the
    shapes here; awkward M would want a padded cdiv grid instead)."""
    if m <= target:
        return m
    best = None
    for t in range(8, target + 1, 8):
        if m % t == 0:
            best = t
    return best if best is not None else m


def _col_tile(f, target):
    """Largest multiple-of-128 tile dividing f (lane-dim legality), <= target."""
    if f <= target:
        return f
    best = None
    for t in range(128, target + 1, 128):
        if f % t == 0:
            best = t
    return best if best is not None else f


def _maybe_vmem_limit(est_bytes):
    """Explicit scoped-VMEM request for big configs (v5e's default scoped limit
    is only 16 MiB); capped at 64 MiB to stay within v7x's physical VMEM."""
    est = int(est_bytes)
    if est <= (16 << 20):
        return None          # compiler default is plenty at these sizes
    return min(est, 64 << 20)


def _layernorm(z, g, b, eps):
    mean = jnp.mean(z, axis=-1, keepdims=True)
    var = jnp.mean(jnp.square(z - mean), axis=-1, keepdims=True)
    return (z - mean) * jax.lax.rsqrt(var + eps) * g + b


# --------------------------------------------------------------------------
# Kernel 1: fused QKV projection (one [D, 3D] resident weight, bf16 MXU)
# --------------------------------------------------------------------------
def _qkv_proj_kernel(x_ref, w_ref, b_ref, q_ref, k_ref, v_ref, *, d):
    x = x_ref[...].astype(w_ref.dtype)            # bf16 MXU operands
    y = jnp.dot(x, w_ref[...], preferred_element_type=jnp.float32) + b_ref[...]
    # Columns are [Q | K | V], each head-major, so downstream head slices are
    # static lane slices; the three stores are lane-dense [tm, D] slabs.
    q_ref[...] = y[:, :d].astype(q_ref.dtype)
    k_ref[...] = y[:, d:2 * d].astype(k_ref.dtype)
    v_ref[...] = y[:, 2 * d:].astype(v_ref.dtype)


def qkv_projection(x2, w_qkv, b_qkv, *, target_rows=1024):
    M, D = x2.shape
    D3 = w_qkv.shape[1]
    tm = _row_tile(M, target_rows)
    wsz = jnp.dtype(w_qkv.dtype).itemsize
    est = (D * D3 * wsz + 2 * tm * D * 4 + 2 * 3 * tm * D * wsz + (2 << 20))
    row_in = pl.BlockSpec((tm, D), lambda i: (i, 0))
    row_out = pl.BlockSpec((tm, D), lambda i: (i, 0))
    out = jax.ShapeDtypeStruct((M, D), w_qkv.dtype)   # Q/K/V stored in MXU dtype
    return pl.pallas_call(
        functools.partial(_qkv_proj_kernel, d=D),
        out_shape=(out, out, out),
        grid=(M // tm,),
        in_specs=[row_in,
                  pl.BlockSpec((D, D3), lambda i: (0, 0)),   # resident fused weight
                  pl.BlockSpec((1, D3), lambda i: (0, 0))],
        out_specs=(row_out, row_out, row_out),
        compiler_params=pltpu.CompilerParams(
            dimension_semantics=("parallel",),
            vmem_limit_bytes=_maybe_vmem_limit(est)),
    )(x2, w_qkv, b_qkv)


# --------------------------------------------------------------------------
# Kernel 2: attention (+ relative positions) + out-proj + residual + LN1
# --------------------------------------------------------------------------
def _attn_out_ln_kernel(q_ref, k_ref, v_ref, x_ref, pad_ref, pos_ref,
                        wo_ref, bo_ref, g_ref, be_ref, o_ref, comb_ref, *,
                        heads, max_pos_len, inv_scale, eps):
    tq, D = q_ref.shape
    S = k_ref.shape[0]
    dh = D // heads
    nrel = 2 * max_pos_len + 1

    q = q_ref[...]                                  # [tq, D]  (bf16)
    k = k_ref[...]                                  # [S,  D]
    v = v_ref[...]                                  # [S,  D]
    pos = pos_ref[...]                              # [2L+1, Dh]

    # Mask bias (finite -1e30: NaN-free, one VPU add) and relative-offset
    # selection masks are built in-kernel from iota — no [B,S,S] bias and no
    # [S,S,Dh] gathered pos-embedding tensor ever exist in HBM.
    q0 = pl.program_id(1) * tq
    rows = jax.lax.broadcasted_iota(jnp.int32, (tq, S), 0) + q0
    cols = jax.lax.broadcasted_iota(jnp.int32, (tq, S), 1)
    rel_idx = jnp.clip(cols - rows, -max_pos_len, max_pos_len) + max_pos_len
    sel = [rel_idx == l for l in range(nrel)]       # shared across heads
    mask_bias = jnp.where(pad_ref[...] > 0, -1e30, 0.0)   # [1, S]

    ct = (((1,), (1,)), ((), ()))                   # A @ B.T (contract last dims)
    for h in range(heads):                          # static unroll, small H
        q_h = q[:, h * dh:(h + 1) * dh]
        k_h = k[:, h * dh:(h + 1) * dh]
        v_h = v[:, h * dh:(h + 1) * dh]
        # Content logits and "skew" relative-position logits: plain MXU
        # matmuls; only one [tq, S] f32 logits tile is live at a time.
        logits = jax.lax.dot_general(q_h, k_h, ct,
                                     preferred_element_type=jnp.float32)
        rel = jax.lax.dot_general(q_h, pos, ct,
                                  preferred_element_type=jnp.float32)  # [tq, 2L+1]
        pos_bias = jnp.zeros((tq, S), jnp.float32)
        for l in range(nrel):                       # scatter rel onto diagonals
            pos_bias = pos_bias + jnp.where(sel[l], rel[:, l:l + 1], 0.0)
        # TODO(synk): for large max_pos_len replace the (2L+1)-term select loop
        # with a lane gather (take_along_axis / dynamic_gather).
        logits = (logits + pos_bias) * inv_scale + mask_bias
        m = jnp.max(logits, axis=-1, keepdims=True)
        p = jnp.exp(logits - m)
        attn = p * pl.reciprocal(jnp.sum(p, axis=-1, keepdims=True), approx=True)
        comb_ref[:, h * dh:(h + 1) * dh] = jnp.dot(
            attn.astype(v_h.dtype), v_h, preferred_element_type=jnp.float32)

    # Fused epilogue: output projection + residual + LayerNorm1. `comb` never
    # leaves VMEM; the only HBM store is one lane-dense [tq, D] slab.
    y = jnp.dot(comb_ref[...].astype(wo_ref.dtype), wo_ref[...],
                preferred_element_type=jnp.float32) + bo_ref[...]
    z = y + x_ref[...]
    o_ref[...] = _layernorm(z, g_ref[...], be_ref[...], eps).astype(o_ref.dtype)


def attention_out_ln(Q, K, V, x, pad_b1s, pos_emb, w_out, b_out, g, be, *,
                     heads, max_pos_len, inv_scale, eps=1e-5, target_q=256):
    B, S, D = Q.shape
    tq = _row_tile(S, target_q)
    qsz = jnp.dtype(Q.dtype).itemsize
    wsz = jnp.dtype(w_out.dtype).itemsize
    est = (2 * 2 * S * D * qsz            # K, V blocks (double-buffered)
           + 2 * tq * D * (qsz + 4)       # Q + residual-x blocks
           + D * D * wsz                  # resident w_out
           + 2 * tq * D * 4               # output
           + tq * D * 4 + (2 << 20))      # comb scratch + slack
    # TODO(synk): for very long S add a KV grid axis with flash-style online
    # softmax instead of loading full-length K/V per block.
    kv_spec = pl.BlockSpec((None, S, D), lambda b, qi: (b, 0, 0))
    qrow = pl.BlockSpec((None, tq, D), lambda b, qi: (b, qi, 0))

    def full2(shape):
        return pl.BlockSpec(shape, lambda b, qi: (0, 0))

    return pl.pallas_call(
        functools.partial(_attn_out_ln_kernel, heads=heads,
                          max_pos_len=max_pos_len, inv_scale=inv_scale, eps=eps),
        out_shape=jax.ShapeDtypeStruct((B, S, D), x.dtype),
        grid=(B, S // tq),
        in_specs=[qrow, kv_spec, kv_spec, qrow,
                  pl.BlockSpec((None, 1, S), lambda b, qi: (b, 0, 0)),
                  full2(pos_emb.shape),
                  full2(w_out.shape),
                  full2((1, D)), full2((1, D)), full2((1, D))],
        out_specs=qrow,
        scratch_shapes=[pltpu.VMEM((tq, D), jnp.float32)],
        compiler_params=pltpu.CompilerParams(
            dimension_semantics=("parallel", "parallel"),
            vmem_limit_bytes=_maybe_vmem_limit(est)),
    )(Q, K, V, x, pad_b1s, pos_emb, w_out, b_out, g, be)


# --------------------------------------------------------------------------
# Kernel 3: fused FFN (w1, ReLU, w2) + residual + LN2, F axis tiled (grid
# reduction) so w1/w2 tiles and the [tm, tf] intermediate stay bounded in VMEM
# --------------------------------------------------------------------------
def _ffn_add_ln_kernel(x_ref, w1_ref, b1_ref, w2_ref, b2_ref, g_ref, be_ref,
                       o_ref, acc_ref, *, eps):
    fi = pl.program_id(1)

    @pl.when(fi == 0)
    def _():
        acc_ref[...] = jnp.zeros_like(acc_ref)

    x = x_ref[...]
    h = jnp.dot(x.astype(w1_ref.dtype), w1_ref[...],
                preferred_element_type=jnp.float32) + b1_ref[...]
    h = jnp.maximum(h, 0.0)                     # [tm, tf] stays in VMEM
    acc_ref[...] += jnp.dot(h.astype(w2_ref.dtype), w2_ref[...],
                            preferred_element_type=jnp.float32)

    @pl.when(fi == pl.num_programs(1) - 1)
    def _():
        z = acc_ref[...] + b2_ref[...] + x
        o_ref[...] = _layernorm(z, g_ref[...], be_ref[...], eps).astype(o_ref.dtype)


def ffn_ln(x2, w1, b1, w2, b2, g, be, *, eps=1e-5, target_rows=512,
           target_f=1024):
    M, D = x2.shape
    F = w1.shape[1]
    tm = _row_tile(M, target_rows)
    tf = _col_tile(F, target_f)
    wsz = jnp.dtype(w1.dtype).itemsize
    est = (2 * (D * tf + tf * D) * wsz + 2 * tf * 4    # w1/w2/b1 tiles
           + 2 * tm * D * 4 + 2 * tm * D * 4           # x block + output
           + tm * D * 4 + (2 << 20))                   # accumulator + slack
    row = pl.BlockSpec((tm, D), lambda i, f: (i, 0))
    vec_d = pl.BlockSpec((1, D), lambda i, f: (0, 0))
    return pl.pallas_call(
        functools.partial(_ffn_add_ln_kernel, eps=eps),
        out_shape=jax.ShapeDtypeStruct((M, D), x2.dtype),
        grid=(M // tm, F // tf),
        in_specs=[row,
                  pl.BlockSpec((D, tf), lambda i, f: (0, f)),
                  pl.BlockSpec((1, tf), lambda i, f: (0, f)),
                  pl.BlockSpec((tf, D), lambda i, f: (f, 0)),
                  vec_d, vec_d, vec_d],
        out_specs=row,
        scratch_shapes=[pltpu.VMEM((tm, D), jnp.float32)],
        compiler_params=pltpu.CompilerParams(
            dimension_semantics=("parallel", "arbitrary"),
            vmem_limit_bytes=_maybe_vmem_limit(est)),
    )(x2, w1, b1, w2, b2, g, be)


# --------------------------------------------------------------------------
# Parameter preparation (host-side, hoisted out of the jitted forward)
# --------------------------------------------------------------------------
def prepare_layer_params(p, heads, mxu_dtype=MXU_DTYPE):
    """Once at weight-load time: reorder w_in columns into a fused head-major
    [D, 3D] QKV weight and cast all matmul weights to the MXU dtype (biases /
    LayerNorm params stay f32)."""
    D = p["w_out"].shape[0]
    dh = D // heads
    w = p["w_in"].reshape(D, heads, 3, dh)      # PyTorch column order: [h, part, dh]
    b = p["b_in"].reshape(heads, 3, dh)
    w_qkv = jnp.concatenate([w[:, :, i, :].reshape(D, D) for i in range(3)], axis=1)
    b_qkv = jnp.concatenate([b[:, i, :].reshape(D) for i in range(3)])
    return dict(
        w_qkv=w_qkv.astype(mxu_dtype),
        b_qkv=b_qkv.reshape(1, 3 * D).astype(jnp.float32),
        pos_emb=p["pos_emb"].astype(mxu_dtype),
        w_out=p["w_out"].astype(mxu_dtype),
        b_out=p["b_out"].reshape(1, D).astype(jnp.float32),
        ln1_g=p["ln1_g"].reshape(1, D), ln1_b=p["ln1_b"].reshape(1, D),
        w1=p["w1"].astype(mxu_dtype),
        b1=p["b1"].reshape(1, -1).astype(jnp.float32),
        w2=p["w2"].astype(mxu_dtype),
        b2=p["b2"].reshape(1, D).astype(jnp.float32),
        ln2_g=p["ln2_g"].reshape(1, D), ln2_b=p["ln2_b"].reshape(1, D),
    )


# --------------------------------------------------------------------------
# Forward pass (glue: free reshapes in plain JAX)
# --------------------------------------------------------------------------
def encoder_layer_forward(x, pad_b1s, p, heads, max_pos_len):
    B, S, D = x.shape
    inv_scale = 1.0 / math.sqrt(D / heads)       # multiply instead of divide

    x2 = x.reshape(B * S, D)
    Q, K, V = qkv_projection(x2, p["w_qkv"], p["b_qkv"])
    Q = Q.reshape(B, S, D)                       # free metadata reshapes
    K = K.reshape(B, S, D)
    V = V.reshape(B, S, D)

    # attention + out-projection + residual + LayerNorm1 (dropout_1 = identity)
    h1 = attention_out_ln(Q, K, V, x, pad_b1s, p["pos_emb"], p["w_out"],
                          p["b_out"], p["ln1_g"], p["ln1_b"], heads=heads,
                          max_pos_len=max_pos_len, inv_scale=inv_scale)
    # FFN + residual + LayerNorm2 (dropout = identity)
    h2 = ffn_ln(h1.reshape(B * S, D), p["w1"], p["b1"], p["w2"], p["b2"],
                p["ln2_g"], p["ln2_b"])
    return h2.reshape(B, S, D)


def encoder_forward(x, pad, prepared_params, heads, max_pos_len):
    """pad: [B, S] key-padding mask (nonzero = masked key).
    TODO(synk): general broadcastable [B,S,S] masks would need a full-bias
    input path instead of the in-kernel key-padding broadcast.
    TODO(synk): nn.Dropout layers are identity at inference; training-mode
    stochastic dropout is not implemented."""
    B, S, D = x.shape
    x = x * math.sqrt(D)
    pad_b1s = pad.reshape(B, 1, S).astype(jnp.int32)
    for p in prepared_params:
        x = encoder_layer_forward(x, pad_b1s, p, heads, max_pos_len)
    return x


# --------------------------------------------------------------------------
# Pure-JAX reference (mirrors the PyTorch module, original weights).
# cast_dtype=bf16 gives a matched-precision reference (same operand casts as
# the kernels); cast_dtype=None is the plain f32 PyTorch-parity reference.
# --------------------------------------------------------------------------
def arrange_char_pos_embedding(len_k, len_q, max_len, embedding):
    k = jnp.arange(len_k)
    q = jnp.arange(len_q)
    indices = jnp.clip(k[None, :] - q[:, None], -max_len, max_len) + max_len
    return embedding[indices]                    # [len_q, len_k, Dh]


def _ref_encoder(x, pad, layer_params, heads, max_pos_len, cast_dtype=None):
    cast = (lambda a: a.astype(cast_dtype)) if cast_dtype is not None else (lambda a: a)

    def ln(z, g, b, eps=1e-5):
        m = z.mean(-1, keepdims=True)
        v = ((z - m) ** 2).mean(-1, keepdims=True)
        return (z - m) * jax.lax.rsqrt(v + eps) * g + b

    def layer(x, p):
        B, S, D = x.shape
        dh = D // heads
        scale = math.sqrt(D / heads)
        qkv = jnp.dot(cast(x), cast(p["w_in"]),
                      preferred_element_type=jnp.float32) + p["b_in"]
        qkv = qkv.reshape(B, S, heads, 3 * dh).transpose(0, 2, 1, 3)
        Q, K, V = (cast(t) for t in jnp.split(qkv, 3, axis=-1))
        logits = jnp.einsum("bhqd,bhkd->bhqk", Q, K,
                            preferred_element_type=jnp.float32)
        pos = arrange_char_pos_embedding(S, S, max_pos_len, cast(p["pos_emb"]))
        logits = logits + jnp.einsum("bhqd,qkd->bhqk", Q, pos,
                                     preferred_element_type=jnp.float32)
        logits = logits / scale
        logits = jnp.where(pad[:, None, None, :] > 0, -jnp.inf, logits)
        attn = jax.nn.softmax(logits, axis=-1)
        comb = jnp.einsum("bhqk,bhkd->bhqd", cast(attn), V,
                          preferred_element_type=jnp.float32)
        comb = comb.transpose(0, 2, 1, 3).reshape(B, S, D)
        attn_out = jnp.dot(cast(comb), cast(p["w_out"]),
                           preferred_element_type=jnp.float32) + p["b_out"]
        h1 = ln(attn_out + x, p["ln1_g"], p["ln1_b"])
        mid = jnp.maximum(jnp.dot(cast(h1), cast(p["w1"]),
                                  preferred_element_type=jnp.float32) + p["b1"], 0.0)
        y = jnp.dot(cast(mid), cast(p["w2"]),
                    preferred_element_type=jnp.float32) + p["b2"]
        return ln(y + h1, p["ln2_g"], p["ln2_b"])

    x = x * math.sqrt(x.shape[-1])
    for p in layer_params:
        x = layer(x, p)
    return x


# --------------------------------------------------------------------------
# Deterministic parameter init
# --------------------------------------------------------------------------
def init_layer_params(key, D, heads, max_pos_len):
    dh = D // heads
    ks = jax.random.split(key, 8)
    s = 0.05
    return dict(
        w_in=jax.random.normal(ks[0], (D, 3 * D), jnp.float32) * s,
        b_in=jax.random.normal(ks[1], (3 * D,), jnp.float32) * s,
        pos_emb=jax.random.normal(ks[2], (2 * max_pos_len + 1, dh), jnp.float32),
        w_out=jax.random.normal(ks[3], (D, D), jnp.float32) * s,
        b_out=jax.random.normal(ks[4], (D,), jnp.float32) * s,
        ln1_g=jnp.ones((D,), jnp.float32),
        ln1_b=jnp.zeros((D,), jnp.float32),
        w1=jax.random.normal(ks[5], (D, 4 * D), jnp.float32) * s,
        b1=jax.random.normal(ks[6], (4 * D,), jnp.float32) * s,
        w2=jax.random.normal(ks[7], (4 * D, D), jnp.float32) * s,
        b2=jnp.zeros((D,), jnp.float32),
        ln2_g=jnp.ones((D,), jnp.float32),
        ln2_b=jnp.zeros((D,), jnp.float32),
    )


# --------------------------------------------------------------------------
if __name__ == "__main__":
    B, S, D, H = 2, 8, 32, 4
    MAX_POS_LEN, LAYERS = 4, 2

    key = jax.random.PRNGKey(0)
    kx, kp = jax.random.split(key)
    x = jax.random.normal(kx, (B, S, D), jnp.float32)

    # key-padding mask: 1 = masked key
    lengths = jnp.array([S, S - 2])
    pad = (jnp.arange(S)[None, :] >= lengths[:, None]).astype(jnp.int32)  # [B, S]

    raw_params = [init_layer_params(k, D, H, MAX_POS_LEN)
                  for k in jax.random.split(kp, LAYERS)]
    # hoisted out of the jitted forward: column reorder + bf16 weight casts
    params = [prepare_layer_params(p, H) for p in raw_params]

    @jax.jit
    def run(xx, pp, prm):
        return encoder_forward(xx, pp, prm, H, MAX_POS_LEN)

    out = jax.block_until_ready(run(x, pad, params))
    assert out.shape == (B, S, D)

    # Tight check vs a matched-precision (bf16-operand, f32-accumulate)
    # reference: only accumulation order, the finite -1e30 mask bias and the
    # EUP approx reciprocal differ from the kernels.
    ref_match = _ref_encoder(x, pad, raw_params, H, MAX_POS_LEN,
                             cast_dtype=MXU_DTYPE)
    err_match = float(jnp.max(jnp.abs(out - ref_match)))
    assert jnp.allclose(out, ref_match, atol=1e-2, rtol=1e-2), err_match

    # Loose check vs the pure-f32 PyTorch-parity reference: bounds bf16 drift
    # accumulated over two encoder layers.
    ref_f32 = _ref_encoder(x, pad, raw_params, H, MAX_POS_LEN, cast_dtype=None)
    err_f32 = float(jnp.max(jnp.abs(out - ref_f32)))
    assert jnp.allclose(out, ref_f32, atol=1e-1, rtol=1e-1), err_f32

    print("KERNEL_OK")
</pallas_src>

<mosaic_0001>
module attributes {stable_mosaic.version = 11 : i64} {
  func.func @_qkv_proj_kernel(%arg0: i32, %arg1: memref<16x32xf32, #tpu.memory_space<vmem>>, %arg2: memref<32x96xbf16, #tpu.memory_space<vmem>>, %arg3: memref<1x96xf32, #tpu.memory_space<vmem>>, %arg4: memref<16x32xbf16, #tpu.memory_space<vmem>>, %arg5: memref<16x32xbf16, #tpu.memory_space<vmem>>, %arg6: memref<16x32xbf16, #tpu.memory_space<vmem>>) attributes {dimension_semantics = [#tpu.dimension_semantics<parallel>], iteration_bounds = array<i64: 1>, scalar_prefetch = 0 : i64, scratch_operands = 0 : i64, tpu.core_type = #tpu.core_type<tc>, window_params = [{transform_indices = @transform_0, window_bounds = array<i64: 16, 32>}, {pipeline_mode = #tpu.pipeline_mode<synchronous>, transform_indices = @transform_1, window_bounds = array<i64: 32, 96>}, {pipeline_mode = #tpu.pipeline_mode<synchronous>, transform_indices = @transform_2, window_bounds = array<i64: 1, 96>}, {transform_indices = @transform_3, window_bounds = array<i64: 16, 32>}, {transform_indices = @transform_4, window_bounds = array<i64: 16, 32>}, {transform_indices = @transform_5, window_bounds = array<i64: 16, 32>}]} {
    %c0 = arith.constant 0 : index
    %c0_0 = arith.constant 0 : index
    %0 = vector.load %arg1[%c0, %c0_0] : memref<16x32xf32, #tpu.memory_space<vmem>>, vector<16x32xf32>
    %1 = arith.truncf %0 : vector<16x32xf32> to vector<16x32xbf16>
    %c0_1 = arith.constant 0 : index
    %c0_2 = arith.constant 0 : index
    %2 = vector.load %arg2[%c0_1, %c0_2] : memref<32x96xbf16, #tpu.memory_space<vmem>>, vector<32x96xbf16>
    %cst = arith.constant dense<0.000000e+00> : vector<16x96xf32>
    %3 = tpu.matmul %1, %2, %cst {dimension_numbers = #tpu.dot_dimension_numbers<[1], [0], [0], [1], [0, 0, 1, 1], [], []>} : vector<16x32xbf16>, vector<32x96xbf16>, vector<16x96xf32> -> vector<16x96xf32>
    %c0_3 = arith.constant 0 : index
    %c0_4 = arith.constant 0 : index
    %4 = vector.load %arg3[%c0_3, %c0_4] : memref<1x96xf32, #tpu.memory_space<vmem>>, vector<1x96xf32>
    %5 = vector.broadcast %4 : vector<1x96xf32> to vector<16x96xf32>
    %6 = arith.addf %3, %5 : vector<16x96xf32>
    %7 = vector.extract_strided_slice %6 {offsets = [0, 0], sizes = [16, 32], strides = [1, 1]} : vector<16x96xf32> to vector<16x32xf32>
    %8 = arith.truncf %7 : vector<16x32xf32> to vector<16x32xbf16>
    %c0_5 = arith.constant 0 : index
    %c0_6 = arith.constant 0 : index
    %9 = vector.load %arg4[%c0_5, %c0_6] : memref<16x32xbf16, #tpu.memory_space<vmem>>, vector<16x32xbf16>
    tpu.vector_store %arg4[%c0_5, %c0_6], %8 {strides = array<i32>} : memref<16x32xbf16, #tpu.memory_space<vmem>>, vector<16x32xbf16>,
    %10 = vector.extract_strided_slice %6 {offsets = [0, 32], sizes = [16, 32], strides = [1, 1]} : vector<16x96xf32> to vector<16x32xf32>
    %11 = arith.truncf %10 : vector<16x32xf32> to vector<16x32xbf16>
    %c0_7 = arith.constant 0 : index
    %c0_8 = arith.constant 0 : index
    %12 = vector.load %arg5[%c0_7, %c0_8] : memref<16x32xbf16, #tpu.memory_space<vmem>>, vector<16x32xbf16>
    tpu.vector_store %arg5[%c0_7, %c0_8], %11 {strides = array<i32>} : memref<16x32xbf16, #tpu.memory_space<vmem>>, vector<16x32xbf16>,
    %13 = vector.extract_strided_slice %6 {offsets = [0, 64], sizes = [16, 32], strides = [1, 1]} : vector<16x96xf32> to vector<16x32xf32>
    %14 = arith.truncf %13 : vector<16x32xf32> to vector<16x32xbf16>
    %c0_9 = arith.constant 0 : index
    %c0_10 = arith.constant 0 : index
    %15 = vector.load %arg6[%c0_9, %c0_10] : memref<16x32xbf16, #tpu.memory_space<vmem>>, vector<16x32xbf16>
    tpu.vector_store %arg6[%c0_9, %c0_10], %14 {strides = array<i32>} : memref<16x32xbf16, #tpu.memory_space<vmem>>, vector<16x32xbf16>,
    return
  }
  func.func @transform_0(%arg0: i32) -> (i32, i32) {
    %c0_i32 = arith.constant 0 : i32
    %c0_i32_0 = arith.constant 0 : i32
    return %arg0, %c0_i32 : i32, i32
  }
  func.func @transform_1(%arg0: i32) -> (i32, i32) {
    %c0_i32 = arith.constant 0 : i32
    %c0_i32_0 = arith.constant 0 : i32
    %c0_i32_1 = arith.constant 0 : i32
    return %c0_i32, %c0_i32_0 : i32, i32
  }
  func.func @transform_2(%arg0: i32) -> (i32, i32) {
    %c0_i32 = arith.constant 0 : i32
    %c0_i32_0 = arith.constant 0 : i32
    %c0_i32_1 = arith.constant 0 : i32
    return %c0_i32, %c0_i32_0 : i32, i32
  }
  func.func @transform_3(%arg0: i32) -> (i32, i32) {
    %c0_i32 = arith.constant 0 : i32
    %c0_i32_0 = arith.constant 0 : i32
    return %arg0, %c0_i32 : i32, i32
  }
  func.func @transform_4(%arg0: i32) -> (i32, i32) {
    %c0_i32 = arith.constant 0 : i32
    %c0_i32_0 = arith.constant 0 : i32
    return %arg0, %c0_i32 : i32, i32
  }
  func.func @transform_5(%arg0: i32) -> (i32, i32) {
    %c0_i32 = arith.constant 0 : i32
    %c0_i32_0 = arith.constant 0 : i32
    return %arg0, %c0_i32 : i32, i32
  }
}

module attributes {stable_mosaic.version = 11 : i64} {
  func.func @_attn_out_ln_kernel(%arg0: i32, %arg1: i32, %arg2: memref<1x8x32xbf16, #tpu.memory_space<vmem>>, %arg3: memref<1x8x32xbf16, #tpu.memory_space<vmem>>, %arg4: memref<1x8x32xbf16, #tpu.memory_space<vmem>>, %arg5: memref<1x8x32xf32, #tpu.memory_space<vmem>>, %arg6: memref<1x1x8xi32, #tpu.memory_space<vmem>>, %arg7: memref<9x8xbf16, #tpu.memory_space<vmem>>, %arg8: memref<32x32xbf16, #tpu.memory_space<vmem>>, %arg9: memref<1x32xf32, #tpu.memory_space<vmem>>, %arg10: memref<1x32xf32, #tpu.memory_space<vmem>>, %arg11: memref<1x32xf32, #tpu.memory_space<vmem>>, %arg12: memref<1x8x32xf32, #tpu.memory_space<vmem>>, %arg13: memref<8x32xf32, #tpu.memory_space<vmem>>) attributes {dimension_semantics = [#tpu.dimension_semantics<parallel>, #tpu.dimension_semantics<parallel>], iteration_bounds = array<i64: 2, 1>, scalar_prefetch = 0 : i64, scratch_operands = 1 : i64, tpu.core_type = #tpu.core_type<tc>, window_params = [{transform_indices = @transform_0, window_bounds = array<i64: 1, 8, 32>}, {transform_indices = @transform_1, window_bounds = array<i64: 1, 8, 32>}, {transform_indices = @transform_2, window_bounds = array<i64: 1, 8, 32>}, {transform_indices = @transform_3, window_bounds = array<i64: 1, 8, 32>}, {transform_indices = @transform_4, window_bounds = array<i64: 1, 1, 8>}, {pipeline_mode = #tpu.pipeline_mode<synchronous>, transform_indices = @transform_5, window_bounds = array<i64: 9, 8>}, {pipeline_mode = #tpu.pipeline_mode<synchronous>, transform_indices = @transform_6, window_bounds = array<i64: 32, 32>}, {pipeline_mode = #tpu.pipeline_mode<synchronous>, transform_indices = @transform_7, window_bounds = array<i64: 1, 32>}, {pipeline_mode = #tpu.pipeline_mode<synchronous>, transform_indices = @transform_8, window_bounds = array<i64: 1, 32>}, {pipeline_mode = #tpu.pipeline_mode<synchronous>, transform_indices = @transform_9, window_bounds = array<i64: 1, 32>}, {transform_indices = @transform_10, window_bounds = array<i64: 1, 8, 32>}]} {
    %c0 = arith.constant 0 : index
    %c0_0 = arith.constant 0 : index
    %c0_1 = arith.constant 0 : index
    %0 = vector.load %arg2[%c0, %c0_0, %c0_1] : memref<1x8x32xbf16, #tpu.memory_space<vmem>>, vector<1x8x32xbf16>
    %1 = vector.shape_cast %0 : vector<1x8x32xbf16> to vector<8x32xbf16>
    %c0_2 = arith.constant 0 : index
    %c0_3 = arith.constant 0 : index
    %c0_4 = arith.constant 0 : index
    %2 = vector.load %arg3[%c0_2, %c0_3, %c0_4] : memref<1x8x32xbf16, #tpu.memory_space<vmem>>, vector<1x8x32xbf16>
    %3 = vector.shape_cast %2 : vector<1x8x32xbf16> to vector<8x32xbf16>
    %c0_5 = arith.constant 0 : index
    %c0_6 = arith.constant 0 : index
    %c0_7 = arith.constant 0 : index
    %4 = vector.load %arg4[%c0_5, %c0_6, %c0_7] : memref<1x8x32xbf16, #tpu.memory_space<vmem>>, vector<1x8x32xbf16>
    %5 = vector.shape_cast %4 : vector<1x8x32xbf16> to vector<8x32xbf16>
    %c0_8 = arith.constant 0 : index
    %c0_9 = arith.constant 0 : index
    %6 = vector.load %arg7[%c0_8, %c0_9] : memref<9x8xbf16, #tpu.memory_space<vmem>>, vector<9x8xbf16>
    %c8_i32 = arith.constant 8 : i32
    %7 = arith.muli %arg1, %c8_i32 : i32
    %8 = tpu.iota {dimensions = array<i32: 0>} : vector<8x8xi32>
    %9 = vector.broadcast %7 : i32 to vector<8x8xi32>
    %10 = arith.addi %8, %9 : vector<8x8xi32>
    %11 = tpu.iota {dimensions = array<i32: 1>} : vector<8x8xi32>
    %12 = arith.subi %11, %10 : vector<8x8xi32>
    %c-4_i32 = arith.constant -4 : i32
    %c4_i32 = arith.constant 4 : i32
    %13 = vector.broadcast %c-4_i32 : i32 to vector<8x8xi32>
    %14 = arith.maxsi %13, %12 : vector<8x8xi32>
    %15 = vector.broadcast %c4_i32 : i32 to vector<8x8xi32>
    %16 = arith.minsi %15, %14 : vector<8x8xi32>
    %c4_i32_10 = arith.constant 4 : i32
    %17 = vector.broadcast %c4_i32_10 : i32 to vector<8x8xi32>
    %18 = arith.addi %16, %17 : vector<8x8xi32>
    %c0_i32 = arith.constant 0 : i32
    %19 = vector.broadcast %c0_i32 : i32 to vector<8x8xi32>
    %20 = arith.cmpi eq, %18, %19 : vector<8x8xi32>
    %c1_i32 = arith.constant 1 : i32
    %21 = vector.broadcast %c1_i32 : i32 to vector<8x8xi32>
    %22 = arith.cmpi eq, %18, %21 : vector<8x8xi32>
    %c2_i32 = arith.constant 2 : i32
    %23 = vector.broadcast %c2_i32 : i32 to vector<8x8xi32>
    %24 = arith.cmpi eq, %18, %23 : vector<8x8xi32>
    %c3_i32 = arith.constant 3 : i32
    %25 = vector.broadcast %c3_i32 : i32 to vector<8x8xi32>
    %26 = arith.cmpi eq, %18, %25 : vector<8x8xi32>
    %c4_i32_11 = arith.constant 4 : i32
    %27 = vector.broadcast %c4_i32_11 : i32 to vector<8x8xi32>
    %28 = arith.cmpi eq, %18, %27 : vector<8x8xi32>
    %c5_i32 = arith.constant 5 : i32
    %29 = vector.broadcast %c5_i32 : i32 to vector<8x8xi32>
    %30 = arith.cmpi eq, %18, %29 : vector<8x8xi32>
    %c6_i32 = arith.constant 6 : i32
    %31 = vector.broadcast %c6_i32 : i32 to vector<8x8xi32>
    %32 = arith.cmpi eq, %18, %31 : vector<8x8xi32>
    %c7_i32 = arith.constant 7 : i32
    %33 = vector.broadcast %c7_i32 : i32 to vector<8x8xi32>
    %34 = arith.cmpi eq, %18, %33 : vector<8x8xi32>
    %c8_i32_12 = arith.constant 8 : i32
    %35 = vector.broadcast %c8_i32_12 : i32 to vector<8x8xi32>
    %36 = arith.cmpi eq, %18, %35 : vector<8x8xi32>
    %c0_13 = arith.constant 0 : index
    %c0_14 = arith.constant 0 : index
    %c0_15 = arith.constant 0 : index
    %37 = vector.load %arg6[%c0_13, %c0_14, %c0_15] : memref<1x1x8xi32, #tpu.memory_space<vmem>>, vector<1x1x8xi32>
    %38 = vector.shape_cast %37 : vector<1x1x8xi32> to vector<1x8xi32>
    %c0_i32_16 = arith.constant 0 : i32
    %39 = vector.broadcast %c0_i32_16 : i32 to vector<1x8xi32>
    %40 = arith.cmpi sgt, %38, %39 : vector<1x8xi32>
    %cst = arith.constant -1.000000e+30 : f32
    %cst_17 = arith.constant 0.000000e+00 : f32
    %41 = vector.broadcast %cst : f32 to vector<1x8xf32>
    %42 = vector.broadcast %cst_17 : f32 to vector<1x8xf32>
    %43 = arith.select %40, %41, %42 : vector<1x8xi1>, vector<1x8xf32>
    %44 = vector.extract_strided_slice %1 {offsets = [0, 0], sizes = [8, 8], strides = [1, 1]} : vector<8x32xbf16> to vector<8x8xbf16>
    %45 = vector.extract_strided_slice %3 {offsets = [0, 0], sizes = [8, 8], strides = [1, 1]} : vector<8x32xbf16> to vector<8x8xbf16>
    %46 = vector.extract_strided_slice %5 {offsets = [0, 0], sizes = [8, 8], strides = [1, 1]} : vector<8x32xbf16> to vector<8x8xbf16>
    %cst_18 = arith.constant dense<0.000000e+00> : vector<8x8xf32>
    %47 = tpu.matmul %44, %45, %cst_18 {dimension_numbers = #tpu.dot_dimension_numbers<[1], [1], [0], [0], [0, 0, 1, 0], [], []>} : vector<8x8xbf16>, vector<8x8xbf16>, vector<8x8xf32> -> vector<8x8xf32>
    %cst_19 = arith.constant dense<0.000000e+00> : vector<8x9xf32>
    %48 = tpu.matmul %44, %6, %cst_19 {dimension_numbers = #tpu.dot_dimension_numbers<[1], [1], [0], [0], [0, 0, 1, 0], [], []>} : vector<8x8xbf16>, vector<9x8xbf16>, vector<8x9xf32> -> vector<8x9xf32>
    %cst_20 = arith.constant 0.000000e+00 : f32
    %49 = vector.broadcast %cst_20 : f32 to vector<8x8xf32>
    %50 = vector.extract_strided_slice %48 {offsets = [0, 0], sizes = [8, 1], strides = [1, 1]} : vector<8x9xf32> to vector<8x1xf32>
    %cst_21 = arith.constant 0.000000e+00 : f32
    %51 = vector.shape_cast %50 : vector<8x1xf32> to vector<8x1xf32>
    %52 = vector.broadcast %51 : vector<8x1xf32> to vector<8x8xf32>
    %53 = vector.broadcast %cst_21 : f32 to vector<8x8xf32>
    %54 = arith.select %20, %52, %53 : vector<8x8xi1>, vector<8x8xf32>
    %55 = arith.addf %49, %54 : vector<8x8xf32>
    %56 = vector.extract_strided_slice %48 {offsets = [0, 1], sizes = [8, 1], strides = [1, 1]} : vector<8x9xf32> to vector<8x1xf32>
    %cst_22 = arith.constant 0.000000e+00 : f32
    %57 = vector.shape_cast %56 : vector<8x1xf32> to vector<8x1xf32>
    %58 = vector.broadcast %57 : vector<8x1xf32> to vector<8x8xf32>
    %59 = vector.broadcast %cst_22 : f32 to vector<8x8xf32>
    %60 = arith.select %22, %58, %59 : vector<8x8xi1>, vector<8x8xf32>
    %61 = arith.addf %55, %60 : vector<8x8xf32>
    %62 = vector.extract_strided_slice %48 {offsets = [0, 2], sizes = [8, 1], strides = [1, 1]} : vector<8x9xf32> to vector<8x1xf32>
    %cst_23 = arith.constant 0.000000e+00 : f32
    %63 = vector.shape_cast %62 : vector<8x1xf32> to vector<8x1xf32>
    %64 = vector.broadcast %63 : vector<8x1xf32> to vector<8x8xf32>
    %65 = vector.broadcast %cst_23 : f32 to vector<8x8xf32>
    %66 = arith.select %24, %64, %65 : vector<8x8xi1>, vector<8x8xf32>
    %67 = arith.addf %61, %66 : vector<8x8xf32>
    %68 = vector.extract_strided_slice %48 {offsets = [0, 3], sizes = [8, 1], strides = [1, 1]} : vector<8x9xf32> to vector<8x1xf32>
    %cst_24 = arith.constant 0.000000e+00 : f32
    %69 = vector.shape_cast %68 : vector<8x1xf32> to vector<8x1xf32>
    %70 = vector.broadcast %69 : vector<8x1xf32> to vector<8x8xf32>
    %71 = vector.broadcast %cst_24 : f32 to vector<8x8xf32>
    %72 = arith.select %26, %70, %71 : vector<8x8xi1>, vector<8x8xf32>
    %73 = arith.addf %67, %72 : vector<8x8xf32>
    %74 = vector.extract_strided_slice %48 {offsets = [0, 4], sizes = [8, 1], strides = [1, 1]} : vector<8x9xf32> to vector<8x1xf32>
    %cst_25 = arith.constant 0.000000e+00 : f32
    %75 = vector.shape_cast %74 : vector<8x1xf32> to vector<8x1xf32>
    %76 = vector.broadcast %75 : vector<8x1xf32> to vector<8x8xf32>
    %77 = vector.broadcast %cst_25 : f32 to vector<8x8xf32>
    %78 = arith.select %28, %76, %77 : vector<8x8xi1>, vector<8x8xf32>
    %79 = arith.addf %73, %78 : vector<8x8xf32>
    %80 = vector.extract_strided_slice %48 {offsets = [0, 5], sizes = [8, 1], strides = [1, 1]} : vector<8x9xf32> to vector<8x1xf32>
    %cst_26 = arith.constant 0.000000e+00 : f32
    %81 = vector.shape_cast %80 : vector<8x1xf32> to vector<8x1xf32>
    %82 = vector.broadcast %81 : vector<8x1xf32> to vector<8x8xf32>
    %83 = vector.broadcast %cst_26 : f32 to vector<8x8xf32>
    %84 = arith.select %30, %82, %83 : vector<8x8xi1>, vector<8x8xf32>
    %85 = arith.addf %79, %84 : vector<8x8xf32>
    %86 = vector.extract_strided_slice %48 {offsets = [0, 6], sizes = [8, 1], strides = [1, 1]} : vector<8x9xf32> to vector<8x1xf32>
    %cst_27 = arith.constant 0.000000e+00 : f32
    %87 = vector.shape_cast %86 : vector<8x1xf32> to vector<8x1xf32>
    %88 = vector.broadcast %87 : vector<8x1xf32> to vector<8x8xf32>
    %89 = vector.broadcast %cst_27 : f32 to vector<8x8xf32>
    %90 = arith.select %32, %88, %89 : vector<8x8xi1>, vector<8x8xf32>
    %91 = arith.addf %85, %90 : vector<8x8xf32>
    %92 = vector.extract_strided_slice %48 {offsets = [0, 7], sizes = [8, 1], strides = [1, 1]} : vector<8x9xf32> to vector<8x1xf32>
    %cst_28 = arith.constant 0.000000e+00 : f32
    %93 = vector.shape_cast %92 : vector<8x1xf32> to vector<8x1xf32>
    %94 = vector.broadcast %93 : vector<8x1xf32> to vector<8x8xf32>
    %95 = vector.broadcast %cst_28 : f32 to vector<8x8xf32>
    %96 = arith.select %34, %94, %95 : vector<8x8xi1>, vector<8x8xf32>
    %97 = arith.addf %91, %96 : vector<8x8xf32>
    %98 = vector.extract_strided_slice %48 {offsets = [0, 8], sizes = [8, 1], strides = [1, 1]} : vector<8x9xf32> to vector<8x1xf32>
    %cst_29 = arith.constant 0.000000e+00 : f32
    %99 = vector.shape_cast %98 : vector<8x1xf32> to vector<8x1xf32>
    %100 = vector.broadcast %99 : vector<8x1xf32> to vector<8x8xf32>
    %101 = vector.broadcast %cst_29 : f32 to vector<8x8xf32>
    %102 = arith.select %36, %100, %101 : vector<8x8xi1>, vector<8x8xf32>
    %103 = arith.addf %97, %102 : vector<8x8xf32>
    %104 = arith.addf %47, %103 : vector<8x8xf32>
    %cst_30 = arith.constant 0.353553385 : f32
    %105 = vector.broadcast %cst_30 : f32 to vector<8x8xf32>
    %106 = arith.mulf %104, %105 : vector<8x8xf32>
    %107 = vector.broadcast %43 : vector<1x8xf32> to vector<8x8xf32>
    %108 = arith.addf %106, %107 : vector<8x8xf32>
    %cst_31 = arith.constant dense<0xFF800000> : vector<8xf32>
    %109 = vector.multi_reduction <maximumf>, %108, %cst_31 [1] : vector<8x8xf32> to vector<8xf32>
    %110 = vector.shape_cast %109 : vector<8xf32> to vector<8x1xf32>
    %111 = vector.broadcast %110 : vector<8x1xf32> to vector<8x8xf32>
    %112 = arith.subf %108, %111 : vector<8x8xf32>
    %113 = math.exp %112 : vector<8x8xf32>
    %cst_32 = arith.constant dense<0.000000e+00> : vector<8xf32>
    %114 = vector.multi_reduction <add>, %113, %cst_32 [1] : vector<8x8xf32> to vector<8xf32>
    %115 = vector.shape_cast %114 : vector<8xf32> to vector<8x1xf32>
    %116 = tpu.reciprocal %115 {approx = true} : vector<8x1xf32> -> vector<8x1xf32>
    %117 = vector.broadcast %116 : vector<8x1xf32> to vector<8x8xf32>
    %118 = arith.mulf %113, %117 : vector<8x8xf32>
    %119 = arith.truncf %118 : vector<8x8xf32> to vector<8x8xbf16>
    %cst_33 = arith.constant dense<0.000000e+00> : vector<8x8xf32>
    %120 = tpu.matmul %119, %46, %cst_33 {dimension_numbers = #tpu.dot_dimension_numbers<[1], [0], [0], [1], [0, 0, 1, 1], [], []>} : vector<8x8xbf16>, vector<8x8xbf16>, vector<8x8xf32> -> vector<8x8xf32>
    %c0_34 = arith.constant 0 : index
    %c0_35 = arith.constant 0 : index
    %121 = vector.load %arg13[%c0_34, %c0_35] : memref<8x32xf32, #tpu.memory_space<vmem>>, vector<8x8xf32>
    tpu.vector_store %arg13[%c0_34, %c0_35], %120 {strides = array<i32>} : memref<8x32xf32, #tpu.memory_space<vmem>>, vector<8x8xf32>,
    %122 = vector.extract_strided_slice %1 {offsets = [0, 8], sizes = [8, 8], strides = [1, 1]} : vector<8x32xbf16> to vector<8x8xbf16>
    %123 = vector.extract_strided_slice %3 {offsets = [0, 8], sizes = [8, 8], strides = [1, 1]} : vector<8x32xbf16> to vector<8x8xbf16>
    %124 = vector.extract_strided_slice %5 {offsets = [0, 8], sizes = [8, 8], strides = [1, 1]} : vector<8x32xbf16> to vector<8x8xbf16>
    %cst_36 = arith.constant dense<0.000000e+00> : vector<8x8xf32>
    %125 = tpu.matmul %122, %123, %cst_36 {dimension_numbers = #tpu.dot_dimension_numbers<[1], [1], [0], [0], [0, 0, 1, 0], [], []>} : vector<8x8xbf16>, vector<8x8xbf16>, vector<8x8xf32> -> vector<8x8xf32>
    %cst_37 = arith.constant dense<0.000000e+00> : vector<8x9xf32>
    %126 = tpu.matmul %122, %6, %cst_37 {dimension_numbers = #tpu.dot_dimension_numbers<[1], [1], [0], [0], [0, 0, 1, 0], [], []>} : vector<8x8xbf16>, vector<9x8xbf16>, vector<8x9xf32> -> vector<8x9xf32>
    %cst_38 = arith.constant 0.000000e+00 : f32
    %127 = vector.broadcast %cst_38 : f32 to vector<8x8xf32>
    %128 = vector.extract_strided_slice %126 {offsets = [0, 0], sizes = [8, 1], strides = [1, 1]} : vector<8x9xf32> to vector<8x1xf32>
    %cst_39 = arith.constant 0.000000e+00 : f32
    %129 = vector.shape_cast %128 : vector<8x1xf32> to vector<8x1xf32>
    %130 = vector.broadcast %129 : vector<8x1xf32> to vector<8x8xf32>
    %131 = vector.broadcast %cst_39 : f32 to vector<8x8xf32>
    %132 = arith.select %20, %130, %131 : vector<8x8xi1>, vector<8x8xf32>
    %133 = arith.addf %127, %132 : vector<8x8xf32>
    %134 = vector.extract_strided_slice %126 {offsets = [0, 1], sizes = [8, 1], strides = [1, 1]} : vector<8x9xf32> to vector<8x1xf32>
    %cst_40 = arith.constant 0.000000e+00 : f32
    %135 = vector.shape_cast %134 : vector<8x1xf32> to vector<8x1xf32>
    %136 = vector.broadcast %135 : vector<8x1xf32> to vector<8x8xf32>
    %137 = vector.broadcast %cst_40 : f32 to vector<8x8xf32>
    %138 = arith.select %22, %136, %137 : vector<8x8xi1>, vector<8x8xf32>
    %139 = arith.addf %133, %138 : vector<8x8xf32>
    %140 = vector.extract_strided_slice %126 {offsets = [0, 2], sizes = [8, 1], strides = [1, 1]} : vector<8x9xf32> to vector<8x1xf32>
    %cst_41 = arith.constant 0.000000e+00 : f32
    %141 = vector.shape_cast %140 : vector<8x1xf32> to vector<8x1xf32>
    %142 = vector.broadcast %141 : vector<8x1xf32> to vector<8x8xf32>
    %143 = vector.broadcast %cst_41 : f32 to vector<8x8xf32>
    %144 = arith.select %24, %142, %143 : vector<8x8xi1>, vector<8x8xf32>
    %145 = arith.addf %139, %144 : vector<8x8xf32>
    %146 = vector.extract_strided_slice %126 {offsets = [0, 3], sizes = [8, 1], strides = [1, 1]} : vector<8x9xf32> to vector<8x1xf32>
    %cst_42 = arith.constant 0.000000e+00 : f32
    %147 = vector.shape_cast %146 : vector<8x1xf32> to vector<8x1xf32>
    %148 = vector.broadcast %147 : vector<8x1xf32> to vector<8x8xf32>
    %149 = vector.broadcast %cst_42 : f32 to vector<8x8xf32>
    %150 = arith.select %26, %148, %149 : vector<8x8xi1>, vector<8x8xf32>
    %151 = arith.addf %145, %150 : vector<8x8xf32>
    %152 = vector.extract_strided_slice %126 {offsets = [0, 4], sizes = [8, 1], strides = [1, 1]} : vector<8x9xf32> to vector<8x1xf32>
    %cst_43 = arith.constant 0.000000e+00 : f32
    %153 = vector.shape_cast %152 : vector<8x1xf32> to vector<8x1xf32>
    %154 = vector.broadcast %153 : vector<8x1xf32> to vector<8x8xf32>
    %155 = vector.broadcast %cst_43 : f32 to vector<8x8xf32>
    %156 = arith.select %28, %154, %155 : vector<8x8xi1>, vector<8x8xf32>
    %157 = arith.addf %151, %156 : vector<8x8xf32>
    %158 = vector.extract_strided_slice %126 {offsets = [0, 5], sizes = [8, 1], strides = [1, 1]} : vector<8x9xf32> to vector<8x1xf32>
    %cst_44 = arith.constant 0.000000e+00 : f32
    %159 = vector.shape_cast %158 : vector<8x1xf32> to vector<8x1xf32>
    %160 = vector.broadcast %159 : vector<8x1xf32> to vector<8x8xf32>
    %161 = vector.broadcast %cst_44 : f32 to vector<8x8xf32>
    %162 = arith.select %30, %160, %161 : vector<8x8xi1>, vector<8x8xf32>
    %163 = arith.addf %157, %162 : vector<8x8xf32>
    %164 = vector.extract_strided_slice %126 {offsets = [0, 6], sizes = [8, 1], strides = [1, 1]} : vector<8x9xf32> to vector<8x1xf32>
    %cst_45 = arith.constant 0.000000e+00 : f32
    %165 = vector.shape_cast %164 : vector<8x1xf32> to vector<8x1xf32>
    %166 = vector.broadcast %165 : vector<8x1xf32> to vector<8x8xf32>
    %167 = vector.broadcast %cst_45 : f32 to vector<8x8xf32>
    %168 = arith.select %32, %166, %167 : vector<8x8xi1>, vector<8x8xf32>
    %169 = arith.addf %163, %168 : vector<8x8xf32>
    %170 = vector.extract_strided_slice %126 {offsets = [0, 7], sizes = [8, 1], strides = [1, 1]} : vector<8x9xf32> to vector<8x1xf32>
    %cst_46 = arith.constant 0.000000e+00 : f32
    %171 = vector.shape_cast %170 : vector<8x1xf32> to vector<8x1xf32>
    %172 = vector.broadcast %171 : vector<8x1xf32> to vector<8x8xf32>
    %173 = vector.broadcast %cst_46 : f32 to vector<8x8xf32>
    %174 = arith.select %34, %172, %173 : vector<8x8xi1>, vector<8x8xf32>
    %175 = arith.addf %169, %174 : vector<8x8xf32>
    %176 = vector.extract_strided_slice %126 {offsets = [0, 8], sizes = [8, 1], strides = [1, 1]} : vector<8x9xf32> to vector<8x1xf32>
    %cst_47 = arith.constant 0.000000e+00 : f32
    %177 = vector.shape_cast %176 : vector<8x1xf32> to vector<8x1xf32>
    %178 = vector.broadcast %177 : vector<8x1xf32> to vector<8x8xf32>
    %179 = vector.broadcast %cst_47 : f32 to vector<8x8xf32>
    %180 = arith.select %36, %178, %179 : vector<8x8xi1>, vector<8x8xf32>
    %181 = arith.addf %175, %180 : vector<8x8xf32>
    %182 = arith.addf %125, %181 : vector<8x8xf32>
    %cst_48 = arith.constant 0.353553385 : f32
    %183 = vector.broadcast %cst_48 : f32 to vector<8x8xf32>
    %184 = arith.mulf %182, %183 : vector<8x8xf32>
    %185 = vector.broadcast %43 : vector<1x8xf32> to vector<8x8xf32>
    %186 = arith.addf %184, %185 : vector<8x8xf32>
    %cst_49 = arith.constant dense<0xFF800000> : vector<8xf32>
    %187 = vector.multi_reduction <maximumf>, %186, %cst_49 [1] : vector<8x8xf32> to vector<8xf32>
    %188 = vector.shape_cast %187 : vector<8xf32> to vector<8x1xf32>
    %189 = vector.broadcast %188 : vector<8x1xf32> to vector<8x8xf32>
    %190 = arith.subf %186, %189 : vector<8x8xf32>
    %191 = math.exp %190 : vector<8x8xf32>
    %cst_50 = arith.constant dense<0.000000e+00> : vector<8xf32>
    %192 = vector.multi_reduction <add>, %191, %cst_50 [1] : vector<8x8xf32> to vector<8xf32>
    %193 = vector.shape_cast %192 : vector<8xf32> to vector<8x1xf32>
    %194 = tpu.reciprocal %193 {approx = true} : vector<8x1xf32> -> vector<8x1xf32>
    %195 = vector.broadcast %194 : vector<8x1xf32> to vector<8x8xf32>
    %196 = arith.mulf %191, %195 : vector<8x8xf32>
    %197 = arith.truncf %196 : vector<8x8xf32> to vector<8x8xbf16>
    %cst_51 = arith.constant dense<0.000000e+00> : vector<8x8xf32>
    %198 = tpu.matmul %197, %124, %cst_51 {dimension_numbers = #tpu.dot_dimension_numbers<[1], [0], [0], [1], [0, 0, 1, 1], [], []>} : vector<8x8xbf16>, vector<8x8xbf16>, vector<8x8xf32> -> vector<8x8xf32>
    %c0_52 = arith.constant 0 : index
    %c8 = arith.constant 8 : index
    %199 = vector.load %arg13[%c0_52, %c8] : memref<8x32xf32, #tpu.memory_space<vmem>>, vector<8x8xf32>
    tpu.vector_store %arg13[%c0_52, %c8], %198 {strides = array<i32>} : memref<8x32xf32, #tpu.memory_space<vmem>>, vector<8x8xf32>,
    %200 = vector.extract_strided_slice %1 {offsets = [0, 16], sizes = [8, 8], strides = [1, 1]} : vector<8x32xbf16> to vector<8x8xbf16>
    %201 = vector.extract_strided_slice %3 {offsets = [0, 16], sizes = [8, 8], strides = [1, 1]} : vector<8x32xbf16> to vector<8x8xbf16>
    %202 = vector.extract_strided_slice %5 {offsets = [0, 16], sizes = [8, 8], strides = [1, 1]} : vector<8x32xbf16> to vector<8x8xbf16>
    %cst_53 = arith.constant dense<0.000000e+00> : vector<8x8xf32>
    %203 = tpu.matmul %200, %201, %cst_53 {dimension_numbers = #tpu.dot_dimension_numbers<[1], [1], [0], [0], [0, 0, 1, 0], [], []>} : vector<8x8xbf16>, vector<8x8xbf16>, vector<8x8xf32> -> vector<8x8xf32>
    %cst_54 = arith.constant dense<0.000000e+00> : vector<8x9xf32>
    %204 = tpu.matmul %200, %6, %cst_54 {dimension_numbers = #tpu.dot_dimension_numbers<[1], [1], [0], [0], [0, 0, 1, 0], [], []>} : vector<8x8xbf16>, vector<9x8xbf16>, vector<8x9xf32> -> vector<8x9xf32>
    %cst_55 = arith.constant 0.000000e+00 : f32
    %205 = vector.broadcast %cst_55 : f32 to vector<8x8xf32>
    %206 = vector.extract_strided_slice %204 {offsets = [0, 0], sizes = [8, 1], strides = [1, 1]} : vector<8x9xf32> to vector<8x1xf32>
    %cst_56 = arith.constant 0.000000e+00 : f32
    %207 = vector.shape_cast %206 : vector<8x1xf32> to vector<8x1xf32>
    %208 = vector.broadcast %207 : vector<8x1xf32> to vector<8x8xf32>
    %209 = vector.broadcast %cst_56 : f32 to vector<8x8xf32>
    %210 = arith.select %20, %208, %209 : vector<8x8xi1>, vector<8x8xf32>
    %211 = arith.addf %205, %210 : vector<8x8xf32>
    %212 = vector.extract_strided_slice %204 {offsets = [0, 1], sizes = [8, 1], strides = [1, 1]} : vector<8x9xf32> to vector<8x1xf32>
    %cst_57 = arith.constant 0.000000e+00 : f32
    %213 = vector.shape_cast %212 : vector<8x1xf32> to vector<8x1xf32>
    %214 = vector.broadcast %213 : vector<8x1xf32> to vector<8x8xf32>
    %215 = vector.broadcast %cst_57 : f32 to vector<8x8xf32>
    %216 = arith.select %22, %214, %215 : vector<8x8xi1>, vector<8x8xf32>
    %217 = arith.addf %211, %216 : vector<8x8xf32>
    %218 = vector.extract_strided_slice %204 {offsets = [0, 2], sizes = [8, 1], strides = [1, 1]} : vector<8x9xf32> to vector<8x1xf32>
    %cst_58 = arith.constant 0.000000e+00 : f32
    %219 = vector.shape_cast %218 : vector<8x1xf32> to vector<8x1xf32>
    %220 = vector.broadcast %219 : vector<8x1xf32> to vector<8x8xf32>
    %221 = vector.broadcast %cst_58 : f32 to vector<8x8xf32>
    %222 = arith.select %24, %220, %221 : vector<8x8xi1>, vector<8x8xf32>
    %223 = arith.addf %217, %222 : vector<8x8xf32>
    %224 = vector.extract_strided_slice %204 {offsets = [0, 3], sizes = [8, 1], strides = [1, 1]} : vector<8x9xf32> to vector<8x1xf32>
    %cst_59 = arith.constant 0.000000e+00 : f32
    %225 = vector.shape_cast %224 : vector<8x1xf32> to vector<8x1xf32>
    %226 = vector.broadcast %225 : vector<8x1xf32> to vector<8x8xf32>
    %227 = vector.broadcast %cst_59 : f32 to vector<8x8xf32>
    %228 = arith.select %26, %226, %227 : vector<8x8xi1>, vector<8x8xf32>
    %229 = arith.addf %223, %228 : vector<8x8xf32>
    %230 = vector.extract_strided_slice %204 {offsets = [0, 4], sizes = [8, 1], strides = [1, 1]} : vector<8x9xf32> to vector<8x1xf32>
    %cst_60 = arith.constant 0.000000e+00 : f32
    %231 = vector.shape_cast %230 : vector<8x1xf32> to vector<8x1xf32>
    %232 = vector.broadcast %231 : vector<8x1xf32> to vector<8x8xf32>
    %233 = vector.broadcast %cst_60 : f32 to vector<8x8xf32>
    %234 = arith.select %28, %232, %233 : vector<8x8xi1>, vector<8x8xf32>
    %235 = arith.addf %229, %234 : vector<8x8xf32>
    %236 = vector.extract_strided_slice %204 {offsets = [0, 5], sizes = [8, 1], strides = [1, 1]} : vector<8x9xf32> to vector<8x1xf32>
    %cst_61 = arith.constant 0.000000e+00 : f32
    %237 = vector.shape_cast %236 : vector<8x1xf32> to vector<8x1xf32>
    %238 = vector.broadcast %237 : vector<8x1xf32> to vector<8x8xf32>
    %239 = vector.broadcast %cst_61 : f32 to vector<8x8xf32>
    %240 = arith.select %30, %238, %239 : vector<8x8xi1>, vector<8x8xf32>
    %241 = arith.addf %235, %240 : vector<8x8xf32>
    %242 = vector.extract_strided_slice %204 {offsets = [0, 6], sizes = [8, 1], strides = [1, 1]} : vector<8x9xf32> to vector<8x1xf32>
    %cst_62 = arith.constant 0.000000e+00 : f32
    %243 = vector.shape_cast %242 : vector<8x1xf32> to vector<8x1xf32>
    %244 = vector.broadcast %243 : vector<8x1xf32> to vector<8x8xf32>
    %245 = vector.broadcast %cst_62 : f32 to vector<8x8xf32>
    %246 = arith.select %32, %244, %245 : vector<8x8xi1>, vector<8x8xf32>
    %247 = arith.addf %241, %246 : vector<8x8xf32>
    %248 = vector.extract_strided_slice %204 {offsets = [0, 7], sizes = [8, 1], strides = [1, 1]} : vector<8x9xf32> to vector<8x1xf32>
    %cst_63 = arith.constant 0.000000e+00 : f32
    %249 = vector.shape_cast %248 : vector<8x1xf32> to vector<8x1xf32>
    %250 = vector.broadcast %249 : vector<8x1xf32> to vector<8x8xf32>
    %251 = vector.broadcast %cst_63 : f32 to vector<8x8xf32>
    %252 = arith.select %34, %250, %251 : vector<8x8xi1>, vector<8x8xf32>
    %253 = arith.addf %247, %252 : vector<8x8xf32>
    %254 = vector.extract_strided_slice %204 {offsets = [0, 8], sizes = [8, 1], strides = [1, 1]} : vector<8x9xf32> to vector<8x1xf32>
    %cst_64 = arith.constant 0.000000e+00 : f32
    %255 = vector.shape_cast %254 : vector<8x1xf32> to vector<8x1xf32>
    %256 = vector.broadcast %255 : vector<8x1xf32> to vector<8x8xf32>
    %257 = vector.broadcast %cst_64 : f32 to vector<8x8xf32>
    %258 = arith.select %36, %256, %257 : vector<8x8xi1>, vector<8x8xf32>
    %259 = arith.addf %253, %258 : vector<8x8xf32>
    %260 = arith.addf %203, %259 : vector<8x8xf32>
    %cst_65 = arith.constant 0.353553385 : f32
    %261 = vector.broadcast %cst_65 : f32 to vector<8x8xf32>
    %262 = arith.mulf %260, %261 : vector<8x8xf32>
    %263 = vector.broadcast %43 : vector<1x8xf32> to vector<8x8xf32>
    %264 = arith.addf %262, %263 : vector<8x8xf32>
    %cst_66 = arith.constant dense<0xFF800000> : vector<8xf32>
    %265 = vector.multi_reduction <maximumf>, %264, %cst_66 [1] : vector<8x8xf32> to vector<8xf32>
    %266 = vector.shape_cast %265 : vector<8xf32> to vector<8x1xf32>
    %267 = vector.broadcast %266 : vector<8x1xf32> to vector<8x8xf32>
    %268 = arith.subf %264, %267 : vector<8x8xf32>
    %269 = math.exp %268 : vector<8x8xf32>
    %cst_67 = arith.constant dense<0.000000e+00> : vector<8xf32>
    %270 = vector.multi_reduction <add>, %269, %cst_67 [1] : vector<8x8xf32> to vector<8xf32>
    %271 = vector.shape_cast %270 : vector<8xf32> to vector<8x1xf32>
    %272 = tpu.reciprocal %271 {approx = true} : vector<8x1xf32> -> vector<8x1xf32>
    %273 = vector.broadcast %272 : vector<8x1xf32> to vector<8x8xf32>
    %274 = arith.mulf %269, %273 : vector<8x8xf32>
    %275 = arith.truncf %274 : vector<8x8xf32> to vector<8x8xbf16>
    %cst_68 = arith.constant dense<0.000000e+00> : vector<8x8xf32>
    %276 = tpu.matmul %275, %202, %cst_68 {dimension_numbers = #tpu.dot_dimension_numbers<[1], [0], [0], [1], [0, 0, 1, 1], [], []>} : vector<8x8xbf16>, vector<8x8xbf16>, vector<8x8xf32> -> vector<8x8xf32>
    %c0_69 = arith.constant 0 : index
    %c16 = arith.constant 16 : index
    %277 = vector.load %arg13[%c0_69, %c16] : memref<8x32xf32, #tpu.memory_space<vmem>>, vector<8x8xf32>
    tpu.vector_store %arg13[%c0_69, %c16], %276 {strides = array<i32>} : memref<8x32xf32, #tpu.memory_space<vmem>>, vector<8x8xf32>,
    %278 = vector.extract_strided_slice %1 {offsets = [0, 24], sizes = [8, 8], strides = [1, 1]} : vector<8x32xbf16> to vector<8x8xbf16>
    %279 = vector.extract_strided_slice %3 {offsets = [0, 24], sizes = [8, 8], strides = [1, 1]} : vector<8x32xbf16> to vector<8x8xbf16>
    %280 = vector.extract_strided_slice %5 {offsets = [0, 24], sizes = [8, 8], strides = [1, 1]} : vector<8x32xbf16> to vector<8x8xbf16>
    %cst_70 = arith.constant dense<0.000000e+00> : vector<8x8xf32>
    %281 = tpu.matmul %278, %279, %cst_70 {dimension_numbers = #tpu.dot_dimension_numbers<[1], [1], [0], [0], [0, 0, 1, 0], [], []>} : vector<8x8xbf16>, vector<8x8xbf16>, vector<8x8xf32> -> vector<8x8xf32>
    %cst_71 = arith.constant dense<0.000000e+00> : vector<8x9xf32>
    %282 = tpu.matmul %278, %6, %cst_71 {dimension_numbers = #tpu.dot_dimension_numbers<[1], [1], [0], [0], [0, 0, 1, 0], [], []>} : vector<8x8xbf16>, vector<9x8xbf16>, vector<8x9xf32> -> vector<8x9xf32>
    %cst_72 = arith.constant 0.000000e+00 : f32
    %283 = vector.broadcast %cst_72 : f32 to vector<8x8xf32>
    %284 = vector.extract_strided_slice %282 {offsets = [0, 0], sizes = [8, 1], strides = [1, 1]} : vector<8x9xf32> to vector<8x1xf32>
    %cst_73 = arith.constant 0.000000e+00 : f32
    %285 = vector.shape_cast %284 : vector<8x1xf32> to vector<8x1xf32>
    %286 = vector.broadcast %285 : vector<8x1xf32> to vector<8x8xf32>
    %287 = vector.broadcast %cst_73 : f32 to vector<8x8xf32>
    %288 = arith.select %20, %286, %287 : vector<8x8xi1>, vector<8x8xf32>
    %289 = arith.addf %283, %288 : vector<8x8xf32>
    %290 = vector.extract_strided_slice %282 {offsets = [0, 1], sizes = [8, 1], strides = [1, 1]} : vector<8x9xf32> to vector<8x1xf32>
    %cst_74 = arith.constant 0.000000e+00 : f32
    %291 = vector.shape_cast %290 : vector<8x1xf32> to vector<8x1xf32>
    %292 = vector.broadcast %291 : vector<8x1xf32> to vector<8x8xf32>
    %293 = vector.broadcast %cst_74 : f32 to vector<8x8xf32>
    %294 = arith.select %22, %292, %293 : vector<8x8xi1>, vector<8x8xf32>
    %295 = arith.addf %289, %294 : vector<8x8xf32>
    %296 = vector.extract_strided_slice %282 {offsets = [0, 2], sizes = [8, 1], strides = [1, 1]} : vector<8x9xf32> to vector<8x1xf32>
    %cst_75 = arith.constant 0.000000e+00 : f32
    %297 = vector.shape_cast %296 : vector<8x1xf32> to vector<8x1xf32>
    %298 = vector.broadcast %297 : vector<8x1xf32> to vector<8x8xf32>
    %299 = vector.broadcast %cst_75 : f32 to vector<8x8xf32>
    %300 = arith.select %24, %298, %299 : vector<8x8xi1>, vector<8x8xf32>
    %301 = arith.addf %295, %300 : vector<8x8xf32>
    %302 = vector.extract_strided_slice %282 {offsets = [0, 3], sizes = [8, 1], strides = [1, 1]} : vector<8x9xf32> to vector<8x1xf32>
    %cst_76 = arith.constant 0.000000e+00 : f32
    %303 = vector.shape_cast %302 : vector<8x1xf32> to vector<8x1xf32>
    %304 = vector.broadcast %303 : vector<8x1xf32> to vector<8x8xf32>
    %305 = vector.broadcast %cst_76 : f32 to vector<8x8xf32>
    %306 = arith.select %26, %304, %305 : vector<8x8xi1>, vector<8x8xf32>
    %307 = arith.addf %301, %306 : vector<8x8xf32>
    %308 = vector.extract_strided_slice %282 {offsets = [0, 4], sizes = [8, 1], strides = [1, 1]} : vector<8x9xf32> to vector<8x1xf32>
    %cst_77 = arith.constant 0.000000e+00 : f32
    %309 = vector.shape_cast %308 : vector<8x1xf32> to vector<8x1xf32>
    %310 = vector.broadcast %309 : vector<8x1xf32> to vector<8x8xf32>
    %311 = vector.broadcast %cst_77 : f32 to vector<8x8xf32>
    %312 = arith.select %28, %310, %311 : vector<8x8xi1>, vector<8x8xf32>
    %313 = arith.addf %307, %312 : vector<8x8xf32>
    %314 = vector.extract_strided_slice %282 {offsets = [0, 5], sizes = [8, 1], strides = [1, 1]} : vector<8x9xf32> to vector<8x1xf32>
    %cst_78 = arith.constant 0.000000e+00 : f32
    %315 = vector.shape_cast %314 : vector<8x1xf32> to vector<8x1xf32>
    %316 = vector.broadcast %315 : vector<8x1xf32> to vector<8x8xf32>
    %317 = vector.broadcast %cst_78 : f32 to vector<8x8xf32>
    %318 = arith.select %30, %316, %317 : vector<8x8xi1>, vector<8x8xf32>
    %319 = arith.addf %313, %318 : vector<8x8xf32>
    %320 = vector.extract_strided_slice %282 {offsets = [0, 6], sizes = [8, 1], strides = [1, 1]} : vector<8x9xf32> to vector<8x1xf32>
    %cst_79 = arith.constant 0.000000e+00 : f32
    %321 = vector.shape_cast %320 : vector<8x1xf32> to vector<8x1xf32>
    %322 = vector.broadcast %321 : vector<8x1xf32> to vector<8x8xf32>
    %323 = vector.broadcast %cst_79 : f32 to vector<8x8xf32>
    %324 = arith.select %32, %322, %323 : vector<8x8xi1>, vector<8x8xf32>
    %325 = arith.addf %319, %324 : vector<8x8xf32>
    %326 = vector.extract_strided_slice %282 {offsets = [0, 7], sizes = [8, 1], strides = [1, 1]} : vector<8x9xf32> to vector<8x1xf32>
    %cst_80 = arith.constant 0.000000e+00 : f32
    %327 = vector.shape_cast %326 : vector<8x1xf32> to vector<8x1xf32>
    %328 = vector.broadcast %327 : vector<8x1xf32> to vector<8x8xf32>
    %329 = vector.broadcast %cst_80 : f32 to vector<8x8xf32>
    %330 = arith.select %34, %328, %329 : vector<8x8xi1>, vector<8x8xf32>
    %331 = arith.addf %325, %330 : vector<8x8xf32>
    %332 = vector.extract_strided_slice %282 {offsets = [0, 8], sizes = [8, 1], strides = [1, 1]} : vector<8x9xf32> to vector<8x1xf32>
    %cst_81 = arith.constant 0.000000e+00 : f32
    %333 = vector.shape_cast %332 : vector<8x1xf32> to vector<8x1xf32>
    %334 = vector.broadcast %333 : vector<8x1xf32> to vector<8x8xf32>
    %335 = vector.broadcast %cst_81 : f32 to vector<8x8xf32>
    %336 = arith.select %36, %334, %335 : vector<8x8xi1>, vector<8x8xf32>
    %337 = arith.addf %331, %336 : vector<8x8xf32>
    %338 = arith.addf %281, %337 : vector<8x8xf32>
    %cst_82 = arith.constant 0.353553385 : f32
    %339 = vector.broadcast %cst_82 : f32 to vector<8x8xf32>
    %340 = arith.mulf %338, %339 : vector<8x8xf32>
    %341 = vector.broadcast %43 : vector<1x8xf32> to vector<8x8xf32>
    %342 = arith.addf %340, %341 : vector<8x8xf32>
    %cst_83 = arith.constant dense<0xFF800000> : vector<8xf32>
    %343 = vector.multi_reduction <maximumf>, %342, %cst_83 [1] : vector<8x8xf32> to vector<8xf32>
    %344 = vector.shape_cast %343 : vector<8xf32> to vector<8x1xf32>
    %345 = vector.broadcast %344 : vector<8x1xf32> to vector<8x8xf32>
    %346 = arith.subf %342, %345 : vector<8x8xf32>
    %347 = math.exp %346 : vector<8x8xf32>
    %cst_84 = arith.constant dense<0.000000e+00> : vector<8xf32>
    %348 = vector.multi_reduction <add>, %347, %cst_84 [1] : vector<8x8xf32> to vector<8xf32>
    %349 = vector.shape_cast %348 : vector<8xf32> to vector<8x1xf32>
    %350 = tpu.reciprocal %349 {approx = true} : vector<8x1xf32> -> vector<8x1xf32>
    %351 = vector.broadcast %350 : vector<8x1xf32> to vector<8x8xf32>
    %352 = arith.mulf %347, %351 : vector<8x8xf32>
    %353 = arith.truncf %352 : vector<8x8xf32> to vector<8x8xbf16>
    %cst_85 = arith.constant dense<0.000000e+00> : vector<8x8xf32>
    %354 = tpu.matmul %353, %280, %cst_85 {dimension_numbers = #tpu.dot_dimension_numbers<[1], [0], [0], [1], [0, 0, 1, 1], [], []>} : vector<8x8xbf16>, vector<8x8xbf16>, vector<8x8xf32> -> vector<8x8xf32>
    %c0_86 = arith.constant 0 : index
    %c24 = arith.constant 24 : index
    %355 = vector.load %arg13[%c0_86, %c24] : memref<8x32xf32, #tpu.memory_space<vmem>>, vector<8x8xf32>
    tpu.vector_store %arg13[%c0_86, %c24], %354 {strides = array<i32>} : memref<8x32xf32, #tpu.memory_space<vmem>>, vector<8x8xf32>,
    %c0_87 = arith.constant 0 : index
    %c0_88 = arith.constant 0 : index
    %356 = vector.load %arg13[%c0_87, %c0_88] : memref<8x32xf32, #tpu.memory_space<vmem>>, vector<8x32xf32>
    %357 = arith.truncf %356 : vector<8x32xf32> to vector<8x32xbf16>
    %c0_89 = arith.constant 0 : index
    %c0_90 = arith.constant 0 : index
    %358 = vector.load %arg8[%c0_89, %c0_90] : memref<32x32xbf16, #tpu.memory_space<vmem>>, vector<32x32xbf16>
    %cst_91 = arith.constant dense<0.000000e+00> : vector<8x32xf32>
    %359 = tpu.matmul %357, %358, %cst_91 {dimension_numbers = #tpu.dot_dimension_numbers<[1], [0], [0], [1], [0, 0, 1, 1], [], []>} : vector<8x32xbf16>, vector<32x32xbf16>, vector<8x32xf32> -> vector<8x32xf32>
    %c0_92 = arith.constant 0 : index
    %c0_93 = arith.constant 0 : index
    %360 = vector.load %arg9[%c0_92, %c0_93] : memref<1x32xf32, #tpu.memory_space<vmem>>, vector<1x32xf32>
    %361 = vector.broadcast %360 : vector<1x32xf32> to vector<8x32xf32>
    %362 = arith.addf %359, %361 : vector<8x32xf32>
    %c0_94 = arith.constant 0 : index
    %c0_95 = arith.constant 0 : index
    %c0_96 = arith.constant 0 : index
    %363 = vector.load %arg5[%c0_94, %c0_95, %c0_96] : memref<1x8x32xf32, #tpu.memory_space<vmem>>, vector<1x8x32xf32>
    %364 = vector.shape_cast %363 : vector<1x8x32xf32> to vector<8x32xf32>
    %365 = arith.addf %362, %364 : vector<8x32xf32>
    %c0_97 = arith.constant 0 : index
    %c0_98 = arith.constant 0 : index
    %366 = vector.load %arg10[%c0_97, %c0_98] : memref<1x32xf32, #tpu.memory_space<vmem>>, vector<1x32xf32>
    %c0_99 = arith.constant 0 : index
    %c0_100 = arith.constant 0 : index
    %367 = vector.load %arg11[%c0_99, %c0_100] : memref<1x32xf32, #tpu.memory_space<vmem>>, vector<1x32xf32>
    %cst_101 = arith.constant dense<0.000000e+00> : vector<8xf32>
    %368 = vector.multi_reduction <add>, %365, %cst_101 [1] : vector<8x32xf32> to vector<8xf32>
    %369 = vector.shape_cast %368 : vector<8xf32> to vector<8x1xf32>
    %cst_102 = arith.constant 3.200000e+01 : f32
    %370 = vector.broadcast %cst_102 : f32 to vector<8x1xf32>
    %371 = arith.divf %369, %370 : vector<8x1xf32>
    %372 = vector.broadcast %371 : vector<8x1xf32> to vector<8x32xf32>
    %373 = arith.subf %365, %372 : vector<8x32xf32>
    %374 = arith.mulf %373, %373 : vector<8x32xf32>
    %cst_103 = arith.constant dense<0.000000e+00> : vector<8xf32>
    %375 = vector.multi_reduction <add>, %374, %cst_103 [1] : vector<8x32xf32> to vector<8xf32>
    %376 = vector.shape_cast %375 : vector<8xf32> to vector<8x1xf32>
    %cst_104 = arith.constant 3.200000e+01 : f32
    %377 = vector.broadcast %cst_104 : f32 to vector<8x1xf32>
    %378 = arith.divf %376, %377 : vector<8x1xf32>
    %379 = vector.broadcast %371 : vector<8x1xf32> to vector<8x32xf32>
    %380 = arith.subf %365, %379 : vector<8x32xf32>
    %cst_105 = arith.constant 9.99999974E-6 : f32
    %381 = vector.broadcast %cst_105 : f32 to vector<8x1xf32>
    %382 = arith.addf %378, %381 : vector<8x1xf32>
    %383 = math.rsqrt %382 : vector<8x1xf32>
    %384 = vector.broadcast %383 : vector<8x1xf32> to vector<8x32xf32>
    %385 = arith.mulf %380, %384 : vector<8x32xf32>
    %386 = vector.broadcast %366 : vector<1x32xf32> to vector<8x32xf32>
    %387 = arith.mulf %385, %386 : vector<8x32xf32>
    %388 = vector.broadcast %367 : vector<1x32xf32> to vector<8x32xf32>
    %389 = arith.addf %387, %388 : vector<8x32xf32>
    %c0_106 = arith.constant 0 : index
    %c0_107 = arith.constant 0 : index
    %c0_108 = arith.constant 0 : index
    %390 = vector.load %arg12[%c0_106, %c0_107, %c0_108] : memref<1x8x32xf32, #tpu.memory_space<vmem>>, vector<1x8x32xf32>
    %391 = vector.shape_cast %390 : vector<1x8x32xf32> to vector<8x32xf32>
    %392 = vector.shape_cast %389 : vector<8x32xf32> to vector<1x8x32xf32>
    tpu.vector_store %arg12[%c0_106, %c0_107, %c0_108], %392 {strides = array<i32>} : memref<1x8x32xf32, #tpu.memory_space<vmem>>, vector<1x8x32xf32>,
    return
  }
  func.func @transform_0(%arg0: i32, %arg1: i32) -> (i32, i32, i32) {
    %c0_i32 = arith.constant 0 : i32
    %c0_i32_0 = arith.constant 0 : i32
    return %arg0, %arg1, %c0_i32 : i32, i32, i32
  }
  func.func @transform_1(%arg0: i32, %arg1: i32) -> (i32, i32, i32) {
    %c0_i32 = arith.constant 0 : i32
    %c0_i32_0 = arith.constant 0 : i32
    %c0_i32_1 = arith.constant 0 : i32
    return %arg0, %c0_i32, %c0_i32_0 : i32, i32, i32
  }
  func.func @transform_2(%arg0: i32, %arg1: i32) -> (i32, i32, i32) {
    %c0_i32 = arith.constant 0 : i32
    %c0_i32_0 = arith.constant 0 : i32
    %c0_i32_1 = arith.constant 0 : i32
    return %arg0, %c0_i32, %c0_i32_0 : i32, i32, i32
  }
  func.func @transform_3(%arg0: i32, %arg1: i32) -> (i32, i32, i32) {
    %c0_i32 = arith.constant 0 : i32
    %c0_i32_0 = arith.constant 0 : i32
    return %arg0, %arg1, %c0_i32 : i32, i32, i32
  }
  func.func @transform_4(%arg0: i32, %arg1: i32) -> (i32, i32, i32) {
    %c0_i32 = arith.constant 0 : i32
    %c0_i32_0 = arith.constant 0 : i32
    %c0_i32_1 = arith.constant 0 : i32
    return %arg0, %c0_i32, %c0_i32_0 : i32, i32, i32
  }
  func.func @transform_5(%arg0: i32, %arg1: i32) -> (i32, i32) {
    %c0_i32 = arith.constant 0 : i32
    %c0_i32_0 = arith.constant 0 : i32
    %c0_i32_1 = arith.constant 0 : i32
    return %c0_i32, %c0_i32_0 : i32, i32
  }
  func.func @transform_6(%arg0: i32, %arg1: i32) -> (i32, i32) {
    %c0_i32 = arith.constant 0 : i32
    %c0_i32_0 = arith.constant 0 : i32
    %c0_i32_1 = arith.constant 0 : i32
    return %c0_i32, %c0_i32_0 : i32, i32
  }
  func.func @transform_7(%arg0: i32, %arg1: i32) -> (i32, i32) {
    %c0_i32 = arith.constant 0 : i32
    %c0_i32_0 = arith.constant 0 : i32
    %c0_i32_1 = arith.constant 0 : i32
    return %c0_i32, %c0_i32_0 : i32, i32
  }
  func.func @transform_8(%arg0: i32, %arg1: i32) -> (i32, i32) {
    %c0_i32 = arith.constant 0 : i32
    %c0_i32_0 = arith.constant 0 : i32
    %c0_i32_1 = arith.constant 0 : i32
    return %c0_i32, %c0_i32_0 : i32, i32
  }
  func.func @transform_9(%arg0: i32, %arg1: i32) -> (i32, i32) {
    %c0_i32 = arith.constant 0 : i32
    %c0_i32_0 = arith.constant 0 : i32
    %c0_i32_1 = arith.constant 0 : i32
    return %c0_i32, %c0_i32_0 : i32, i32
  }
  func.func @transform_10(%arg0: i32, %arg1: i32) -> (i32, i32, i32) {
    %c0_i32 = arith.constant 0 : i32
    %c0_i32_0 = arith.constant 0 : i32
    return %arg0, %arg1, %c0_i32 : i32, i32, i32
  }
}

module attributes {stable_mosaic.version = 11 : i64} {
  func.func @_ffn_add_ln_kernel(%arg0: i32, %arg1: i32, %arg2: memref<16x32xf32, #tpu.memory_space<vmem>>, %arg3: memref<32x128xbf16, #tpu.memory_space<vmem>>, %arg4: memref<1x128xf32, #tpu.memory_space<vmem>>, %arg5: memref<128x32xbf16, #tpu.memory_space<vmem>>, %arg6: memref<1x32xf32, #tpu.memory_space<vmem>>, %arg7: memref<1x32xf32, #tpu.memory_space<vmem>>, %arg8: memref<1x32xf32, #tpu.memory_space<vmem>>, %arg9: memref<16x32xf32, #tpu.memory_space<vmem>>, %arg10: memref<16x32xf32, #tpu.memory_space<vmem>>) attributes {dimension_semantics = [#tpu.dimension_semantics<parallel>, #tpu.dimension_semantics<arbitrary>], iteration_bounds = array<i64: 1, 1>, scalar_prefetch = 0 : i64, scratch_operands = 1 : i64, tpu.core_type = #tpu.core_type<tc>, window_params = [{transform_indices = @transform_0, window_bounds = array<i64: 16, 32>}, {transform_indices = @transform_1, window_bounds = array<i64: 32, 128>}, {transform_indices = @transform_2, window_bounds = array<i64: 1, 128>}, {transform_indices = @transform_3, window_bounds = array<i64: 128, 32>}, {pipeline_mode = #tpu.pipeline_mode<synchronous>, transform_indices = @transform_4, window_bounds = array<i64: 1, 32>}, {pipeline_mode = #tpu.pipeline_mode<synchronous>, transform_indices = @transform_5, window_bounds = array<i64: 1, 32>}, {pipeline_mode = #tpu.pipeline_mode<synchronous>, transform_indices = @transform_6, window_bounds = array<i64: 1, 32>}, {transform_indices = @transform_7, window_bounds = array<i64: 16, 32>}]} {
    %c0_i32 = arith.constant 0 : i32
    %0 = arith.cmpi eq, %arg1, %c0_i32 : i32
    %1 = arith.extui %0 : i1 to i32
    %c0_i32_0 = arith.constant 0 : i32
    %2 = arith.cmpi ne, %1, %c0_i32_0 : i32
    scf.if %2 {
      %cst_16 = arith.constant 0.000000e+00 : f32
      %21 = vector.broadcast %cst_16 : f32 to vector<16x32xf32>
      %c0_17 = arith.constant 0 : index
      %c0_18 = arith.constant 0 : index
      %22 = vector.load %arg10[%c0_17, %c0_18] : memref<16x32xf32, #tpu.memory_space<vmem>>, vector<16x32xf32>
      tpu.vector_store %arg10[%c0_17, %c0_18], %21 {strides = array<i32>} : memref<16x32xf32, #tpu.memory_space<vmem>>, vector<16x32xf32>,
    } else {
    }
    %c0 = arith.constant 0 : index
    %c0_1 = arith.constant 0 : index
    %3 = vector.load %arg2[%c0, %c0_1] : memref<16x32xf32, #tpu.memory_space<vmem>>, vector<16x32xf32>
    %4 = arith.truncf %3 : vector<16x32xf32> to vector<16x32xbf16>
    %c0_2 = arith.constant 0 : index
    %c0_3 = arith.constant 0 : index
    %5 = vector.load %arg3[%c0_2, %c0_3] : memref<32x128xbf16, #tpu.memory_space<vmem>>, vector<32x128xbf16>
    %cst = arith.constant dense<0.000000e+00> : vector<16x128xf32>
    %6 = tpu.matmul %4, %5, %cst {dimension_numbers = #tpu.dot_dimension_numbers<[1], [0], [0], [1], [0, 0, 1, 1], [], []>} : vector<16x32xbf16>, vector<32x128xbf16>, vector<16x128xf32> -> vector<16x128xf32>
    %c0_4 = arith.constant 0 : index
    %c0_5 = arith.constant 0 : index
    %7 = vector.load %arg4[%c0_4, %c0_5] : memref<1x128xf32, #tpu.memory_space<vmem>>, vector<1x128xf32>
    %8 = vector.broadcast %7 : vector<1x128xf32> to vector<16x128xf32>
    %9 = arith.addf %6, %8 : vector<16x128xf32>
    %cst_6 = arith.constant 0.000000e+00 : f32
    %10 = vector.broadcast %cst_6 : f32 to vector<16x128xf32>
    %11 = arith.maximumf %9, %10 : vector<16x128xf32>
    %c0_7 = arith.constant 0 : index
    %c0_8 = arith.constant 0 : index
    %12 = vector.load %arg10[%c0_7, %c0_8] : memref<16x32xf32, #tpu.memory_space<vmem>>, vector<16x32xf32>
    %13 = arith.truncf %11 : vector<16x128xf32> to vector<16x128xbf16>
    %c0_9 = arith.constant 0 : index
    %c0_10 = arith.constant 0 : index
    %14 = vector.load %arg5[%c0_9, %c0_10] : memref<128x32xbf16, #tpu.memory_space<vmem>>, vector<128x32xbf16>
    %cst_11 = arith.constant dense<0.000000e+00> : vector<16x32xf32>
    %15 = tpu.matmul %13, %14, %cst_11 {dimension_numbers = #tpu.dot_dimension_numbers<[1], [0], [0], [1], [0, 0, 1, 1], [], []>} : vector<16x128xbf16>, vector<128x32xbf16>, vector<16x32xf32> -> vector<16x32xf32>
    %16 = arith.addf %12, %15 : vector<16x32xf32>
    %c0_12 = arith.constant 0 : index
    %c0_13 = arith.constant 0 : index
    %17 = vector.load %arg10[%c0_12, %c0_13] : memref<16x32xf32, #tpu.memory_space<vmem>>, vector<16x32xf32>
    tpu.vector_store %arg10[%c0_12, %c0_13], %16 {strides = array<i32>} : memref<16x32xf32, #tpu.memory_space<vmem>>, vector<16x32xf32>,
    %c0_i32_14 = arith.constant 0 : i32
    %18 = arith.cmpi eq, %arg1, %c0_i32_14 : i32
    %19 = arith.extui %18 : i1 to i32
    %c0_i32_15 = arith.constant 0 : i32
    %20 = arith.cmpi ne, %19, %c0_i32_15 : i32
    scf.if %20 {
      %c0_16 = arith.constant 0 : index
      %c0_17 = arith.constant 0 : index
      %21 = vector.load %arg10[%c0_16, %c0_17] : memref<16x32xf32, #tpu.memory_space<vmem>>, vector<16x32xf32>
      %c0_18 = arith.constant 0 : index
      %c0_19 = arith.constant 0 : index
      %22 = vector.load %arg6[%c0_18, %c0_19] : memref<1x32xf32, #tpu.memory_space<vmem>>, vector<1x32xf32>
      %23 = vector.broadcast %22 : vector<1x32xf32> to vector<16x32xf32>
      %24 = arith.addf %21, %23 : vector<16x32xf32>
      %25 = arith.addf %24, %3 : vector<16x32xf32>
      %c0_20 = arith.constant 0 : index
      %c0_21 = arith.constant 0 : index
      %26 = vector.load %arg7[%c0_20, %c0_21] : memref<1x32xf32, #tpu.memory_space<vmem>>, vector<1x32xf32>
      %c0_22 = arith.constant 0 : index
      %c0_23 = arith.constant 0 : index
      %27 = vector.load %arg8[%c0_22, %c0_23] : memref<1x32xf32, #tpu.memory_space<vmem>>, vector<1x32xf32>
      %cst_24 = arith.constant dense<0.000000e+00> : vector<16xf32>
      %28 = vector.multi_reduction <add>, %25, %cst_24 [1] : vector<16x32xf32> to vector<16xf32>
      %29 = vector.shape_cast %28 : vector<16xf32> to vector<16x1xf32>
      %cst_25 = arith.constant 3.200000e+01 : f32
      %30 = vector.broadcast %cst_25 : f32 to vector<16x1xf32>
      %31 = arith.divf %29, %30 : vector<16x1xf32>
      %32 = vector.broadcast %31 : vector<16x1xf32> to vector<16x32xf32>
      %33 = arith.subf %25, %32 : vector<16x32xf32>
      %34 = arith.mulf %33, %33 : vector<16x32xf32>
      %cst_26 = arith.constant dense<0.000000e+00> : vector<16xf32>
      %35 = vector.multi_reduction <add>, %34, %cst_26 [1] : vector<16x32xf32> to vector<16xf32>
      %36 = vector.shape_cast %35 : vector<16xf32> to vector<16x1xf32>
      %cst_27 = arith.constant 3.200000e+01 : f32
      %37 = vector.broadcast %cst_27 : f32 to vector<16x1xf32>
      %38 = arith.divf %36, %37 : vector<16x1xf32>
      %39 = vector.broadcast %31 : vector<16x1xf32> to vector<16x32xf32>
      %40 = arith.subf %25, %39 : vector<16x32xf32>
      %cst_28 = arith.constant 9.99999974E-6 : f32
      %41 = vector.broadcast %cst_28 : f32 to vector<16x1xf32>
      %42 = arith.addf %38, %41 : vector<16x1xf32>
      %43 = math.rsqrt %42 : vector<16x1xf32>
      %44 = vector.broadcast %43 : vector<16x1xf32> to vector<16x32xf32>
      %45 = arith.mulf %40, %44 : vector<16x32xf32>
      %46 = vector.broadcast %26 : vector<1x32xf32> to vector<16x32xf32>
      %47 = arith.mulf %45, %46 : vector<16x32xf32>
      %48 = vector.broadcast %27 : vector<1x32xf32> to vector<16x32xf32>
      %49 = arith.addf %47, %48 : vector<16x32xf32>
      %c0_29 = arith.constant 0 : index
      %c0_30 = arith.constant 0 : index
      %50 = vector.load %arg9[%c0_29, %c0_30] : memref<16x32xf32, #tpu.memory_space<vmem>>, vector<16x32xf32>
      tpu.vector_store %arg9[%c0_29, %c0_30], %49 {strides = array<i32>} : memref<16x32xf32, #tpu.memory_space<vmem>>, vector<16x32xf32>,
    } else {
    }
    return
  }
  func.func @transform_0(%arg0: i32, %arg1: i32) -> (i32, i32) {
    %c0_i32 = arith.constant 0 : i32
    %c0_i32_0 = arith.constant 0 : i32
    return %arg0, %c0_i32 : i32, i32
  }
  func.func @transform_1(%arg0: i32, %arg1: i32) -> (i32, i32) {
    %c0_i32 = arith.constant 0 : i32
    %c0_i32_0 = arith.constant 0 : i32
    return %c0_i32, %arg1 : i32, i32
  }
  func.func @transform_2(%arg0: i32, %arg1: i32) -> (i32, i32) {
    %c0_i32 = arith.constant 0 : i32
    %c0_i32_0 = arith.constant 0 : i32
    return %c0_i32, %arg1 : i32, i32
  }
  func.func @transform_3(%arg0: i32, %arg1: i32) -> (i32, i32) {
    %c0_i32 = arith.constant 0 : i32
    %c0_i32_0 = arith.constant 0 : i32
    return %arg1, %c0_i32 : i32, i32
  }
  func.func @transform_4(%arg0: i32, %arg1: i32) -> (i32, i32) {
    %c0_i32 = arith.constant 0 : i32
    %c0_i32_0 = arith.constant 0 : i32
    %c0_i32_1 = arith.constant 0 : i32
    return %c0_i32, %c0_i32_0 : i32, i32
  }
  func.func @transform_5(%arg0: i32, %arg1: i32) -> (i32, i32) {
    %c0_i32 = arith.constant 0 : i32
    %c0_i32_0 = arith.constant 0 : i32
    %c0_i32_1 = arith.constant 0 : i32
    return %c0_i32, %c0_i32_0 : i32, i32
  }
  func.func @transform_6(%arg0: i32, %arg1: i32) -> (i32, i32) {
    %c0_i32 = arith.constant 0 : i32
    %c0_i32_0 = arith.constant 0 : i32
    %c0_i32_1 = arith.constant 0 : i32
    return %c0_i32, %c0_i32_0 : i32, i32
  }
  func.func @transform_7(%arg0: i32, %arg1: i32) -> (i32, i32) {
    %c0_i32 = arith.constant 0 : i32
    %c0_i32_0 = arith.constant 0 : i32
    return %arg0, %c0_i32 : i32, i32
  }
}

module attributes {stable_mosaic.version = 11 : i64} {
  func.func @_ffn_add_ln_kernel(%arg0: i32, %arg1: i32, %arg2: memref<16x32xf32, #tpu.memory_space<vmem>>, %arg3: memref<32x128xbf16, #tpu.memory_space<vmem>>, %arg4: memref<1x128xf32, #tpu.memory_space<vmem>>, %arg5: memref<128x32xbf16, #tpu.memory_space<vmem>>, %arg6: memref<1x32xf32, #tpu.memory_space<vmem>>, %arg7: memref<1x32xf32, #tpu.memory_space<vmem>>, %arg8: memref<1x32xf32, #tpu.memory_space<vmem>>, %arg9: memref<16x32xf32, #tpu.memory_space<vmem>>, %arg10: memref<16x32xf32, #tpu.memory_space<vmem>>) attributes {dimension_semantics = [#tpu.dimension_semantics<parallel>, #tpu.dimension_semantics<arbitrary>], iteration_bounds = array<i64: 1, 1>, scalar_prefetch = 0 : i64, scratch_operands = 1 : i64, tpu.core_type = #tpu.core_type<tc>, window_params = [{transform_indices = @transform_0, window_bounds = array<i64: 16, 32>}, {transform_indices = @transform_1, window_bounds = array<i64: 32, 128>}, {transform_indices = @transform_2, window_bounds = array<i64: 1, 128>}, {transform_indices = @transform_3, window_bounds = array<i64: 128, 32>}, {pipeline_mode = #tpu.pipeline_mode<synchronous>, transform_indices = @transform_4, window_bounds = array<i64: 1, 32>}, {pipeline_mode = #tpu.pipeline_mode<synchronous>, transform_indices = @transform_5, window_bounds = array<i64: 1, 32>}, {pipeline_mode = #tpu.pipeline_mode<synchronous>, transform_indices = @transform_6, window_bounds = array<i64: 1, 32>}, {transform_indices = @transform_7, window_bounds = array<i64: 16, 32>}]} {
    %c0_i32 = arith.constant 0 : i32
    %0 = arith.cmpi eq, %arg1, %c0_i32 : i32
    %1 = arith.extui %0 : i1 to i32
    %c0_i32_0 = arith.constant 0 : i32
    %2 = arith.cmpi ne, %1, %c0_i32_0 : i32
    scf.if %2 {
      %cst_16 = arith.constant 0.000000e+00 : f32
      %21 = vector.broadcast %cst_16 : f32 to vector<16x32xf32>
      %c0_17 = arith.constant 0 : index
      %c0_18 = arith.constant 0 : index
      %22 = vector.load %arg10[%c0_17, %c0_18] : memref<16x32xf32, #tpu.memory_space<vmem>>, vector<16x32xf32>
      tpu.vector_store %arg10[%c0_17, %c0_18], %21 {strides = array<i32>} : memref<16x32xf32, #tpu.memory_space<vmem>>, vector<16x32xf32>,
    } else {
    }
    %c0 = arith.constant 0 : index
    %c0_1 = arith.constant 0 : index
    %3 = vector.load %arg2[%c0, %c0_1] : memref<16x32xf32, #tpu.memory_space<vmem>>, vector<16x32xf32>
    %4 = arith.truncf %3 : vector<16x32xf32> to vector<16x32xbf16>
    %c0_2 = arith.constant 0 : index
    %c0_3 = arith.constant 0 : index
    %5 = vector.load %arg3[%c0_2, %c0_3] : memref<32x128xbf16, #tpu.memory_space<vmem>>, vector<32x128xbf16>
    %cst = arith.constant dense<0.000000e+00> : vector<16x128xf32>
    %6 = tpu.matmul %4, %5, %cst {dimension_numbers = #tpu.dot_dimension_numbers<[1], [0], [0], [1], [0, 0, 1, 1], [], []>} : vector<16x32xbf16>, vector<32x128xbf16>, vector<16x128xf32> -> vector<16x128xf32>
    %c0_4 = arith.constant 0 : index
    %c0_5 = arith.constant 0 : index
    %7 = vector.load %arg4[%c0_4, %c0_5] : memref<1x128xf32, #tpu.memory_space<vmem>>, vector<1x128xf32>
    %8 = vector.broadcast %7 : vector<1x128xf32> to vector<16x128xf32>
    %9 = arith.addf %6, %8 : vector<16x128xf32>
    %cst_6 = arith.constant 0.000000e+00 : f32
    %10 = vector.broadcast %cst_6 : f32 to vector<16x128xf32>
    %11 = arith.maximumf %9, %10 : vector<16x128xf32>
    %c0_7 = arith.constant 0 : index
    %c0_8 = arith.constant 0 : index
    %12 = vector.load %arg10[%c0_7, %c0_8] : memref<16x32xf32, #tpu.memory_space<vmem>>, vector<16x32xf32>
    %13 = arith.truncf %11 : vector<16x128xf32> to vector<16x128xbf16>
    %c0_9 = arith.constant 0 : index
    %c0_10 = arith.constant 0 : index
    %14 = vector.load %arg5[%c0_9, %c0_10] : memref<128x32xbf16, #tpu.memory_space<vmem>>, vector<128x32xbf16>
    %cst_11 = arith.constant dense<0.000000e+00> : vector<16x32xf32>
    %15 = tpu.matmul %13, %14, %cst_11 {dimension_numbers = #tpu.dot_dimension_numbers<[1], [0], [0], [1], [0, 0, 1, 1], [], []>} : vector<16x128xbf16>, vector<128x32xbf16>, vector<16x32xf32> -> vector<16x32xf32>
    %16 = arith.addf %12, %15 : vector<16x32xf32>
    %c0_12 = arith.constant 0 : index
    %c0_13 = arith.constant 0 : index
    %17 = vector.load %arg10[%c0_12, %c0_13] : memref<16x32xf32, #tpu.memory_space<vmem>>, vector<16x32xf32>
    tpu.vector_store %arg10[%c0_12, %c0_13], %16 {strides = array<i32>} : memref<16x32xf32, #tpu.memory_space<vmem>>, vector<16x32xf32>,
    %c0_i32_14 = arith.constant 0 : i32
    %18 = arith.cmpi eq, %arg1, %c0_i32_14 : i32
    %19 = arith.extui %18 : i1 to i32
    %c0_i32_15 = arith.constant 0 : i32
    %20 = arith.cmpi ne, %19, %c0_i32_15 : i32
    scf.if %20 {
      %c0_16 = arith.constant 0 : index
      %c0_17 = arith.constant 0 : index
      %21 = vector.load %arg10[%c0_16, %c0_17] : memref<16x32xf32, #tpu.memory_space<vmem>>, vector<16x32xf32>
      %c0_18 = arith.constant 0 : index
      %c0_19 = arith.constant 0 : index
      %22 = vector.load %arg6[%c0_18, %c0_19] : memref<1x32xf32, #tpu.memory_space<vmem>>, vector<1x32xf32>
      %23 = vector.broadcast %22 : vector<1x32xf32> to vector<16x32xf32>
      %24 = arith.addf %21, %23 : vector<16x32xf32>
      %25 = arith.addf %24, %3 : vector<16x32xf32>
      %c0_20 = arith.constant 0 : index
      %c0_21 = arith.constant 0 : index
      %26 = vector.load %arg7[%c0_20, %c0_21] : memref<1x32xf32, #tpu.memory_space<vmem>>, vector<1x32xf32>
      %c0_22 = arith.constant 0 : index
      %c0_23 = arith.constant 0 : index
      %27 = vector.load %arg8[%c0_22, %c0_23] : memref<1x32xf32, #tpu.memory_space<vmem>>, vector<1x32xf32>
      %cst_24 = arith.constant dense<0.000000e+00> : vector<16xf32>
      %28 = vector.multi_reduction <add>, %25, %cst_24 [1] : vector<16x32xf32> to vector<16xf32>
      %29 = vector.shape_cast %28 : vector<16xf32> to vector<16x1xf32>
      %cst_25 = arith.constant 3.200000e+01 : f32
      %30 = vector.broadcast %cst_25 : f32 to vector<16x1xf32>
      %31 = arith.divf %29, %30 : vector<16x1xf32>
      %32 = vector.broadcast %31 : vector<16x1xf32> to vector<16x32xf32>
      %33 = arith.subf %25, %32 : vector<16x32xf32>
      %34 = arith.mulf %33, %33 : vector<16x32xf32>
      %cst_26 = arith.constant dense<0.000000e+00> : vector<16xf32>
      %35 = vector.multi_reduction <add>, %34, %cst_26 [1] : vector<16x32xf32> to vector<16xf32>
      %36 = vector.shape_cast %35 : vector<16xf32> to vector<16x1xf32>
      %cst_27 = arith.constant 3.200000e+01 : f32
      %37 = vector.broadcast %cst_27 : f32 to vector<16x1xf32>
      %38 = arith.divf %36, %37 : vector<16x1xf32>
      %39 = vector.broadcast %31 : vector<16x1xf32> to vector<16x32xf32>
      %40 = arith.subf %25, %39 : vector<16x32xf32>
      %cst_28 = arith.constant 9.99999974E-6 : f32
      %41 = vector.broadcast %cst_28 : f32 to vector<16x1xf32>
      %42 = arith.addf %38, %41 : vector<16x1xf32>
      %43 = math.rsqrt %42 : vector<16x1xf32>
      %44 = vector.broadcast %43 : vector<16x1xf32> to vector<16x32xf32>
      %45 = arith.mulf %40, %44 : vector<16x32xf32>
      %46 = vector.broadcast %26 : vector<1x32xf32> to vector<16x32xf32>
      %47 = arith.mulf %45, %46 : vector<16x32xf32>
      %48 = vector.broadcast %27 : vector<1x32xf32> to vector<16x32xf32>
      %49 = arith.addf %47, %48 : vector<16x32xf32>
      %c0_29 = arith.constant 0 : index
      %c0_30 = arith.constant 0 : index
      %50 = vector.load %arg9[%c0_29, %c0_30] : memref<16x32xf32, #tpu.memory_space<vmem>>, vector<16x32xf32>
      tpu.vector_store %arg9[%c0_29, %c0_30], %49 {strides = array<i32>} : memref<16x32xf32, #tpu.memory_space<vmem>>, vector<16x32xf32>,
    } else {
    }
    return
  }
  func.func @transform_0(%arg0: i32, %arg1: i32) -> (i32, i32) {
    %c0_i32 = arith.constant 0 : i32
    %c0_i32_0 = arith.constant 0 : i32
    return %arg0, %c0_i32 : i32, i32
  }
  func.func @transform_1(%arg0: i32, %arg1: i32) -> (i32, i32) {
    %c0_i32 = arith.constant 0 : i32
    %c0_i32_0 = arith.constant 0 : i32
    return %c0_i32, %arg1 : i32, i32
  }
  func.func @transform_2(%arg0: i32, %arg1: i32) -> (i32, i32) {
    %c0_i32 = arith.constant 0 : i32
    %c0_i32_0 = arith.constant 0 : i32
    return %c0_i32, %arg1 : i32, i32
  }
  func.func @transform_3(%arg0: i32, %arg1: i32) -> (i32, i32) {
    %c0_i32 = arith.constant 0 : i32
    %c0_i32_0 = arith.constant 0 : i32
    return %arg1, %c0_i32 : i32, i32
  }
  func.func @transform_4(%arg0: i32, %arg1: i32) -> (i32, i32) {
    %c0_i32 = arith.constant 0 : i32
    %c0_i32_0 = arith.constant 0 : i32
    %c0_i32_1 = arith.constant 0 : i32
    return %c0_i32, %c0_i32_0 : i32, i32
  }
  func.func @transform_5(%arg0: i32, %arg1: i32) -> (i32, i32) {
    %c0_i32 = arith.constant 0 : i32
    %c0_i32_0 = arith.constant 0 : i32
    %c0_i32_1 = arith.constant 0 : i32
    return %c0_i32, %c0_i32_0 : i32, i32
  }
  func.func @transform_6(%arg0: i32, %arg1: i32) -> (i32, i32) {
    %c0_i32 = arith.constant 0 : i32
    %c0_i32_0 = arith.constant 0 : i32
    %c0_i32_1 = arith.constant 0 : i32
    return %c0_i32, %c0_i32_0 : i32, i32
  }
  func.func @transform_7(%arg0: i32, %arg1: i32) -> (i32, i32) {
    %c0_i32 = arith.constant 0 : i32
    %c0_i32_0 = arith.constant 0 : i32
    return %arg0, %c0_i32 : i32, i32
  }
}

</mosaic_0001>

<llo_original>
// kernel: run.6
$region0: #{run.6}
  #allocation0 [shape = 'u32[]', space=smem, size = 0x4, offset = 0x4, fixed_abs, tag = 'smem constant byte address 0x4 - core index']
  #allocation1 [shape = 'u32[144,128]{1,0:T(1,128)}', space=vmem, size = 0x12000, scoped, tag = 'internal scratch']
  %s0 = inlined_call_operand.vmem [shape: f32[16,32], index: 0, kind: input, shape index: {}]
  %s1 = inlined_call_operand.vmem [shape: bf16[32,96], index: 1, kind: input, shape index: {}]
  %s2 = inlined_call_operand.vmem [shape: f32[1,96], index: 2, kind: input, shape index: {}]
  %s3 = inlined_call_operand.vmem [shape: bf16[16,32], index: 3, kind: output, shape index: {0}]
  %s4 = inlined_call_operand.vmem [shape: bf16[16,32], index: 4, kind: output, shape index: {1}]
  %s5 = inlined_call_operand.vmem [shape: bf16[16,32], index: 5, kind: output, shape index: {2}]
  %6 = xla_tuple %s3, %s4, %s5
  %s7 = sld [smem:[#allocation0]]
  $region38: #{run.6} parent=0
    _
  %s9 = ssub.s32 1, %s7
  %s10 = scalar_select 0, %s9, %s7
  // Predicated region
  $region2: #{run.6} parent=0 // pred_check
    _
  $region3: #{run.6} parent=0 // pred_check_branch
    %12 = sbr.rel (0) target = $region5
  $region4: #{run.6} parent=0 // pred_region
    _
  $region5: #{run.6} parent=0 // pred_fallthru
    _
  // Predicated region
  $region6: #{run.6} parent=0 // pred_check
    _
  $region7: #{run.6} parent=0 // pred_check_branch
    %14 = sbr.rel (0) target = $region9
  $region8: #{run.6} parent=0 // pred_region
    _
  $region9: #{run.6} parent=0 // pred_fallthru
    _
  // Predicated region
  $region10: #{run.6} parent=0 // pred_check
    _
  $region11: #{run.6} parent=0 // pred_check_branch
    %16 = sbr.rel (0) target = $region13
  $region12: #{run.6} parent=0 // pred_region
    _
  $region13: #{run.6} parent=0 // pred_fallthru
    _
  %v18 = vld [vmem:[%s0] sm:$0xff]
  %v19 = vld [vmem:[%s0 + $0x8] sm:$0xff]
  %v20 = vpack.c.bf16 %v19, %v18
  %v21 = vld [vmem:[%s1] sm:$0xf]
  %v22 = vld [vmem:[%s1 + $0x4] sm:$0xf]
  %v23 = vld [vmem:[%s1 + $0x8] sm:$0xf]
  %v24 = vld [vmem:[%s1 + $0xc] sm:$0xf]
  %v25 = vld [vmem:[%s2] sm:$0x1]
  %v27 = vlaneseq
  %v28 = vshrl.u32 %v27, 7
  %v29 = vsub.s32 0, %v28
  %v30 = vrot.slane %v25, %v29
  %v36 = vunpack.c.l.b16 %v21
  %v37 = vunpack.c.l.b16 %v22
  %v38 = vunpack.c.l.b16 %v23
  %v39 = vunpack.c.l.b16 %v24
  %v40 = vpack.c.b16 %v37, %v36
  %v41 = vpack.c.b16 %v39, %v38
  %vm44 = vcmask 261120
  %v46 = vsel %vm44, %v20, 0
  %48 = vmatprep.subr.bf16.mxu0 0
  %49 = vmatpush1.bf16.msra.mxu0 %v40
  %50 = vmatprep.subr.bf16.mxu0 0
  %51 = vmatpush1.bf16.msra.mxu0 %v41
  %52 = vmatprep.subr.bf16.mxu0 0
  %53 = vmatpush1.bf16.msra.mxu0 0
  %54 = vmatprep.subr.bf16.mxu0 0
  %55 = vmatpush1.bf16.msra.mxu0 0
  %56 = vmatprep.subr.bf16.mxu0 0
  %57 = vmatpush1.bf16.msra.mxu0 0
  %58 = vmatprep.subr.bf16.mxu0 0
  %59 = vmatpush1.bf16.msra.mxu0 0
  %60 = vmatprep.subr.bf16.mxu0 0
  %61 = vmatpush1.bf16.msra.mxu0 0
  %62 = vmatprep.subr.bf16.mxu0 0
  %63 = vmatpush1.bf16.msra.mxu0 0
  %64 = vmatprep.subr.bf16.mxu0 0
  %65 = vmatpush1.bf16.msra.mxu0 0
  %66 = vmatprep.subr.bf16.mxu0 0
  %67 = vmatpush1.bf16.msra.mxu0 0
  %68 = vmatprep.subr.bf16.mxu0 0
  %69 = vmatpush1.bf16.msra.mxu0 0
  %70 = vmatprep.subr.bf16.mxu0 0
  %71 = vmatpush1.bf16.msra.mxu0 0
  %72 = vmatprep.subr.bf16.mxu0 0
  %73 = vmatpush1.bf16.msra.mxu0 0
  %74 = vmatprep.subr.bf16.mxu0 0
  %75 = vmatpush1.bf16.msra.mxu0 0
  %76 = vmatprep.subr.bf16.mxu0 0
  %77 = vmatpush1.bf16.msra.mxu0 0
  %78 = vmatprep.subr.bf16.mxu0 0
  %79 = vmatpush1.bf16.msra.mxu0 0
  %80 = vmatprep.mubr.bf16.mxu0 0
  %81 = vmatmul.mubr.bf16.gmra.mrb[0].mxu0 %v46
  %v82 = vpop.f32.mrb[0].mxu0
  %v83 = vadd.f32 %v30, %v82
  %v84 = vpop.f32.mrb[0].mxu0
  %v85 = vpop.f32.mrb[0].mxu0
  %v86 = vadd.f32 %v30, %v85
  %v87 = vpop.f32.mrb[0].mxu0
  %88 = vdwg.mxu0
  %v89 = vpack.c.bf16 %v86, %v83
  %v91 = vunpack.c.l.b16 %v89
  %v92 = vunpack.c.h.b16 %v89
  %v93 = vpack.c.b16 %v91, %v91
  %v94 = vpack.c.b16 %v92, %v92
  %vm97 = vcmask 257024
  %98 = vst.msk [vmem:[%s3] sm:$0xf] %vm97, %v93
  %99 = vst.msk [vmem:[%s3 + $0x4] sm:$0xf] %vm97, %v94
  %100 = vrot.lane.b32.xlu0 %v93, 96
  %v101 = vpop.permute.xlu0 %100
  %102 = vrot.lane.b32.xlu0 %v94, 96
  %v103 = vpop.permute.xlu0 %102
  %106 = vst.msk [vmem:[%s4] sm:$0xf] %vm97, %v101
  %107 = vst.msk [vmem:[%s4 + $0x4] sm:$0xf] %vm97, %v103
  %108 = vrot.lane.b32.xlu0 %v93, 64
  %v109 = vpop.permute.xlu0 %108
  %110 = vrot.lane.b32.xlu0 %v94, 64
  %v111 = vpop.permute.xlu0 %110
  %114 = vst.msk [vmem:[%s5] sm:$0xf] %vm97, %v109
  %115 = vst.msk [vmem:[%s5 + $0x4] sm:$0xf] %vm97, %v111
  // Predicated region
  $region14: #{run.6} parent=0 // pred_check
    _
  $region15: #{run.6} parent=0 // pred_check_branch
    %117 = sbr.rel (0) target = $region17
  $region16: #{run.6} parent=0 // pred_region
    _
  $region17: #{run.6} parent=0 // pred_fallthru
    _
  // Predicated region
  $region18: #{run.6} parent=0 // pred_check
    _
  $region19: #{run.6} parent=0 // pred_check_branch
    %119 = sbr.rel (0) target = $region21
  $region20: #{run.6} parent=0 // pred_region
    _
  $region21: #{run.6} parent=0 // pred_fallthru
    _
  // Predicated region
  $region22: #{run.6} parent=0 // pred_check
    _
  $region23: #{run.6} parent=0 // pred_check_branch
    %121 = sbr.rel (0) target = $region25
  $region24: #{run.6} parent=0 // pred_region
    _
  $region25: #{run.6} parent=0 // pred_fallthru
    _
  // Predicated region
  $region26: #{run.6} parent=0 // pred_check
    _
  $region27: #{run.6} parent=0 // pred_check_branch
    %123 = sbr.rel (0) target = $region29
  $region28: #{run.6} parent=0 // pred_region
    _
  $region29: #{run.6} parent=0 // pred_fallthru
    _
  // Predicated region
  $region30: #{run.6} parent=0 // pred_check
    _
  $region31: #{run.6} parent=0 // pred_check_branch
    %125 = sbr.rel (0) target = $region33
  $region32: #{run.6} parent=0 // pred_region
    _
  $region33: #{run.6} parent=0 // pred_fallthru
    _
  // Predicated region
  $region34: #{run.6} parent=0 // pred_check
    _
  $region35: #{run.6} parent=0 // pred_check_branch
    %127 = sbr.rel (0) target = $region37
  $region36: #{run.6} parent=0 // pred_region
    _
  $region37: #{run.6} parent=0 // pred_fallthru
    _

// kernel: run.8
$region0: #{run.8}
  #allocation0 [shape = 'u32[]', space=smem, size = 0x4, offset = 0x4, fixed_abs, tag = 'smem constant byte address 0x4 - core index']
  #allocation1 [shape = 'u32[144,128]{1,0:T(1,128)}', space=vmem, size = 0x12000, scoped, tag = 'internal scratch']
  #allocation2 [shape = 'f32[16,32]{1,0:T(8,128)}', space=vmem, size = 0x2000, scoped, tag = 'scratch operand']
  %s0 = inlined_call_operand.vmem [shape: f32[16,32], index: 0, kind: input, shape index: {}]
  %s1 = inlined_call_operand.vmem [shape: bf16[32,128], index: 1, kind: input, shape index: {}]
  %s2 = inlined_call_operand.vmem [shape: f32[1,128], index: 2, kind: input, shape index: {}]
  %s3 = inlined_call_operand.vmem [shape: bf16[128,32], index: 3, kind: input, shape index: {}]
  %s4 = inlined_call_operand.vmem [shape: f32[1,32], index: 4, kind: input, shape index: {}]
  %s5 = inlined_call_operand.vmem [shape: f32[1,32], index: 5, kind: input, shape index: {}]
  %s6 = inlined_call_operand.vmem [shape: f32[1,32], index: 6, kind: input, shape index: {}]
  %s7 = inlined_call_operand.vmem [shape: f32[16,32], index: 7, kind: output, shape index: {}]
  %s8 = sld [smem:[#allocation0]]
  $region46: #{run.8} parent=0
    _
  %s10 = ssub.s32 1, %s8
  %s11 = scalar_select 0, %s10, %s8
  // Predicated region
  $region2: #{run.8} parent=0 // pred_check
    _
  $region3: #{run.8} parent=0 // pred_check_branch
    %13 = sbr.rel (0) target = $region5
  $region4: #{run.8} parent=0 // pred_region
    _
  $region5: #{run.8} parent=0 // pred_fallthru
    _
  // Predicated region
  $region6: #{run.8} parent=0 // pred_check
    _
  $region7: #{run.8} parent=0 // pred_check_branch
    %15 = sbr.rel (0) target = $region9
  $region8: #{run.8} parent=0 // pred_region
    _
  $region9: #{run.8} parent=0 // pred_fallthru
    _
  // Predicated region
  $region10: #{run.8} parent=0 // pred_check
    _
  $region11: #{run.8} parent=0 // pred_check_branch
    %17 = sbr.rel (0) target = $region13
  $region12: #{run.8} parent=0 // pred_region
    _
  $region13: #{run.8} parent=0 // pred_fallthru
    _
  // Predicated region
  $region14: #{run.8} parent=0 // pred_check
    _
  $region15: #{run.8} parent=0 // pred_check_branch
    %19 = sbr.rel (0) target = $region17
  $region16: #{run.8} parent=0 // pred_region
    _
  $region17: #{run.8} parent=0 // pred_fallthru
    _
  // Predicated region
  $region18: #{run.8} parent=0 // pred_check
    _
  $region19: #{run.8} parent=0 // pred_check_branch
    %21 = sbr.rel (0) target = $region21
  $region20: #{run.8} parent=0 // pred_region
    _
  $region21: #{run.8} parent=0 // pred_fallthru
    _
  // Predicated region
  $region22: #{run.8} parent=0 // pred_check
    _
  $region23: #{run.8} parent=0 // pred_check_branch
    %23 = sbr.rel (0) target = $region25
  $region24: #{run.8} parent=0 // pred_region
    _
  $region25: #{run.8} parent=0 // pred_fallthru
    _
  // Predicated region
  $region26: #{run.8} parent=0 // pred_check
    _
  $region27: #{run.8} parent=0 // pred_check_branch
    %25 = sbr.rel (0) target = $region29
  $region28: #{run.8} parent=0 // pred_region
    _
  $region29: #{run.8} parent=0 // pred_fallthru
    _
  %p27 = scmp.eq.s32.totalorder 0, 0
  // Predicated region
  $region30: #{run.8} parent=0 // pred_check
    %p28 = pneg %p27
  $region31: #{run.8} parent=0 // pred_check_branch
    %30 = sbr.rel (%p28) target = $region33
  $region32: #{run.8} parent=0 // pred_region
    %vm31 = vcmask 261120
    %32 = vst.msk [vmem:[#allocation2] sm:$0xff] %vm31, 0.0
    %33 = vst.msk [vmem:[#allocation2 + $0x8] sm:$0xff] %vm31, 0.0
  $region33: #{run.8} parent=0 // pred_fallthru
    _
  %v34 = vld [vmem:[%s0] sm:$0xff]
  %v35 = vld [vmem:[%s0 + $0x8] sm:$0xff]
  %v36 = vpack.c.bf16 %v35, %v34
  %v37 = vld [vmem:[%s1] sm:$0xf]
  %v38 = vld [vmem:[%s1 + $0x4] sm:$0xf]
  %v39 = vld [vmem:[%s1 + $0x8] sm:$0xf]
  %v40 = vld [vmem:[%s1 + $0xc] sm:$0xf]
  %v41 = vld [vmem:[%s2] sm:$0x1]
  %v43 = vlaneseq
  %v44 = vshrl.u32 %v43, 7
  %v45 = vsub.s32 0, %v44
  %v46 = vrot.slane %v41, %v45
  %v52 = vunpack.c.l.b16 %v37
  %v53 = vunpack.c.l.b16 %v38
  %v54 = vunpack.c.l.b16 %v39
  %v55 = vunpack.c.l.b16 %v40
  %v56 = vpack.c.b16 %v53, %v52
  %v57 = vpack.c.b16 %v55, %v54
  %vm60 = vcmask 261120
  %v62 = vsel %vm60, %v36, 0
  %64 = vmatprep.subr.bf16.mxu0 0
  %65 = vmatpush1.bf16.msra.mxu0 %v56
  %66 = vmatprep.subr.bf16.mxu0 0
  %67 = vmatpush1.bf16.msra.mxu0 %v57
  %68 = vmatprep.subr.bf16.mxu0 0
  %69 = vmatpush1.bf16.msra.mxu0 0
  %70 = vmatprep.subr.bf16.mxu0 0
  %71 = vmatpush1.bf16.msra.mxu0 0
  %72 = vmatprep.subr.bf16.mxu0 0
  %73 = vmatpush1.bf16.msra.mxu0 0
  %74 = vmatprep.subr.bf16.mxu0 0
  %75 = vmatpush1.bf16.msra.mxu0 0
  %76 = vmatprep.subr.bf16.mxu0 0
  %77 = vmatpush1.bf16.msra.mxu0 0
  %78 = vmatprep.subr.bf16.mxu0 0
  %79 = vmatpush1.bf16.msra.mxu0 0
  %80 = vmatprep.subr.bf16.mxu0 0
  %81 = vmatpush1.bf16.msra.mxu0 0
  %82 = vmatprep.subr.bf16.mxu0 0
  %83 = vmatpush1.bf16.msra.mxu0 0
  %84 = vmatprep.subr.bf16.mxu0 0
  %85 = vmatpush1.bf16.msra.mxu0 0
  %86 = vmatprep.subr.bf16.mxu0 0
  %87 = vmatpush1.bf16.msra.mxu0 0
  %88 = vmatprep.subr.bf16.mxu0 0
  %89 = vmatpush1.bf16.msra.mxu0 0
  %90 = vmatprep.subr.bf16.mxu0 0
  %91 = vmatpush1.bf16.msra.mxu0 0
  %92 = vmatprep.subr.bf16.mxu0 0
  %93 = vmatpush1.bf16.msra.mxu0 0
  %94 = vmatprep.subr.bf16.mxu0 0
  %95 = vmatpush1.bf16.msra.mxu0 0
  %96 = vmatprep.mubr.bf16.mxu0 0
  %97 = vmatmul.mubr.bf16.gmra.mrb[0].mxu0 %v62
  %v98 = vpop.f32.mrb[0].mxu0
  %v99 = vadd.f32 %v46, %v98
  %v100 = vpop.f32.mrb[0].mxu0
  %v101 = vpop.f32.mrb[0].mxu0
  %v102 = vadd.f32 %v46, %v101
  %v103 = vpop.f32.mrb[0].mxu0
  %104 = vdwg.mxu0
  %v105 = vmax.f32 %v99, 0.0
  %v106 = vmax.f32 %v102, 0.0
  %v107 = vld [vmem:[#allocation2] sm:$0xff]
  %v108 = vld [vmem:[#allocation2 + $0x8] sm:$0xff]
  %v109 = vpack.c.bf16 %v106, %v105
  %v110 = vld [vmem:[%s3] sm:$0xf]
  %v111 = vld [vmem:[%s3 + $0x4] sm:$0xf]
  %v112 = vld [vmem:[%s3 + $0x8] sm:$0xf]
  %v113 = vld [vmem:[%s3 + $0xc] sm:$0xf]
  %v114 = vld [vmem:[%s3 + $0x10] sm:$0xf]
  %v115 = vld [vmem:[%s3 + $0x14] sm:$0xf]
  %v116 = vld [vmem:[%s3 + $0x18] sm:$0xf]
  %v117 = vld [vmem:[%s3 + $0x1c] sm:$0xf]
  %v118 = vld [vmem:[%s3 + $0x20] sm:$0xf]
  %v119 = vld [vmem:[%s3 + $0x24] sm:$0xf]
  %v120 = vld [vmem:[%s3 + $0x28] sm:$0xf]
  %v121 = vld [vmem:[%s3 + $0x2c] sm:$0xf]
  %v122 = vld [vmem:[%s3 + $0x30] sm:$0xf]
  %v123 = vld [vmem:[%s3 + $0x34] sm:$0xf]
  %v124 = vld [vmem:[%s3 + $0x38] sm:$0xf]
  %v125 = vld [vmem:[%s3 + $0x3c] sm:$0xf]
  %v142 = vunpack.c.l.b16 %v110
  %v143 = vunpack.c.l.b16 %v111
  %v144 = vunpack.c.l.b16 %v112
  %v145 = vunpack.c.l.b16 %v113
  %v146 = vunpack.c.l.b16 %v114
  %v147 = vunpack.c.l.b16 %v115
  %v148 = vunpack.c.l.b16 %v116
  %v149 = vunpack.c.l.b16 %v117
  %v150 = vunpack.c.l.b16 %v118
  %v151 = vunpack.c.l.b16 %v119
  %v152 = vunpack.c.l.b16 %v120
  %v153 = vunpack.c.l.b16 %v121
  %v154 = vunpack.c.l.b16 %v122
  %v155 = vunpack.c.l.b16 %v123
  %v156 = vunpack.c.l.b16 %v124
  %v157 = vunpack.c.l.b16 %v125
  %v158 = vpack.c.b16 %v143, %v142
  %v159 = vpack.c.b16 %v145, %v144
  %v160 = vpack.c.b16 %v147, %v146
  %v161 = vpack.c.b16 %v149, %v148
  %v162 = vpack.c.b16 %v151, %v150
  %v163 = vpack.c.b16 %v153, %v152
  %v164 = vpack.c.b16 %v155, %v154
  %v165 = vpack.c.b16 %v157, %v156
  %174 = vmatprep.subr.bf16.mxu0 0
  %175 = vmatpush1.bf16.msra.mxu0 %v158
  %176 = vmatprep.subr.bf16.mxu0 0
  %177 = vmatpush1.bf16.msra.mxu0 %v159
  %178 = vmatprep.subr.bf16.mxu0 0
  %179 = vmatpush1.bf16.msra.mxu0 %v160
  %180 = vmatprep.subr.bf16.mxu0 0
  %181 = vmatpush1.bf16.msra.mxu0 %v161
  %182 = vmatprep.subr.bf16.mxu0 0
  %183 = vmatpush1.bf16.msra.mxu0 %v162
  %184 = vmatprep.subr.bf16.mxu0 0
  %185 = vmatpush1.bf16.msra.mxu0 %v163
  %186 = vmatprep.subr.bf16.mxu0 0
  %187 = vmatpush1.bf16.msra.mxu0 %v164
  %188 = vmatprep.subr.bf16.mxu0 0
  %189 = vmatpush1.bf16.msra.mxu0 %v165
  %190 = vmatprep.subr.bf16.mxu0 0
  %191 = vmatpush1.bf16.msra.mxu0 0
  %192 = vmatprep.subr.bf16.mxu0 0
  %193 = vmatpush1.bf16.msra.mxu0 0
  %194 = vmatprep.subr.bf16.mxu0 0
  %195 = vmatpush1.bf16.msra.mxu0 0
  %196 = vmatprep.subr.bf16.mxu0 0
  %197 = vmatpush1.bf16.msra.mxu0 0
  %198 = vmatprep.subr.bf16.mxu0 0
  %199 = vmatpush1.bf16.msra.mxu0 0
  %200 = vmatprep.subr.bf16.mxu0 0
  %201 = vmatpush1.bf16.msra.mxu0 0
  %202 = vmatprep.subr.bf16.mxu0 0
  %203 = vmatpush1.bf16.msra.mxu0 0
  %204 = vmatprep.subr.bf16.mxu0 0
  %205 = vmatpush1.bf16.msra.mxu0 0
  %206 = vmatprep.mubr.bf16.mxu0 0
  %207 = vmatmul.mubr.bf16.gmra.mrb[0].mxu0 %v109
  %v208 = vpop.f32.mrb[0].mxu0
  %v209 = vadd.f32 0.0, %v208
  %v210 = vpop.f32.mrb[0].mxu0
  %v211 = vpop.f32.mrb[0].mxu0
  %v212 = vadd.f32 0.0, %v211
  %v213 = vpop.f32.mrb[0].mxu0
  %214 = vdwg.mxu0
  %v215 = vadd.f32 %v107, %v209
  %v216 = vadd.f32 %v108, %v212
  %217 = vst.msk [vmem:[#allocation2] sm:$0xff] %vm60, %v215
  %218 = vst.msk [vmem:[#allocation2 + $0x8] sm:$0xff] %vm60, %v216
  // Predicated region
  $region34: #{run.8} parent=0 // pred_check
    %p219 = pneg %p27
  $region35: #{run.8} parent=0 // pred_check_branch
    %221 = sbr.rel (%p219) target = $region37
  $region36: #{run.8} parent=0 // pred_region
    %v222 = vld [vmem:[#allocation2] sm:$0xff]
    %v223 = vld [vmem:[#allocation2 + $0x8] sm:$0xff]
    %v224 = vld [vmem:[%s4] sm:$0x1]
    %v226 = vlaneseq
    %v227 = vshrl.u32 %v226, 7
    %v228 = vsub.s32 0, %v227
    %v229 = vrot.slane %v224, %v228
    %v231 = vadd.f32 %v222, %v229
    %v232 = vadd.f32 %v223, %v229
    %v233 = vadd.f32 %v231, %v34
    %v234 = vadd.f32 %v232, %v35
    %v235 = vld [vmem:[%s5] sm:$0x1]
    %v236 = vld [vmem:[%s6] sm:$0x1]
    %v237 = vsel %vm60, %v233, 0.0
    %238 = vadd.xlane.f32.xlu0 %v237
    %v239 = vpop.xlane.xlu0 %238
    %v240 = vsel %vm60, %v234, 0.0
    %241 = vadd.xlane.f32.xlu0 %v240
    %v242 = vpop.xlane.xlu0 %241
    %v243 = vrcp.pop 32.0
    %v244 = vmul.f32 %v239, %v243
    %v245 = vmul.f32 %v242, %v243
    %v246 = vsub.f32 %v233, %v244
    %v247 = vsub.f32 %v234, %v245
    %v248 = vmul.f32 %v246, %v246
    %v249 = vmul.f32 %v247, %v247
    %v250 = vsel %vm60, %v248, 0.0
    %251 = vadd.xlane.f32.xlu0 %v250
    %v252 = vpop.xlane.xlu0 %251
    %v253 = vsel %vm60, %v249, 0.0
    %254 = vadd.xlane.f32.xlu0 %v253
    %v255 = vpop.xlane.xlu0 %254
    %v256 = vmul.f32 %v252, %v243
    %v257 = vmul.f32 %v255, %v243
    %v258 = vadd.f32 %v256, 1e-05
    %v259 = vadd.f32 %v257, 1e-05
    %v260 = vrsqrt.pop %v258
    %v261 = vrsqrt.pop %v259
    %v262 = vmul.f32 %v246, %v260
    %v263 = vmul.f32 %v247, %v261
    %v265 = vlaneseq
    %v266 = vshrl.u32 %v265, 7
    %v267 = vsub.s32 0, %v266
    %v268 = vrot.slane %v235, %v267
    %v270 = vmul.f32 %v262, %v268
    %v271 = vmul.f32 %v263, %v268
    %v273 = vlaneseq
    %v274 = vshrl.u32 %v273, 7
    %v275 = vsub.s32 0, %v274
    %v276 = vrot.slane %v236, %v275
    %v278 = vadd.f32 %v270, %v276
    %v279 = vadd.f32 %v271, %v276
    %280 = vst.msk [vmem:[%s7] sm:$0xff] %vm60, %v278
    %281 = vst.msk [vmem:[%s7 + $0x8] sm:$0xff] %vm60, %v279
  $region37: #{run.8} parent=0 // pred_fallthru
    _
  // Predicated region
  $region38: #{run.8} parent=0 // pred_check
    _
  $region39: #{run.8} parent=0 // pred_check_branch
    %283 = sbr.rel (0) target = $region41
  $region40: #{run.8} parent=0 // pred_region
    _
  $region41: #{run.8} parent=0 // pred_fallthru
    _
  // Predicated region
  $region42: #{run.8} parent=0 // pred_check
    _
  $region43: #{run.8} parent=0 // pred_check_branch
    %285 = sbr.rel (0) target = $region45
  $region44: #{run.8} parent=0 // pred_region
    _
  $region45: #{run.8} parent=0 // pred_fallthru
    _

// kernel: run.11
$region0: #{run.11}
  #allocation0 [shape = 'u32[]', space=smem, size = 0x4, offset = 0x4, fixed_abs, tag = 'smem constant byte address 0x4 - core index']
  #allocation1 [shape = 'u32[144,128]{1,0:T(1,128)}', space=vmem, size = 0x12000, scoped, tag = 'internal scratch']
  #allocation2 [shape = 'f32[16,32]{1,0:T(8,128)}', space=vmem, size = 0x2000, scoped, tag = 'scratch operand']
  %s0 = inlined_call_operand.vmem [shape: f32[16,32], index: 0, kind: input, shape index: {}]
  %s1 = inlined_call_operand.vmem [shape: bf16[32,128], index: 1, kind: input, shape index: {}]
  %s2 = inlined_call_operand.vmem [shape: f32[1,128], index: 2, kind: input, shape index: {}]
  %s3 = inlined_call_operand.vmem [shape: bf16[128,32], index: 3, kind: input, shape index: {}]
  %s4 = inlined_call_operand.vmem [shape: f32[1,32], index: 4, kind: input, shape index: {}]
  %s5 = inlined_call_operand.vmem [shape: f32[1,32], index: 5, kind: input, shape index: {}]
  %s6 = inlined_call_operand.vmem [shape: f32[1,32], index: 6, kind: input, shape index: {}]
  %s7 = inlined_call_operand.hbm [shape: f32[16,32], index: 7, kind: output, shape index: {}]
  %s8 = sld [smem:[#allocation0]]
  $region46: #{run.11} parent=0
    _
  %s10 = ssub.s32 1, %s8
  %s11 = scalar_select 0, %s10, %s8
  $region1: #{run.11} parent=0
    #allocation3 [shape = 'u8[8192]{0}', space=vmem, size = 0x2000, scoped, tag = 'output window, operand 0, single buffered']
    #allocation4 [shape = 's32[1]{0}', space=sflag, size = 0x4, scoped, tag = 'scoped memory for run.11']
    %12 = vsyncpa [#allocation4], 0
    // Predicated region
    $region2: #{run.11} parent=1 // pred_check
      _
    $region3: #{run.11} parent=1 // pred_check_branch
      %14 = sbr.rel (0) target = $region5
    $region4: #{run.11} parent=1 // pred_region
      _
    $region5: #{run.11} parent=1 // pred_fallthru
      _
    // Predicated region
    $region6: #{run.11} parent=1 // pred_check
      _
    $region7: #{run.11} parent=1 // pred_check_branch
      %16 = sbr.rel (0) target = $region9
    $region8: #{run.11} parent=1 // pred_region
      _
    $region9: #{run.11} parent=1 // pred_fallthru
      _
    // Predicated region
    $region10: #{run.11} parent=1 // pred_check
      _
    $region11: #{run.11} parent=1 // pred_check_branch
      %18 = sbr.rel (0) target = $region13
    $region12: #{run.11} parent=1 // pred_region
      _
    $region13: #{run.11} parent=1 // pred_fallthru
      _
    // Predicated region
    $region14: #{run.11} parent=1 // pred_check
      _
    $region15: #{run.11} parent=1 // pred_check_branch
      %20 = sbr.rel (0) target = $region17
    $region16: #{run.11} parent=1 // pred_region
      _
    $region17: #{run.11} parent=1 // pred_fallthru
      _
    // Predicated region
    $region18: #{run.11} parent=1 // pred_check
      _
    $region19: #{run.11} parent=1 // pred_check_branch
      %22 = sbr.rel (0) target = $region21
    $region20: #{run.11} parent=1 // pred_region
      _
    $region21: #{run.11} parent=1 // pred_fallthru
      _
    // Predicated region
    $region22: #{run.11} parent=1 // pred_check
      _
    $region23: #{run.11} parent=1 // pred_check_branch
      %24 = sbr.rel (0) target = $region25
    $region24: #{run.11} parent=1 // pred_region
      _
    $region25: #{run.11} parent=1 // pred_fallthru
      _
    // Predicated region
    $region26: #{run.11} parent=1 // pred_check
      _
    $region27: #{run.11} parent=1 // pred_check_branch
      %26 = sbr.rel (0) target = $region29
    $region28: #{run.11} parent=1 // pred_region
      _
    $region29: #{run.11} parent=1 // pred_fallthru
      _
    %p28 = scmp.eq.s32.totalorder 0, 0
    // Predicated region
    $region30: #{run.11} parent=1 // pred_check
      %p29 = pneg %p28
    $region31: #{run.11} parent=1 // pred_check_branch
      %31 = sbr.rel (%p29) target = $region33
    $region32: #{run.11} parent=1 // pred_region
      %vm32 = vcmask 261120
      %33 = vst.msk [vmem:[#allocation2] sm:$0xff] %vm32, 0.0
      %34 = vst.msk [vmem:[#allocation2 + $0x8] sm:$0xff] %vm32, 0.0
    $region33: #{run.11} parent=1 // pred_fallthru
      _
    %v35 = vld [vmem:[%s0] sm:$0xff]
    %v36 = vld [vmem:[%s0 + $0x8] sm:$0xff]
    %v37 = vpack.c.bf16 %v36, %v35
    %v38 = vld [vmem:[%s1] sm:$0xf]
    %v39 = vld [vmem:[%s1 + $0x4] sm:$0xf]
    %v40 = vld [vmem:[%s1 + $0x8] sm:$0xf]
    %v41 = vld [vmem:[%s1 + $0xc] sm:$0xf]
    %v42 = vld [vmem:[%s2] sm:$0x1]
    %v44 = vlaneseq
    %v45 = vshrl.u32 %v44, 7
    %v46 = vsub.s32 0, %v45
    %v47 = vrot.slane %v42, %v46
    %v53 = vunpack.c.l.b16 %v38
    %v54 = vunpack.c.l.b16 %v39
    %v55 = vunpack.c.l.b16 %v40
    %v56 = vunpack.c.l.b16 %v41
    %v57 = vpack.c.b16 %v54, %v53
    %v58 = vpack.c.b16 %v56, %v55
    %vm61 = vcmask 261120
    %v63 = vsel %vm61, %v37, 0
    %65 = vmatprep.subr.bf16.mxu0 0
    %66 = vmatpush1.bf16.msra.mxu0 %v57
    %67 = vmatprep.subr.bf16.mxu0 0
    %68 = vmatpush1.bf16.msra.mxu0 %v58
    %69 = vmatprep.subr.bf16.mxu0 0
    %70 = vmatpush1.bf16.msra.mxu0 0
    %71 = vmatprep.subr.bf16.mxu0 0
    %72 = vmatpush1.bf16.msra.mxu0 0
    %73 = vmatprep.subr.bf16.mxu0 0
    %74 = vmatpush1.bf16.msra.mxu0 0
    %75 = vmatprep.subr.bf16.mxu0 0
    %76 = vmatpush1.bf16.msra.mxu0 0
    %77 = vmatprep.subr.bf16.mxu0 0
    %78 = vmatpush1.bf16.msra.mxu0 0
    %79 = vmatprep.subr.bf16.mxu0 0
    %80 = vmatpush1.bf16.msra.mxu0 0
    %81 = vmatprep.subr.bf16.mxu0 0
    %82 = vmatpush1.bf16.msra.mxu0 0
    %83 = vmatprep.subr.bf16.mxu0 0
    %84 = vmatpush1.bf16.msra.mxu0 0
    %85 = vmatprep.subr.bf16.mxu0 0
    %86 = vmatpush1.bf16.msra.mxu0 0
    %87 = vmatprep.subr.bf16.mxu0 0
    %88 = vmatpush1.bf16.msra.mxu0 0
    %89 = vmatprep.subr.bf16.mxu0 0
    %90 = vmatpush1.bf16.msra.mxu0 0
    %91 = vmatprep.subr.bf16.mxu0 0
    %92 = vmatpush1.bf16.msra.mxu0 0
    %93 = vmatprep.subr.bf16.mxu0 0
    %94 = vmatpush1.bf16.msra.mxu0 0
    %95 = vmatprep.subr.bf16.mxu0 0
    %96 = vmatpush1.bf16.msra.mxu0 0
    %97 = vmatprep.mubr.bf16.mxu0 0
    %98 = vmatmul.mubr.bf16.gmra.mrb[0].mxu0 %v63
    %v99 = vpop.f32.mrb[0].mxu0
    %v100 = vadd.f32 %v47, %v99
    %v101 = vpop.f32.mrb[0].mxu0
    %v102 = vpop.f32.mrb[0].mxu0
    %v103 = vadd.f32 %v47, %v102
    %v104 = vpop.f32.mrb[0].mxu0
    %105 = vdwg.mxu0
    %v106 = vmax.f32 %v100, 0.0
    %v107 = vmax.f32 %v103, 0.0
    %v108 = vld [vmem:[#allocation2] sm:$0xff]
    %v109 = vld [vmem:[#allocation2 + $0x8] sm:$0xff]
    %v110 = vpack.c.bf16 %v107, %v106
    %v111 = vld [vmem:[%s3] sm:$0xf]
    %v112 = vld [vmem:[%s3 + $0x4] sm:$0xf]
    %v113 = vld [vmem:[%s3 + $0x8] sm:$0xf]
    %v114 = vld [vmem:[%s3 + $0xc] sm:$0xf]
    %v115 = vld [vmem:[%s3 + $0x10] sm:$0xf]
    %v116 = vld [vmem:[%s3 + $0x14] sm:$0xf]
    %v117 = vld [vmem:[%s3 + $0x18] sm:$0xf]
    %v118 = vld [vmem:[%s3 + $0x1c] sm:$0xf]
    %v119 = vld [vmem:[%s3 + $0x20] sm:$0xf]
    %v120 = vld [vmem:[%s3 + $0x24] sm:$0xf]
    %v121 = vld [vmem:[%s3 + $0x28] sm:$0xf]
    %v122 = vld [vmem:[%s3 + $0x2c] sm:$0xf]
    %v123 = vld [vmem:[%s3 + $0x30] sm:$0xf]
    %v124 = vld [vmem:[%s3 + $0x34] sm:$0xf]
    %v125 = vld [vmem:[%s3 + $0x38] sm:$0xf]
    %v126 = vld [vmem:[%s3 + $0x3c] sm:$0xf]
    %v143 = vunpack.c.l.b16 %v111
    %v144 = vunpack.c.l.b16 %v112
    %v145 = vunpack.c.l.b16 %v113
    %v146 = vunpack.c.l.b16 %v114
    %v147 = vunpack.c.l.b16 %v115
    %v148 = vunpack.c.l.b16 %v116
    %v149 = vunpack.c.l.b16 %v117
    %v150 = vunpack.c.l.b16 %v118
    %v151 = vunpack.c.l.b16 %v119
    %v152 = vunpack.c.l.b16 %v120
    %v153 = vunpack.c.l.b16 %v121
    %v154 = vunpack.c.l.b16 %v122
    %v155 = vunpack.c.l.b16 %v123
    %v156 = vunpack.c.l.b16 %v124
    %v157 = vunpack.c.l.b16 %v125
    %v158 = vunpack.c.l.b16 %v126
    %v159 = vpack.c.b16 %v144, %v143
    %v160 = vpack.c.b16 %v146, %v145
    %v161 = vpack.c.b16 %v148, %v147
    %v162 = vpack.c.b16 %v150, %v149
    %v163 = vpack.c.b16 %v152, %v151
    %v164 = vpack.c.b16 %v154, %v153
    %v165 = vpack.c.b16 %v156, %v155
    %v166 = vpack.c.b16 %v158, %v157
    %175 = vmatprep.subr.bf16.mxu0 0
    %176 = vmatpush1.bf16.msra.mxu0 %v159
    %177 = vmatprep.subr.bf16.mxu0 0
    %178 = vmatpush1.bf16.msra.mxu0 %v160
    %179 = vmatprep.subr.bf16.mxu0 0
    %180 = vmatpush1.bf16.msra.mxu0 %v161
    %181 = vmatprep.subr.bf16.mxu0 0
    %182 = vmatpush1.bf16.msra.mxu0 %v162
    %183 = vmatprep.subr.bf16.mxu0 0
    %184 = vmatpush1.bf16.msra.mxu0 %v163
    %185 = vmatprep.subr.bf16.mxu0 0
    %186 = vmatpush1.bf16.msra.mxu0 %v164
    %187 = vmatprep.subr.bf16.mxu0 0
    %188 = vmatpush1.bf16.msra.mxu0 %v165
    %189 = vmatprep.subr.bf16.mxu0 0
    %190 = vmatpush1.bf16.msra.mxu0 %v166
    %191 = vmatprep.subr.bf16.mxu0 0
    %192 = vmatpush1.bf16.msra.mxu0 0
    %193 = vmatprep.subr.bf16.mxu0 0
    %194 = vmatpush1.bf16.msra.mxu0 0
    %195 = vmatprep.subr.bf16.mxu0 0
    %196 = vmatpush1.bf16.msra.mxu0 0
    %197 = vmatprep.subr.bf16.mxu0 0
    %198 = vmatpush1.bf16.msra.mxu0 0
    %199 = vmatprep.subr.bf16.mxu0 0
    %200 = vmatpush1.bf16.msra.mxu0 0
    %201 = vmatprep.subr.bf16.mxu0 0
    %202 = vmatpush1.bf16.msra.mxu0 0
    %203 = vmatprep.subr.bf16.mxu0 0
    %204 = vmatpush1.bf16.msra.mxu0 0
    %205 = vmatprep.subr.bf16.mxu0 0
    %206 = vmatpush1.bf16.msra.mxu0 0
    %207 = vmatprep.mubr.bf16.mxu0 0
    %208 = vmatmul.mubr.bf16.gmra.mrb[0].mxu0 %v110
    %v209 = vpop.f32.mrb[0].mxu0
    %v210 = vadd.f32 0.0, %v209
    %v211 = vpop.f32.mrb[0].mxu0
    %v212 = vpop.f32.mrb[0].mxu0
    %v213 = vadd.f32 0.0, %v212
    %v214 = vpop.f32.mrb[0].mxu0
    %215 = vdwg.mxu0
    %v216 = vadd.f32 %v108, %v210
    %v217 = vadd.f32 %v109, %v213
    %218 = vst.msk [vmem:[#allocation2] sm:$0xff] %vm61, %v216
    %219 = vst.msk [vmem:[#allocation2 + $0x8] sm:$0xff] %vm61, %v217
    // Predicated region
    $region34: #{run.11} parent=1 // pred_check
      %p220 = pneg %p28
    $region35: #{run.11} parent=1 // pred_check_branch
      %222 = sbr.rel (%p220) target = $region37
    $region36: #{run.11} parent=1 // pred_region
      %v223 = vld [vmem:[#allocation2] sm:$0xff]
      %v224 = vld [vmem:[#allocation2 + $0x8] sm:$0xff]
      %v225 = vld [vmem:[%s4] sm:$0x1]
      %v227 = vlaneseq
      %v228 = vshrl.u32 %v227, 7
      %v229 = vsub.s32 0, %v228
      %v230 = vrot.slane %v225, %v229
      %v232 = vadd.f32 %v223, %v230
      %v233 = vadd.f32 %v224, %v230
      %v234 = vadd.f32 %v232, %v35
      %v235 = vadd.f32 %v233, %v36
      %v236 = vld [vmem:[%s5] sm:$0x1]
      %v237 = vld [vmem:[%s6] sm:$0x1]
      %v238 = vsel %vm61, %v234, 0.0
      %239 = vadd.xlane.f32.xlu0 %v238
      %v240 = vpop.xlane.xlu0 %239
      %v241 = vsel %vm61, %v235, 0.0
      %242 = vadd.xlane.f32.xlu0 %v241
      %v243 = vpop.xlane.xlu0 %242
      %v244 = vrcp.pop 32.0
      %v245 = vmul.f32 %v240, %v244
      %v246 = vmul.f32 %v243, %v244
      %v247 = vsub.f32 %v234, %v245
      %v248 = vsub.f32 %v235, %v246
      %v249 = vmul.f32 %v247, %v247
      %v250 = vmul.f32 %v248, %v248
      %v251 = vsel %vm61, %v249, 0.0
      %252 = vadd.xlane.f32.xlu0 %v251
      %v253 = vpop.xlane.xlu0 %252
      %v254 = vsel %vm61, %v250, 0.0
      %255 = vadd.xlane.f32.xlu0 %v254
      %v256 = vpop.xlane.xlu0 %255
      %v257 = vmul.f32 %v253, %v244
      %v258 = vmul.f32 %v256, %v244
      %v259 = vadd.f32 %v257, 1e-05
      %v260 = vadd.f32 %v258, 1e-05
      %v261 = vrsqrt.pop %v259
      %v262 = vrsqrt.pop %v260
      %v263 = vmul.f32 %v247, %v261
      %v264 = vmul.f32 %v248, %v262
      %v266 = vlaneseq
      %v267 = vshrl.u32 %v266, 7
      %v268 = vsub.s32 0, %v267
      %v269 = vrot.slane %v236, %v268
      %v271 = vmul.f32 %v263, %v269
      %v272 = vmul.f32 %v264, %v269
      %v274 = vlaneseq
      %v275 = vshrl.u32 %v274, 7
      %v276 = vsub.s32 0, %v275
      %v277 = vrot.slane %v237, %v276
      %v279 = vadd.f32 %v271, %v277
      %v280 = vadd.f32 %v272, %v277
      %281 = vst.msk [vmem:[#allocation3] sm:$0xff] %vm61, %v279
      %282 = vst.msk [vmem:[#allocation3 + $0x8] sm:$0xff] %vm61, %v280
    $region37: #{run.11} parent=1 // pred_fallthru
      _
    // Predicated region
    $region38: #{run.11} parent=1 // pred_check
      _
    $region39: #{run.11} parent=1 // pred_check_branch
      %284 = sbr.rel (0) target = $region41
    $region40: #{run.11} parent=1 // pred_region
      %s286 = ssub.s32 256, 256
      %287 = vsyncadd [#allocation4], %s286
      %s288 = sshll.u32 [#allocation3], 4
      %s289 = int_to_ptr.vmem [resolvable:$true] %s288
      %294 = dma.vmem_to_hbm [thread:$0]  %s289, 256, %s7, [#allocation4], 128, 128, 8
    $region41: #{run.11} parent=1 // pred_fallthru
      _
    // Predicated region
    $region42: #{run.11} parent=1 // pred_check
      _
    $region43: #{run.11} parent=1 // pred_check_branch
      %296 = sbr.rel (0) target = $region45
    $region44: #{run.11} parent=1 // pred_region
      %297 = dma.done [#allocation4], 256
    $region45: #{run.11} parent=1 // pred_fallthru
      _
    %298 = vsyncpa [#allocation4], 1

// kernel: run.7
$region0: #{run.7}
  #allocation0 [shape = 'u32[]', space=smem, size = 0x4, offset = 0x4, fixed_abs, tag = 'smem constant byte address 0x4 - core index']
  #allocation1 [shape = 'u32[144,128]{1,0:T(1,128)}', space=vmem, size = 0x12000, scoped, tag = 'internal scratch']
  #allocation2 [shape = 'f32[8,32]{1,0:T(8,128)}', space=vmem, size = 0x1000, scoped, tag = 'scratch operand']
  %s0 = inlined_call_operand.vmem [shape: bf16[2,8,32], index: 0, kind: input, shape index: {}]
  %s1 = inlined_call_operand.vmem [shape: bf16[2,8,32], index: 1, kind: input, shape index: {}]
  %s2 = inlined_call_operand.vmem [shape: bf16[2,8,32], index: 2, kind: input, shape index: {}]
  %s3 = inlined_call_operand.vmem [shape: f32[2,8,32], index: 3, kind: input, shape index: {}]
  %s4 = inlined_call_operand.vmem [shape: s32[2,1,8], index: 4, kind: input, shape index: {}]
  %s5 = inlined_call_operand.vmem [shape: bf16[9,8], index: 5, kind: input, shape index: {}]
  %s6 = inlined_call_operand.vmem [shape: bf16[32,32], index: 6, kind: input, shape index: {}]
  %s7 = inlined_call_operand.vmem [shape: f32[1,32], index: 7, kind: input, shape index: {}]
  %s8 = inlined_call_operand.vmem [shape: f32[1,32], index: 8, kind: input, shape index: {}]
  %s9 = inlined_call_operand.vmem [shape: f32[1,32], index: 9, kind: input, shape index: {}]
  %s10 = inlined_call_operand.vmem [shape: f32[2,8,32], index: 10, kind: output, shape index: {}]
  %s11 = sld [smem:[#allocation0]]
  $region73: #{run.7} parent=0
    _
  %s13 = ssub.s32 1, %s11
  %s14 = scalar_select 0, %s13, %s11
  loop: start=0, step=1, limit=4
  $region2: #{run.7} parent=0 // loop_pre_header
    _
  $region3: #{run.7} parent=0 // loop_header
    %s16 = sphi 0, %s20
    %p17 = scmp.ge.s32.totalorder %s16, 4
    %s23 = sphi 0, %s35
    %s24 = sphi 0, %s31
    %s25 = sphi 0, %s23
    %s26 = sphi 0, %s24
    %s27 = sphi 0, %s25
    %s28 = sphi 0, %s26
    %s40 = sphi 0, %s42
    %s43 = sphi 0, %s40
    %s44 = sphi 0, %s43
    %s60 = sphi 0, %s44
    %s66 = sphi 0, %s68
    %s69 = sphi 0, %s66
    %s70 = sphi 0, %s69
    %s86 = sphi 0, %s70
    %s92 = sphi 0, %s94
    %s95 = sphi 0, %s92
    %s96 = sphi 0, %s95
    %s112 = sphi 0, %s96
    %s120 = sphi 0, %s122
    %s123 = sphi 0, %s120
    %s124 = sphi 0, %s123
    %s140 = sphi 0, %s124
    %s146 = sphi 0, %s148
    %s149 = sphi 0, %s146
    %s150 = sphi 0, %s149
    %s166 = sphi 0, %s150
    %s170 = sphi 0, %s170
    %s172 = sphi 0, %s170
    %s173 = sphi 0, %s172
    %s187 = sphi 0, %s173
    %s191 = sphi 0, %s191
    %s193 = sphi 0, %s191
    %s194 = sphi 0, %s193
    %s208 = sphi 0, %s194
    %s212 = sphi 0, %s212
    %s214 = sphi 0, %s212
    %s215 = sphi 0, %s214
    %s229 = sphi 0, %s215
    %s233 = sphi 0, %s233
    %s235 = sphi 0, %s233
    %s236 = sphi 0, %s235
    %s250 = sphi 0, %s236
    %s254 = sphi 0, %s254
    %s256 = sphi 0, %s254
    %s257 = sphi 0, %s256
    %s271 = sphi 0, %s257
    %s279 = sphi 0, %s281
    %s282 = sphi 0, %s279
    %s283 = sphi 0, %s282
    %s299 = sphi 0, %s283
  $region4: #{run.7} parent=0 // loop_header_branch
    %19 = sbr.rel (%p17) target = $region8
  $region5: #{run.7} parent=0 // loop_body
    %s21 = ssub.s32 %s16, 1
    %s22 = ssub.s32 %s16, 2
    %s29 = sadd.s32 1, %s24
    %p30 = scmp.ge.s32.totalorder %s29, 1
    %s31 = scalar_select %p30, 0, %s29
    %s32 = sadd.s32 1, %s23
    %s33 = scalar_select %p30, %s32, %s23
    %p34 = scmp.ge.s32.totalorder %s33, 2
    %s35 = scalar_select %p34, 0, %s33
    %s36 = ssub.s32 %s23, %s35
    %s37 = ssub.s32 %s24, %s31
    %s38 = sor.u32 %s36, %s37
    %p39 = scmp.eq.s32.totalorder %s38, 0
    %s41 = sadd.s32 %s40, 1
    %s42 = scalar_select %p39, %s40, %s41
    %p45 = pneg %p39
    %p46 = scmp.eq.s32.totalorder %s16, 1
    %p47 = por %p45, %p46
    %p48 = scmp.ne.s32.totalorder %s40, %s43
    %p49 = scmp.eq.s32.totalorder %s16, 0
    %p50 = por %p48, %p49
    %p51 = scmp.ne.s32.totalorder %s40, %s43
    %p52 = scmp.eq.s32.totalorder %s21, 1
    %p53 = por %p51, %p52
    %p54 = scmp.ne.s32.totalorder %s43, %s44
    %p55 = scmp.eq.s32.totalorder %s21, 0
    %p56 = por %p54, %p55
    %p57 = scmp.ne.s32.totalorder %s43, %s44
    %p58 = scmp.eq.s32.totalorder %s22, 1
    %p59 = por %p57, %p58
    %p61 = scmp.ne.s32.totalorder %s44, %s60
    %p62 = scmp.eq.s32.totalorder %s22, 0
    %p63 = por %p61, %p62
    %s64 = ssub.s32 %s23, %s35
    %p65 = scmp.eq.s32.totalorder %s64, 0
    %s67 = sadd.s32 %s66, 1
    %s68 = scalar_select %p65, %s66, %s67
    %p71 = pneg %p65
    %p72 = scmp.eq.s32.totalorder %s16, 1
    %p73 = por %p71, %p72
    %p74 = scmp.ne.s32.totalorder %s66, %s69
    %p75 = scmp.eq.s32.totalorder %s16, 0
    %p76 = por %p74, %p75
    %p77 = scmp.ne.s32.totalorder %s66, %s69
    %p78 = scmp.eq.s32.totalorder %s21, 1
    %p79 = por %p77, %p78
    %p80 = scmp.ne.s32.totalorder %s69, %s70
    %p81 = scmp.eq.s32.totalorder %s21, 0
    %p82 = por %p80, %p81
    %p83 = scmp.ne.s32.totalorder %s69, %s70
    %p84 = scmp.eq.s32.totalorder %s22, 1
    %p85 = por %p83, %p84
    %p87 = scmp.ne.s32.totalorder %s70, %s86
    %p88 = scmp.eq.s32.totalorder %s22, 0
    %p89 = por %p87, %p88
    %s90 = ssub.s32 %s23, %s35
    %p91 = scmp.eq.s32.totalorder %s90, 0
    %s93 = sadd.s32 %s92, 1
    %s94 = scalar_select %p91, %s92, %s93
    %p97 = pneg %p91
    %p98 = scmp.eq.s32.totalorder %s16, 1
    %p99 = por %p97, %p98
    %p100 = scmp.ne.s32.totalorder %s92, %s95
    %p101 = scmp.eq.s32.totalorder %s16, 0
    %p102 = por %p100, %p101
    %p103 = scmp.ne.s32.totalorder %s92, %s95
    %p104 = scmp.eq.s32.totalorder %s21, 1
    %p105 = por %p103, %p104
    %p106 = scmp.ne.s32.totalorder %s95, %s96
    %p107 = scmp.eq.s32.totalorder %s21, 0
    %p108 = por %p106, %p107
    %p109 = scmp.ne.s32.totalorder %s95, %s96
    %p110 = scmp.eq.s32.totalorder %s22, 1
    %p111 = por %p109, %p110
    %p113 = scmp.ne.s32.totalorder %s96, %s112
    %p114 = scmp.eq.s32.totalorder %s22, 0
    %p115 = por %p113, %p114
    %s116 = ssub.s32 %s23, %s35
    %s117 = ssub.s32 %s24, %s31
    %s118 = sor.u32 %s116, %s117
    %p119 = scmp.eq.s32.totalorder %s118, 0
    %s121 = sadd.s32 %s120, 1
    %s122 = scalar_select %p119, %s120, %s121
    %p125 = pneg %p119
    %p126 = scmp.eq.s32.totalorder %s16, 1
    %p127 = por %p125, %p126
    %p128 = scmp.ne.s32.totalorder %s120, %s123
    %p129 = scmp.eq.s32.totalorder %s16, 0
    %p130 = por %p128, %p129
    %p131 = scmp.ne.s32.totalorder %s120, %s123
    %p132 = scmp.eq.s32.totalorder %s21, 1
    %p133 = por %p131, %p132
    %p134 = scmp.ne.s32.totalorder %s123, %s124
    %p135 = scmp.eq.s32.totalorder %s21, 0
    %p136 = por %p134, %p135
    %p137 = scmp.ne.s32.totalorder %s123, %s124
    %p138 = scmp.eq.s32.totalorder %s22, 1
    %p139 = por %p137, %p138
    %p141 = scmp.ne.s32.totalorder %s124, %s140
    %p142 = scmp.eq.s32.totalorder %s22, 0
    %p143 = por %p141, %p142
    %s144 = ssub.s32 %s23, %s35
    %p145 = scmp.eq.s32.totalorder %s144, 0
    %s147 = sadd.s32 %s146, 1
    %s148 = scalar_select %p145, %s146, %s147
    %p151 = pneg %p145
    %p152 = scmp.eq.s32.totalorder %s16, 1
    %p153 = por %p151, %p152
    %p154 = scmp.ne.s32.totalorder %s146, %s149
    %p155 = scmp.eq.s32.totalorder %s16, 0
    %p156 = por %p154, %p155
    %p157 = scmp.ne.s32.totalorder %s146, %s149
    %p158 = scmp.eq.s32.totalorder %s21, 1
    %p159 = por %p157, %p158
    %p160 = scmp.ne.s32.totalorder %s149, %s150
    %p161 = scmp.eq.s32.totalorder %s21, 0
    %p162 = por %p160, %p161
    %p163 = scmp.ne.s32.totalorder %s149, %s150
    %p164 = scmp.eq.s32.totalorder %s22, 1
    %p165 = por %p163, %p164
    %p167 = scmp.ne.s32.totalorder %s150, %s166
    %p168 = scmp.eq.s32.totalorder %s22, 0
    %p169 = por %p167, %p168
    %s171 = sadd.s32 %s170, 1
    %p174 = scmp.eq.s32.totalorder %s16, 1
    %p175 = scmp.ne.s32.totalorder %s170, %s172
    %p176 = scmp.eq.s32.totalorder %s16, 0
    %p177 = por %p175, %p176
    %p178 = scmp.ne.s32.totalorder %s170, %s172
    %p179 = scmp.eq.s32.totalorder %s21, 1
    %p180 = por %p178, %p179
    %p181 = scmp.ne.s32.totalorder %s172, %s173
    %p182 = scmp.eq.s32.totalorder %s21, 0
    %p183 = por %p181, %p182
    %p184 = scmp.ne.s32.totalorder %s172, %s173
    %p185 = scmp.eq.s32.totalorder %s22, 1
    %p186 = por %p184, %p185
    %p188 = scmp.ne.s32.totalorder %s173, %s187
    %p189 = scmp.eq.s32.totalorder %s22, 0
    %p190 = por %p188, %p189
    %s192 = sadd.s32 %s191, 1
    %p195 = scmp.eq.s32.totalorder %s16, 1
    %p196 = scmp.ne.s32.totalorder %s191, %s193
    %p197 = scmp.eq.s32.totalorder %s16, 0
    %p198 = por %p196, %p197
    %p199 = scmp.ne.s32.totalorder %s191, %s193
    %p200 = scmp.eq.s32.totalorder %s21, 1
    %p201 = por %p199, %p200
    %p202 = scmp.ne.s32.totalorder %s193, %s194
    %p203 = scmp.eq.s32.totalorder %s21, 0
    %p204 = por %p202, %p203
    %p205 = scmp.ne.s32.totalorder %s193, %s194
    %p206 = scmp.eq.s32.totalorder %s22, 1
    %p207 = por %p205, %p206
    %p209 = scmp.ne.s32.totalorder %s194, %s208
    %p210 = scmp.eq.s32.totalorder %s22, 0
    %p211 = por %p209, %p210
    %s213 = sadd.s32 %s212, 1
    %p216 = scmp.eq.s32.totalorder %s16, 1
    %p217 = scmp.ne.s32.totalorder %s212, %s214
    %p218 = scmp.eq.s32.totalorder %s16, 0
    %p219 = por %p217, %p218
    %p220 = scmp.ne.s32.totalorder %s212, %s214
    %p221 = scmp.eq.s32.totalorder %s21, 1
    %p222 = por %p220, %p221
    %p223 = scmp.ne.s32.totalorder %s214, %s215
    %p224 = scmp.eq.s32.totalorder %s21, 0
    %p225 = por %p223, %p224
    %p226 = scmp.ne.s32.totalorder %s214, %s215
    %p227 = scmp.eq.s32.totalorder %s22, 1
    %p228 = por %p226, %p227
    %p230 = scmp.ne.s32.totalorder %s215, %s229
    %p231 = scmp.eq.s32.totalorder %s22, 0
    %p232 = por %p230, %p231
    %s234 = sadd.s32 %s233, 1
    %p237 = scmp.eq.s32.totalorder %s16, 1
    %p238 = scmp.ne.s32.totalorder %s233, %s235
    %p239 = scmp.eq.s32.totalorder %s16, 0
    %p240 = por %p238, %p239
    %p241 = scmp.ne.s32.totalorder %s233, %s235
    %p242 = scmp.eq.s32.totalorder %s21, 1
    %p243 = por %p241, %p242
    %p244 = scmp.ne.s32.totalorder %s235, %s236
    %p245 = scmp.eq.s32.totalorder %s21, 0
    %p246 = por %p244, %p245
    %p247 = scmp.ne.s32.totalorder %s235, %s236
    %p248 = scmp.eq.s32.totalorder %s22, 1
    %p249 = por %p247, %p248
    %p251 = scmp.ne.s32.totalorder %s236, %s250
    %p252 = scmp.eq.s32.totalorder %s22, 0
    %p253 = por %p251, %p252
    %s255 = sadd.s32 %s254, 1
    %p258 = scmp.eq.s32.totalorder %s16, 1
    %p259 = scmp.ne.s32.totalorder %s254, %s256
    %p260 = scmp.eq.s32.totalorder %s16, 0
    %p261 = por %p259, %p260
    %p262 = scmp.ne.s32.totalorder %s254, %s256
    %p263 = scmp.eq.s32.totalorder %s21, 1
    %p264 = por %p262, %p263
    %p265 = scmp.ne.s32.totalorder %s256, %s257
    %p266 = scmp.eq.s32.totalorder %s21, 0
    %p267 = por %p265, %p266
    %p268 = scmp.ne.s32.totalorder %s256, %s257
    %p269 = scmp.eq.s32.totalorder %s22, 1
    %p270 = por %p268, %p269
    %p272 = scmp.ne.s32.totalorder %s257, %s271
    %p273 = scmp.eq.s32.totalorder %s22, 0
    %p274 = por %p272, %p273
    %s275 = ssub.s32 %s23, %s35
    %s276 = ssub.s32 %s24, %s31
    %s277 = sor.u32 %s275, %s276
    %p278 = scmp.eq.s32.totalorder %s277, 0
    %s280 = sadd.s32 %s279, 1
    %s281 = scalar_select %p278, %s279, %s280
    %p284 = pneg %p278
    %p285 = scmp.eq.s32.totalorder %s16, 1
    %p286 = por %p284, %p285
    %p287 = scmp.ne.s32.totalorder %s279, %s282
    %p288 = scmp.eq.s32.totalorder %s16, 0
    %p289 = por %p287, %p288
    %p290 = scmp.ne.s32.totalorder %s279, %s282
    %p291 = scmp.eq.s32.totalorder %s21, 1
    %p292 = por %p290, %p291
    %p293 = scmp.ne.s32.totalorder %s282, %s283
    %p294 = scmp.eq.s32.totalorder %s21, 0
    %p295 = por %p293, %p294
    %p296 = scmp.ne.s32.totalorder %s282, %s283
    %p297 = scmp.eq.s32.totalorder %s22, 1
    %p298 = por %p296, %p297
    %p300 = scmp.ne.s32.totalorder %s283, %s299
    %p301 = scmp.eq.s32.totalorder %s22, 0
    %p302 = por %p300, %p301
    %p303 = scmp.le.s32.totalorder 1, %s16
    %p304 = scmp.lt.s32.totalorder %s16, 3
    %p305 = pnand %p303, %p304
    %p306 = pneg %p305
    // Predicated region
    $region9: #{run.7} parent=5 // pred_check
      _
    $region10: #{run.7} parent=5 // pred_check_branch
      %308 = sbr.rel (%p305) target = $region12
    $region11: #{run.7} parent=5 // pred_region
      %s309 = ssub.s32 %s16, 1
      // Predicated region
      $region13: #{run.7} parent=11 // pred_check
        %p310 = pneg %p183
      $region14: #{run.7} parent=11 // pred_check_branch
        %312 = sbr.rel (%p310) target = $region16
      $region15: #{run.7} parent=11 // pred_region
        _
      $region16: #{run.7} parent=11 // pred_fallthru
        _
      // Predicated region
      $region17: #{run.7} parent=11 // pred_check
        %p313 = pneg %p204
      $region18: #{run.7} parent=11 // pred_check_branch
        %315 = sbr.rel (%p313) target = $region20
      $region19: #{run.7} parent=11 // pred_region
        _
      $region20: #{run.7} parent=11 // pred_fallthru
        _
      // Predicated region
      $region21: #{run.7} parent=11 // pred_check
        %p316 = pneg %p225
      $region22: #{run.7} parent=11 // pred_check_branch
        %318 = sbr.rel (%p316) target = $region24
      $region23: #{run.7} parent=11 // pred_region
        _
      $region24: #{run.7} parent=11 // pred_fallthru
        _
      // Predicated region
      $region25: #{run.7} parent=11 // pred_check
        %p319 = pneg %p246
      $region26: #{run.7} parent=11 // pred_check_branch
        %321 = sbr.rel (%p319) target = $region28
      $region27: #{run.7} parent=11 // pred_region
        _
      $region28: #{run.7} parent=11 // pred_fallthru
        _
      // Predicated region
      $region29: #{run.7} parent=11 // pred_check
        %p322 = pneg %p267
      $region30: #{run.7} parent=11 // pred_check_branch
        %324 = sbr.rel (%p322) target = $region32
      $region31: #{run.7} parent=11 // pred_region
        _
      $region32: #{run.7} parent=11 // pred_fallthru
        _
    $region12: #{run.7} parent=5 // pred_fallthru
      _
    %p325 = scmp.lt.s32.totalorder %s16, 2
    // Predicated region
    $region33: #{run.7} parent=5 // pred_check
      %p326 = pneg %p325
    $region34: #{run.7} parent=5 // pred_check_branch
      %328 = sbr.rel (%p326) target = $region36
    $region35: #{run.7} parent=5 // pred_region
      // Predicated region
      $region37: #{run.7} parent=35 // pred_check
        %p329 = pneg %p50
      $region38: #{run.7} parent=35 // pred_check_branch
        %331 = sbr.rel (%p329) target = $region40
      $region39: #{run.7} parent=35 // pred_region
        %p332 = scmp.lt.s32.totalorder %s23, 1
        %s333 = scalar_select %p332, %s23, 1
        %p334 = scmp.lt.s32.totalorder %s24, 0
        %s335 = scalar_select %p334, %s24, 0
        %s336 = sadd.s32 %s335, %s333
        %s337 = smul.addr %s336, 4
        %s338 = scalar_lea.vmem %s0, %s337
      $region40: #{run.7} parent=35 // pred_fallthru
        _
      // Predicated region
      $region41: #{run.7} parent=35 // pred_check
        %p339 = pneg %p76
      $region42: #{run.7} parent=35 // pred_check_branch
        %341 = sbr.rel (%p339) target = $region44
      $region43: #{run.7} parent=35 // pred_region
        %p342 = scmp.lt.s32.totalorder %s23, 1
        %s343 = scalar_select %p342, %s23, 1
        %s344 = smul.addr %s343, 4
        %s345 = scalar_lea.vmem %s1, %s344
      $region44: #{run.7} parent=35 // pred_fallthru
        _
      // Predicated region
      $region45: #{run.7} parent=35 // pred_check
        %p346 = pneg %p102
      $region46: #{run.7} parent=35 // pred_check_branch
        %348 = sbr.rel (%p346) target = $region48
      $region47: #{run.7} parent=35 // pred_region
        %p349 = scmp.lt.s32.totalorder %s23, 1
        %s350 = scalar_select %p349, %s23, 1
        %s351 = smul.addr %s350, 4
        %s352 = scalar_lea.vmem %s2, %s351
      $region48: #{run.7} parent=35 // pred_fallthru
        _
      // Predicated region
      $region49: #{run.7} parent=35 // pred_check
        %p353 = pneg %p130
      $region50: #{run.7} parent=35 // pred_check_branch
        %355 = sbr.rel (%p353) target = $region52
      $region51: #{run.7} parent=35 // pred_region
        %p356 = scmp.lt.s32.totalorder %s23, 1
        %s357 = scalar_select %p356, %s23, 1
        %p358 = scmp.lt.s32.totalorder %s24, 0
        %s359 = scalar_select %p358, %s24, 0
        %s360 = sadd.s32 %s359, %s357
        %s361 = smul.addr %s360, 8
        %s362 = scalar_lea.vmem %s3, %s361
      $region52: #{run.7} parent=35 // pred_fallthru
        _
      // Predicated region
      $region53: #{run.7} parent=35 // pred_check
        %p363 = pneg %p156
      $region54: #{run.7} parent=35 // pred_check_branch
        %365 = sbr.rel (%p363) target = $region56
      $region55: #{run.7} parent=35 // pred_region
        %p366 = scmp.lt.s32.totalorder %s23, 1
        %s367 = scalar_select %p366, %s23, 1
        %s368 = scalar_lea.vmem %s4, %s367
      $region56: #{run.7} parent=35 // pred_fallthru
        _
    $region36: #{run.7} parent=5 // pred_fallthru
      _
    %p369 = scmp.le.s32.totalorder 1, %s16
    %p370 = scmp.lt.s32.totalorder %s16, 3
    %p371 = pnand %p369, %p370
    %p372 = pneg %p371
    // Predicated region
    $region57: #{run.7} parent=5 // pred_check
      _
    $region58: #{run.7} parent=5 // pred_check_branch
      %374 = sbr.rel (%p371) target = $region60
    $region59: #{run.7} parent=5 // pred_region
      %s375 = ssub.s32 %s16, 1
      %p376 = scmp.lt.s32.totalorder %s25, 1
      %s377 = scalar_select %p376, %s25, 1
      %p378 = scmp.lt.s32.totalorder %s26, 0
      %s379 = scalar_select %p378, %s26, 0
      %s380 = sadd.s32 %s379, %s377
      %s381 = smul.addr %s380, 4
      %s382 = scalar_lea.vmem %s0, %s381
      %p383 = pneg %p56
      %p384 = pneg %p53
      %p385 = scmp.lt.s32.totalorder %s25, 1
      %s386 = scalar_select %p385, %s25, 1
      %s387 = smul.addr %s386, 4
      %s388 = scalar_lea.vmem %s1, %s387
      %p389 = pneg %p82
      %p390 = pneg %p79
      %p391 = scmp.lt.s32.totalorder %s25, 1
      %s392 = scalar_select %p391, %s25, 1
      %s393 = smul.addr %s392, 4
      %s394 = scalar_lea.vmem %s2, %s393
      %p395 = pneg %p108
      %p396 = pneg %p105
      %p397 = scmp.lt.s32.totalorder %s25, 1
      %s398 = scalar_select %p397, %s25, 1
      %p399 = scmp.lt.s32.totalorder %s26, 0
      %s400 = scalar_select %p399, %s26, 0
      %s401 = sadd.s32 %s400, %s398
      %s402 = smul.addr %s401, 8
      %s403 = scalar_lea.vmem %s3, %s402
      %p404 = pneg %p136
      %p405 = pneg %p133
      %p406 = scmp.lt.s32.totalorder %s25, 1
      %s407 = scalar_select %p406, %s25, 1
      %s408 = scalar_lea.vmem %s4, %s407
      %p409 = pneg %p162
      %p410 = pneg %p159
      %p411 = pneg %p183
      %p412 = pneg %p180
      %p413 = pneg %p204
      %p414 = pneg %p201
      %p415 = pneg %p225
      %p416 = pneg %p222
      %p417 = pneg %p246
      %p418 = pneg %p243
      %p419 = pneg %p267
      %p420 = pneg %p264
      %p421 = pneg %p295
      %p422 = pneg %p292
      %p423 = scmp.lt.s32.totalorder %s25, 1
      %s424 = scalar_select %p423, %s25, 1
      %p425 = scmp.lt.s32.totalorder %s26, 0
      %s426 = scalar_select %p425, %s26, 0
      %s427 = sadd.s32 %s426, %s424
      %s428 = smul.addr %s427, 8
      %s429 = scalar_lea.vmem %s10, %s428
      %p430 = scmp.lt.s32.totalorder %s25, 1
      %s431 = scalar_select %p430, %s25, 1
      %p432 = scmp.lt.s32.totalorder %s26, 0
      %s433 = scalar_select %p432, %s26, 0
      %s434 = sadd.s32 %s433, %s431
      %s435 = smul.addr %s434, 4
      %s436 = scalar_lea.vmem %s0, %s435
      %p437 = scmp.lt.s32.totalorder %s25, 1
      %s438 = scalar_select %p437, %s25, 1
      %s439 = smul.addr %s438, 4
      %s440 = scalar_lea.vmem %s1, %s439
      %p441 = scmp.lt.s32.totalorder %s25, 1
      %s442 = scalar_select %p441, %s25, 1
      %s443 = smul.addr %s442, 4
      %s444 = scalar_lea.vmem %s2, %s443
      %p445 = scmp.lt.s32.totalorder %s25, 1
      %s446 = scalar_select %p445, %s25, 1
      %p447 = scmp.lt.s32.totalorder %s26, 0
      %s448 = scalar_select %p447, %s26, 0
      %s449 = sadd.s32 %s448, %s446
      %s450 = smul.addr %s449, 8
      %s451 = scalar_lea.vmem %s3, %s450
      %p452 = scmp.lt.s32.totalorder %s25, 1
      %s453 = scalar_select %p452, %s25, 1
      %s454 = scalar_lea.vmem %s4, %s453
      %p455 = scmp.lt.s32.totalorder %s25, 1
      %s456 = scalar_select %p455, %s25, 1
      %p457 = scmp.lt.s32.totalorder %s26, 0
      %s458 = scalar_select %p457, %s26, 0
      %s459 = sadd.s32 %s458, %s456
      %s460 = smul.addr %s459, 8
      %s461 = scalar_lea.vmem %s10, %s460
      %v463 = vld [vmem:[%s436] sm:$0xf]
      %v464 = vld [vmem:[%s440] sm:$0xf]
      %v465 = vld [vmem:[%s444] sm:$0xf]
      %v466 = vld [vmem:[%s5] sm:$0xf]
      %v467 = vld [vmem:[%s5 + $0x4] sm:$0x1]
      %s468 = smul.u32 %s26, 8
      %v469 = vlaneseq
      %v470 = vshrl.u32 %v469, 7
      %v471 = vstv %s468
      %v472 = vadd.s32 %v470, %v471
      %v473 = vlaneseq
      %v474 = vand.u32 %v473, 127
      %v475 = vsub.s32 %v474, %v472
      %vm476 = vcmp.gt.s32.totalorder %v475, 4294967292
      %v477 = vsel %vm476, %v475, 4294967292
      %vm478 = vcmp.lt.s32.totalorder %v477, 4
      %v479 = vsel %vm478, %v477, 4
      %v480 = vadd.s32 %v479, 4
      %vm481 = vcmp.eq.s32.totalorder %v480, 0
      %vm482 = vcmp.eq.s32.totalorder %v480, 1
      %vm483 = vcmp.eq.s32.totalorder %v480, 2
      %vm484 = vcmp.eq.s32.totalorder %v480, 3
      %vm485 = vcmp.eq.s32.totalorder %v480, 4
      %vm486 = vcmp.eq.s32.totalorder %v480, 5
      %vm487 = vcmp.eq.s32.totalorder %v480, 6
      %vm488 = vcmp.eq.s32.totalorder %v480, 7
      %vm489 = vcmp.eq.s32.totalorder %v480, 8
      %v490 = vld [vmem:[%s454] sm:$0x1]
      %vm491 = vcmp.gt.s32.totalorder %v490, 0
      %v492 = vsel %vm491, -1e+30, 0.0
      %v495 = vunpack.c.l.b16 %v466
      %v496 = vunpack.c.l.b16 %v467
      %v497 = vpack.c.b16 %v496, %v495
      %vm498 = vcmask 64512
      %v500 = vsel %vm498, %v463, 0
      %v503 = vsel %vm498, %v497, 0
      %505 = vmatprep.subr.bf16.mxu0 0
      %506 = vmatpush1.bf16.xpose.msra.mxu0 %v503
      %507 = vmatprep.subr.bf16.mxu0 0
      %508 = vmatpush1.bf16.xpose.msra.mxu0 0
      %509 = vmatprep.subr.bf16.mxu0 0
      %510 = vmatpush1.bf16.xpose.msra.mxu0 0
      %511 = vmatprep.subr.bf16.mxu0 0
      %512 = vmatpush1.bf16.xpose.msra.mxu0 0
      %513 = vmatprep.subr.bf16.mxu0 0
      %514 = vmatpush1.bf16.xpose.msra.mxu0 0
      %515 = vmatprep.subr.bf16.mxu0 0
      %516 = vmatpush1.bf16.xpose.msra.mxu0 0
      %517 = vmatprep.subr.bf16.mxu0 0
      %518 = vmatpush1.bf16.xpose.msra.mxu0 0
      %519 = vmatprep.subr.bf16.mxu0 0
      %520 = vmatpush1.bf16.xpose.msra.mxu0 0
      %521 = vmatprep.subr.bf16.mxu0 0
      %522 = vmatpush1.bf16.xpose.msra.mxu0 0
      %523 = vmatprep.subr.bf16.mxu0 0
      %524 = vmatpush1.bf16.xpose.msra.mxu0 0
      %525 = vmatprep.subr.bf16.mxu0 0
      %526 = vmatpush1.bf16.xpose.msra.mxu0 0
      %527 = vmatprep.subr.bf16.mxu0 0
      %528 = vmatpush1.bf16.xpose.msra.mxu0 0
      %529 = vmatprep.subr.bf16.mxu0 0
      %530 = vmatpush1.bf16.xpose.msra.mxu0 0
      %531 = vmatprep.subr.bf16.mxu0 0
      %532 = vmatpush1.bf16.xpose.msra.mxu0 0
      %533 = vmatprep.subr.bf16.mxu0 0
      %534 = vmatpush1.bf16.xpose.msra.mxu0 0
      %535 = vmatprep.subr.bf16.mxu0 0
      %536 = vmatpush1.bf16.xpose.msra.mxu0 0
      %537 = vmatprep.mubr.bf16.mxu0 0
      %538 = vmatmul.mubr.bf16.gmra.mrb[0].mxu0 %v500
      %v539 = vpop.f32.mrb[0].mxu0
      %v540 = vadd.f32 0.0, %v539
      %v541 = vpop.f32.mrb[0].mxu0
      %v542 = vpop.f32.mrb[0].mxu0
      %v543 = vpop.f32.mrb[0].mxu0
      %544 = vdwg.mxu0
      %546 = vset.pattern.permute.xlu0 0
      %547 = vperm.xlu0 %546, %v540
      %v548 = vpop.permute.xlu0 %547
      %v550 = vsel %vm481, %v548, 0.0
      %v551 = vadd.f32 %v550, 0.0
      %552 = vset.pattern.permute.xlu0 1
      %553 = vperm.xlu0 %552, %v540
      %v554 = vpop.permute.xlu0 %553
      %v556 = vsel %vm482, %v554, 0.0
      %v557 = vadd.f32 %v551, %v556
      %558 = vset.pattern.permute.xlu0 2
      %559 = vperm.xlu0 %558, %v540
      %v560 = vpop.permute.xlu0 %559
      %v562 = vsel %vm483, %v560, 0.0
      %v563 = vadd.f32 %v557, %v562
      %564 = vset.pattern.permute.xlu0 3
      %565 = vperm.xlu0 %564, %v540
      %v566 = vpop.permute.xlu0 %565
      %v568 = vsel %vm484, %v566, 0.0
      %v569 = vadd.f32 %v563, %v568
      %570 = vset.pattern.permute.xlu0 4
      %571 = vperm.xlu0 %570, %v540
      %v572 = vpop.permute.xlu0 %571
      %v574 = vsel %vm485, %v572, 0.0
      %v575 = vadd.f32 %v569, %v574
      %576 = vset.pattern.permute.xlu0 5
      %577 = vperm.xlu0 %576, %v540
      %v578 = vpop.permute.xlu0 %577
      %v580 = vsel %vm486, %v578, 0.0
      %v581 = vadd.f32 %v575, %v580
      %582 = vset.pattern.permute.xlu0 6
      %583 = vperm.xlu0 %582, %v540
      %v584 = vpop.permute.xlu0 %583
      %v586 = vsel %vm487, %v584, 0.0
      %v587 = vadd.f32 %v581, %v586
      %588 = vset.pattern.permute.xlu0 7
      %589 = vperm.xlu0 %588, %v540
      %v590 = vpop.permute.xlu0 %589
      %v592 = vsel %vm488, %v590, 0.0
      %v593 = vadd.f32 %v587, %v592
      %594 = vset.pattern.permute.xlu0 8
      %595 = vperm.xlu0 %594, %v540
      %v596 = vpop.permute.xlu0 %595
      %v598 = vsel %vm489, %v596, 0.0
      %v599 = vadd.f32 %v593, %v598
      %v601 = vsel %vm498, %v464, 0
      %603 = vmatprep.subr.bf16.mxu0 0
      %604 = vmatpush1.bf16.xpose.msra.mxu0 %v601
      %605 = vmatprep.subr.bf16.mxu0 0
      %606 = vmatpush1.bf16.xpose.msra.mxu0 0
      %607 = vmatprep.subr.bf16.mxu0 0
      %608 = vmatpush1.bf16.xpose.msra.mxu0 0
      %609 = vmatprep.subr.bf16.mxu0 0
      %610 = vmatpush1.bf16.xpose.msra.mxu0 0
      %611 = vmatprep.subr.bf16.mxu0 0
      %612 = vmatpush1.bf16.xpose.msra.mxu0 0
      %613 = vmatprep.subr.bf16.mxu0 0
      %614 = vmatpush1.bf16.xpose.msra.mxu0 0
      %615 = vmatprep.subr.bf16.mxu0 0
      %616 = vmatpush1.bf16.xpose.msra.mxu0 0
      %617 = vmatprep.subr.bf16.mxu0 0
      %618 = vmatpush1.bf16.xpose.msra.mxu0 0
      %619 = vmatprep.subr.bf16.mxu0 0
      %620 = vmatpush1.bf16.xpose.msra.mxu0 0
      %621 = vmatprep.subr.bf16.mxu0 0
      %622 = vmatpush1.bf16.xpose.msra.mxu0 0
      %623 = vmatprep.subr.bf16.mxu0 0
      %624 = vmatpush1.bf16.xpose.msra.mxu0 0
      %625 = vmatprep.subr.bf16.mxu0 0
      %626 = vmatpush1.bf16.xpose.msra.mxu0 0
      %627 = vmatprep.subr.bf16.mxu0 0
      %628 = vmatpush1.bf16.xpose.msra.mxu0 0
      %629 = vmatprep.subr.bf16.mxu0 0
      %630 = vmatpush1.bf16.xpose.msra.mxu0 0
      %631 = vmatprep.subr.bf16.mxu0 0
      %632 = vmatpush1.bf16.xpose.msra.mxu0 0
      %633 = vmatprep.subr.bf16.mxu0 0
      %634 = vmatpush1.bf16.xpose.msra.mxu0 0
      %635 = vmatprep.mubr.bf16.mxu0 0
      %636 = vmatmul.mubr.bf16.gmra.mrb[0].mxu0 %v500
      %v637 = vpop.f32.mrb[0].mxu0
      %v638 = vadd.f32 %v599, %v637
      %v639 = vpop.f32.mrb[0].mxu0
      %v640 = vpop.f32.mrb[0].mxu0
      %v641 = vpop.f32.mrb[0].mxu0
      %642 = vdwg.mxu0
      %v643 = vmul.f32 %v638, 0.35355338
      %v645 = vlaneseq
      %v646 = vshrl.u32 %v645, 7
      %v647 = vsub.s32 0, %v646
      %v648 = vrot.slane %v492, %v647
      %v650 = vadd.f32 %v643, %v648
      %v651 = vsel %vm498, %v650, -inf
      %652 = vmax.xlane.f32.xlu0 %v651
      %v653 = vpop.xlane.xlu0 %652
      %v654 = vsub.f32 %v650, %v653
      %v655 = vmul.f32 %v654, 1.442695
      %v656 = vpow.pop %v655
      %v657 = vsel %vm498, %v656, 0.0
      %658 = vadd.xlane.f32.xlu0 %v657
      %v659 = vpop.xlane.xlu0 %658
      %v660 = vrcp.pop %v659
      %v661 = vmul.f32 %v656, %v660
      %v662 = vpack.c.bf16 %v661, %v661
      %v664 = vsel %vm498, %v662, 0
      %vm666 = vcmask 1043456
      %v668 = vsel %vm666, %v465, 0
      %670 = vmatprep.subr.bf16.mxu0 0
      %671 = vmatpush1.bf16.msra.mxu0 %v668
      %672 = vmatprep.subr.bf16.mxu0 0
      %673 = vmatpush1.bf16.msra.mxu0 0
      %674 = vmatprep.subr.bf16.mxu0 0
      %675 = vmatpush1.bf16.msra.mxu0 0
      %676 = vmatprep.subr.bf16.mxu0 0
      %677 = vmatpush1.bf16.msra.mxu0 0
      %678 = vmatprep.subr.bf16.mxu0 0
      %679 = vmatpush1.bf16.msra.mxu0 0
      %680 = vmatprep.subr.bf16.mxu0 0
      %681 = vmatpush1.bf16.msra.mxu0 0
      %682 = vmatprep.subr.bf16.mxu0 0
      %683 = vmatpush1.bf16.msra.mxu0 0
      %684 = vmatprep.subr.bf16.mxu0 0
      %685 = vmatpush1.bf16.msra.mxu0 0
      %686 = vmatprep.subr.bf16.mxu0 0
      %687 = vmatpush1.bf16.msra.mxu0 0
      %688 = vmatprep.subr.bf16.mxu0 0
      %689 = vmatpush1.bf16.msra.mxu0 0
      %690 = vmatprep.subr.bf16.mxu0 0
      %691 = vmatpush1.bf16.msra.mxu0 0
      %692 = vmatprep.subr.bf16.mxu0 0
      %693 = vmatpush1.bf16.msra.mxu0 0
      %694 = vmatprep.subr.bf16.mxu0 0
      %695 = vmatpush1.bf16.msra.mxu0 0
      %696 = vmatprep.subr.bf16.mxu0 0
      %697 = vmatpush1.bf16.msra.mxu0 0
      %698 = vmatprep.subr.bf16.mxu0 0
      %699 = vmatpush1.bf16.msra.mxu0 0
      %700 = vmatprep.subr.bf16.mxu0 0
      %701 = vmatpush1.bf16.msra.mxu0 0
      %702 = vmatprep.mubr.bf16.mxu0 0
      %703 = vmatmul.mubr.bf16.gmra.mrb[0].mxu0 %v664
      %v704 = vpop.f32.mrb[0].mxu0
      %v705 = vadd.f32 0.0, %v704
      %v706 = vpop.f32.mrb[0].mxu0
      %v707 = vpop.f32.mrb[0].mxu0
      %v708 = vpop.f32.mrb[0].mxu0
      %709 = vdwg.mxu0
      %710 = vst.msk [vmem:[#allocation2] sm:$0xff] %vm498, %v705
      %v712 = vunpack.c.l.b16 %v463
      %v713 = vpack.c.b16 %v712, %v712
      %714 = vrot.lane.b32.xlu0 %v713, 120
      %v715 = vpop.permute.xlu0 %714
      %v717 = vsel %vm498, %v715, 0
      %719 = vmatprep.subr.bf16.mxu0 0
      %720 = vmatpush1.bf16.xpose.msra.mxu0 %v503
      %721 = vmatprep.subr.bf16.mxu0 0
      %722 = vmatpush1.bf16.xpose.msra.mxu0 0
      %723 = vmatprep.subr.bf16.mxu0 0
      %724 = vmatpush1.bf16.xpose.msra.mxu0 0
      %725 = vmatprep.subr.bf16.mxu0 0
      %726 = vmatpush1.bf16.xpose.msra.mxu0 0
      %727 = vmatprep.subr.bf16.mxu0 0
      %728 = vmatpush1.bf16.xpose.msra.mxu0 0
      %729 = vmatprep.subr.bf16.mxu0 0
      %730 = vmatpush1.bf16.xpose.msra.mxu0 0
      %731 = vmatprep.subr.bf16.mxu0 0
      %732 = vmatpush1.bf16.xpose.msra.mxu0 0
      %733 = vmatprep.subr.bf16.mxu0 0
      %734 = vmatpush1.bf16.xpose.msra.mxu0 0
      %735 = vmatprep.subr.bf16.mxu0 0
      %736 = vmatpush1.bf16.xpose.msra.mxu0 0
      %737 = vmatprep.subr.bf16.mxu0 0
      %738 = vmatpush1.bf16.xpose.msra.mxu0 0
      %739 = vmatprep.subr.bf16.mxu0 0
      %740 = vmatpush1.bf16.xpose.msra.mxu0 0
      %741 = vmatprep.subr.bf16.mxu0 0
      %742 = vmatpush1.bf16.xpose.msra.mxu0 0
      %743 = vmatprep.subr.bf16.mxu0 0
      %744 = vmatpush1.bf16.xpose.msra.mxu0 0
      %745 = vmatprep.subr.bf16.mxu0 0
      %746 = vmatpush1.bf16.xpose.msra.mxu0 0
      %747 = vmatprep.subr.bf16.mxu0 0
      %748 = vmatpush1.bf16.xpose.msra.mxu0 0
      %749 = vmatprep.subr.bf16.mxu0 0
      %750 = vmatpush1.bf16.xpose.msra.mxu0 0
      %751 = vmatprep.mubr.bf16.mxu0 0
      %752 = vmatmul.mubr.bf16.gmra.mrb[0].mxu0 %v717
      %v753 = vpop.f32.mrb[0].mxu0
      %v754 = vadd.f32 0.0, %v753
      %v755 = vpop.f32.mrb[0].mxu0
      %v756 = vpop.f32.mrb[0].mxu0
      %v757 = vpop.f32.mrb[0].mxu0
      %758 = vdwg.mxu0
      %760 = vset.pattern.permute.xlu0 0
      %761 = vperm.xlu0 %760, %v754
      %v762 = vpop.permute.xlu0 %761
      %v764 = vsel %vm481, %v762, 0.0
      %v765 = vadd.f32 %v764, 0.0
      %766 = vset.pattern.permute.xlu0 1
      %767 = vperm.xlu0 %766, %v754
      %v768 = vpop.permute.xlu0 %767
      %v770 = vsel %vm482, %v768, 0.0
      %v771 = vadd.f32 %v765, %v770
      %772 = vset.pattern.permute.xlu0 2
      %773 = vperm.xlu0 %772, %v754
      %v774 = vpop.permute.xlu0 %773
      %v776 = vsel %vm483, %v774, 0.0
      %v777 = vadd.f32 %v771, %v776
      %778 = vset.pattern.permute.xlu0 3
      %779 = vperm.xlu0 %778, %v754
      %v780 = vpop.permute.xlu0 %779
      %v782 = vsel %vm484, %v780, 0.0
      %v783 = vadd.f32 %v777, %v782
      %784 = vset.pattern.permute.xlu0 4
      %785 = vperm.xlu0 %784, %v754
      %v786 = vpop.permute.xlu0 %785
      %v788 = vsel %vm485, %v786, 0.0
      %v789 = vadd.f32 %v783, %v788
      %790 = vset.pattern.permute.xlu0 5
      %791 = vperm.xlu0 %790, %v754
      %v792 = vpop.permute.xlu0 %791
      %v794 = vsel %vm486, %v792, 0.0
      %v795 = vadd.f32 %v789, %v794
      %796 = vset.pattern.permute.xlu0 6
      %797 = vperm.xlu0 %796, %v754
      %v798 = vpop.permute.xlu0 %797
      %v800 = vsel %vm487, %v798, 0.0
      %v801 = vadd.f32 %v795, %v800
      %802 = vset.pattern.permute.xlu0 7
      %803 = vperm.xlu0 %802, %v754
      %v804 = vpop.permute.xlu0 %803
      %v806 = vsel %vm488, %v804, 0.0
      %v807 = vadd.f32 %v801, %v806
      %808 = vset.pattern.permute.xlu0 8
      %809 = vperm.xlu0 %808, %v754
      %v810 = vpop.permute.xlu0 %809
      %v812 = vsel %vm489, %v810, 0.0
      %v813 = vadd.f32 %v807, %v812
      %v815 = vunpack.c.l.b16 %v464
      %v816 = vpack.c.b16 %v815, %v815
      %817 = vrot.lane.b32.xlu0 %v816, 120
      %v818 = vpop.permute.xlu0 %817
      %v820 = vsel %vm498, %v818, 0
      %822 = vmatprep.subr.bf16.mxu0 0
      %823 = vmatpush1.bf16.xpose.msra.mxu0 %v820
      %824 = vmatprep.subr.bf16.mxu0 0
      %825 = vmatpush1.bf16.xpose.msra.mxu0 0
      %826 = vmatprep.subr.bf16.mxu0 0
      %827 = vmatpush1.bf16.xpose.msra.mxu0 0
      %828 = vmatprep.subr.bf16.mxu0 0
      %829 = vmatpush1.bf16.xpose.msra.mxu0 0
      %830 = vmatprep.subr.bf16.mxu0 0
      %831 = vmatpush1.bf16.xpose.msra.mxu0 0
      %832 = vmatprep.subr.bf16.mxu0 0
      %833 = vmatpush1.bf16.xpose.msra.mxu0 0
      %834 = vmatprep.subr.bf16.mxu0 0
      %835 = vmatpush1.bf16.xpose.msra.mxu0 0
      %836 = vmatprep.subr.bf16.mxu0 0
      %837 = vmatpush1.bf16.xpose.msra.mxu0 0
      %838 = vmatprep.subr.bf16.mxu0 0
      %839 = vmatpush1.bf16.xpose.msra.mxu0 0
      %840 = vmatprep.subr.bf16.mxu0 0
      %841 = vmatpush1.bf16.xpose.msra.mxu0 0
      %842 = vmatprep.subr.bf16.mxu0 0
      %843 = vmatpush1.bf16.xpose.msra.mxu0 0
      %844 = vmatprep.subr.bf16.mxu0 0
      %845 = vmatpush1.bf16.xpose.msra.mxu0 0
      %846 = vmatprep.subr.bf16.mxu0 0
      %847 = vmatpush1.bf16.xpose.msra.mxu0 0
      %848 = vmatprep.subr.bf16.mxu0 0
      %849 = vmatpush1.bf16.xpose.msra.mxu0 0
      %850 = vmatprep.subr.bf16.mxu0 0
      %851 = vmatpush1.bf16.xpose.msra.mxu0 0
      %852 = vmatprep.subr.bf16.mxu0 0
      %853 = vmatpush1.bf16.xpose.msra.mxu0 0
      %854 = vmatprep.mubr.bf16.mxu0 0
      %855 = vmatmul.mubr.bf16.gmra.mrb[0].mxu0 %v717
      %v856 = vpop.f32.mrb[0].mxu0
      %v857 = vadd.f32 %v813, %v856
      %v858 = vpop.f32.mrb[0].mxu0
      %v859 = vpop.f32.mrb[0].mxu0
      %v860 = vpop.f32.mrb[0].mxu0
      %861 = vdwg.mxu0
      %v862 = vmul.f32 %v857, 0.35355338
      %v863 = vadd.f32 %v862, %v648
      %v864 = vsel %vm498, %v863, -inf
      %865 = vmax.xlane.f32.xlu0 %v864
      %v866 = vpop.xlane.xlu0 %865
      %v867 = vsub.f32 %v863, %v866
      %v868 = vmul.f32 %v867, 1.442695
      %v869 = vpow.pop %v868
      %v870 = vsel %vm498, %v869, 0.0
      %871 = vadd.xlane.f32.xlu0 %v870
      %v872 = vpop.xlane.xlu0 %871
      %v873 = vrcp.pop %v872
      %v874 = vmul.f32 %v869, %v873
      %v875 = vpack.c.bf16 %v874, %v874
      %v877 = vunpack.c.l.b16 %v465
      %v878 = vpack.c.b16 %v877, %v877
      %879 = vrot.lane.b32.xlu0 %v878, 120
      %v880 = vpop.permute.xlu0 %879
      %v882 = vsel %vm498, %v875, 0
      %v885 = vsel %vm666, %v880, 0
      %887 = vmatprep.subr.bf16.mxu0 0
      %888 = vmatpush1.bf16.msra.mxu0 %v885
      %889 = vmatprep.subr.bf16.mxu0 0
      %890 = vmatpush1.bf16.msra.mxu0 0
      %891 = vmatprep.subr.bf16.mxu0 0
      %892 = vmatpush1.bf16.msra.mxu0 0
      %893 = vmatprep.subr.bf16.mxu0 0
      %894 = vmatpush1.bf16.msra.mxu0 0
      %895 = vmatprep.subr.bf16.mxu0 0
      %896 = vmatpush1.bf16.msra.mxu0 0
      %897 = vmatprep.subr.bf16.mxu0 0
      %898 = vmatpush1.bf16.msra.mxu0 0
      %899 = vmatprep.subr.bf16.mxu0 0
      %900 = vmatpush1.bf16.msra.mxu0 0
      %901 = vmatprep.subr.bf16.mxu0 0
      %902 = vmatpush1.bf16.msra.mxu0 0
      %903 = vmatprep.subr.bf16.mxu0 0
      %904 = vmatpush1.bf16.msra.mxu0 0
      %905 = vmatprep.subr.bf16.mxu0 0
      %906 = vmatpush1.bf16.msra.mxu0 0
      %907 = vmatprep.subr.bf16.mxu0 0
      %908 = vmatpush1.bf16.msra.mxu0 0
      %909 = vmatprep.subr.bf16.mxu0 0
      %910 = vmatpush1.bf16.msra.mxu0 0
      %911 = vmatprep.subr.bf16.mxu0 0
      %912 = vmatpush1.bf16.msra.mxu0 0
      %913 = vmatprep.subr.bf16.mxu0 0
      %914 = vmatpush1.bf16.msra.mxu0 0
      %915 = vmatprep.subr.bf16.mxu0 0
      %916 = vmatpush1.bf16.msra.mxu0 0
      %917 = vmatprep.subr.bf16.mxu0 0
      %918 = vmatpush1.bf16.msra.mxu0 0
      %919 = vmatprep.mubr.bf16.mxu0 0
      %920 = vmatmul.mubr.bf16.gmra.mrb[0].mxu0 %v882
      %v921 = vpop.f32.mrb[0].mxu0
      %v922 = vadd.f32 0.0, %v921
      %v923 = vpop.f32.mrb[0].mxu0
      %v924 = vpop.f32.mrb[0].mxu0
      %v925 = vpop.f32.mrb[0].mxu0
      %926 = vdwg.mxu0
      %928 = vrot.lane.b32.xlu0 %v922, 8
      %v929 = vpop.permute.xlu0 %928
      %vm931 = vcmask 130112
      %932 = vst.msk [vmem:[#allocation2] sm:$0xff] %vm931, %v929
      %933 = vrot.lane.b32.xlu0 %v713, 112
      %v934 = vpop.permute.xlu0 %933
      %v936 = vsel %vm498, %v934, 0
      %938 = vmatprep.subr.bf16.mxu0 0
      %939 = vmatpush1.bf16.xpose.msra.mxu0 %v503
      %940 = vmatprep.subr.bf16.mxu0 0
      %941 = vmatpush1.bf16.xpose.msra.mxu0 0
      %942 = vmatprep.subr.bf16.mxu0 0
      %943 = vmatpush1.bf16.xpose.msra.mxu0 0
      %944 = vmatprep.subr.bf16.mxu0 0
      %945 = vmatpush1.bf16.xpose.msra.mxu0 0
      %946 = vmatprep.subr.bf16.mxu0 0
      %947 = vmatpush1.bf16.xpose.msra.mxu0 0
      %948 = vmatprep.subr.bf16.mxu0 0
      %949 = vmatpush1.bf16.xpose.msra.mxu0 0
      %950 = vmatprep.subr.bf16.mxu0 0
      %951 = vmatpush1.bf16.xpose.msra.mxu0 0
      %952 = vmatprep.subr.bf16.mxu0 0
      %953 = vmatpush1.bf16.xpose.msra.mxu0 0
      %954 = vmatprep.subr.bf16.mxu0 0
      %955 = vmatpush1.bf16.xpose.msra.mxu0 0
      %956 = vmatprep.subr.bf16.mxu0 0
      %957 = vmatpush1.bf16.xpose.msra.mxu0 0
      %958 = vmatprep.subr.bf16.mxu0 0
      %959 = vmatpush1.bf16.xpose.msra.mxu0 0
      %960 = vmatprep.subr.bf16.mxu0 0
      %961 = vmatpush1.bf16.xpose.msra.mxu0 0
      %962 = vmatprep.subr.bf16.mxu0 0
      %963 = vmatpush1.bf16.xpose.msra.mxu0 0
      %964 = vmatprep.subr.bf16.mxu0 0
      %965 = vmatpush1.bf16.xpose.msra.mxu0 0
      %966 = vmatprep.subr.bf16.mxu0 0
      %967 = vmatpush1.bf16.xpose.msra.mxu0 0
      %968 = vmatprep.subr.bf16.mxu0 0
      %969 = vmatpush1.bf16.xpose.msra.mxu0 0
      %970 = vmatprep.mubr.bf16.mxu0 0
      %971 = vmatmul.mubr.bf16.gmra.mrb[0].mxu0 %v936
      %v972 = vpop.f32.mrb[0].mxu0
      %v973 = vadd.f32 0.0, %v972
      %v974 = vpop.f32.mrb[0].mxu0
      %v975 = vpop.f32.mrb[0].mxu0
      %v976 = vpop.f32.mrb[0].mxu0
      %977 = vdwg.mxu0
      %979 = vset.pattern.permute.xlu0 0
      %980 = vperm.xlu0 %979, %v973
      %v981 = vpop.permute.xlu0 %980
      %v983 = vsel %vm481, %v981, 0.0
      %v984 = vadd.f32 %v983, 0.0
      %985 = vset.pattern.permute.xlu0 1
      %986 = vperm.xlu0 %985, %v973
      %v987 = vpop.permute.xlu0 %986
      %v989 = vsel %vm482, %v987, 0.0
      %v990 = vadd.f32 %v984, %v989
      %991 = vset.pattern.permute.xlu0 2
      %992 = vperm.xlu0 %991, %v973
      %v993 = vpop.permute.xlu0 %992
      %v995 = vsel %vm483, %v993, 0.0
      %v996 = vadd.f32 %v990, %v995
      %997 = vset.pattern.permute.xlu0 3
      %998 = vperm.xlu0 %997, %v973
      %v999 = vpop.permute.xlu0 %998
      %v1001 = vsel %vm484, %v999, 0.0
      %v1002 = vadd.f32 %v996, %v1001
      %1003 = vset.pattern.permute.xlu0 4
      %1004 = vperm.xlu0 %1003, %v973
      %v1005 = vpop.permute.xlu0 %1004
      %v1007 = vsel %vm485, %v1005, 0.0
      %v1008 = vadd.f32 %v1002, %v1007
      %1009 = vset.pattern.permute.xlu0 5
      %1010 = vperm.xlu0 %1009, %v973
      %v1011 = vpop.permute.xlu0 %1010
      %v1013 = vsel %vm486, %v1011, 0.0
      %v1014 = vadd.f32 %v1008, %v1013
      %1015 = vset.pattern.permute.xlu0 6
      %1016 = vperm.xlu0 %1015, %v973
      %v1017 = vpop.permute.xlu0 %1016
      %v1019 = vsel %vm487, %v1017, 0.0
      %v1020 = vadd.f32 %v1014, %v1019
      %1021 = vset.pattern.permute.xlu0 7
      %1022 = vperm.xlu0 %1021, %v973
      %v1023 = vpop.permute.xlu0 %1022
      %v1025 = vsel %vm488, %v1023, 0.0
      %v1026 = vadd.f32 %v1020, %v1025
      %1027 = vset.pattern.permute.xlu0 8
      %1028 = vperm.xlu0 %1027, %v973
      %v1029 = vpop.permute.xlu0 %1028
      %v1031 = vsel %vm489, %v1029, 0.0
      %v1032 = vadd.f32 %v1026, %v1031
      %1033 = vrot.lane.b32.xlu0 %v816, 112
      %v1034 = vpop.permute.xlu0 %1033
      %v1036 = vsel %vm498, %v1034, 0
      %1038 = vmatprep.subr.bf16.mxu0 0
      %1039 = vmatpush1.bf16.xpose.msra.mxu0 %v1036
      %1040 = vmatprep.subr.bf16.mxu0 0
      %1041 = vmatpush1.bf16.xpose.msra.mxu0 0
      %1042 = vmatprep.subr.bf16.mxu0 0
      %1043 = vmatpush1.bf16.xpose.msra.mxu0 0
      %1044 = vmatprep.subr.bf16.mxu0 0
      %1045 = vmatpush1.bf16.xpose.msra.mxu0 0
      %1046 = vmatprep.subr.bf16.mxu0 0
      %1047 = vmatpush1.bf16.xpose.msra.mxu0 0
      %1048 = vmatprep.subr.bf16.mxu0 0
      %1049 = vmatpush1.bf16.xpose.msra.mxu0 0
      %1050 = vmatprep.subr.bf16.mxu0 0
      %1051 = vmatpush1.bf16.xpose.msra.mxu0 0
      %1052 = vmatprep.subr.bf16.mxu0 0
      %1053 = vmatpush1.bf16.xpose.msra.mxu0 0
      %1054 = vmatprep.subr.bf16.mxu0 0
      %1055 = vmatpush1.bf16.xpose.msra.mxu0 0
      %1056 = vmatprep.subr.bf16.mxu0 0
      %1057 = vmatpush1.bf16.xpose.msra.mxu0 0
      %1058 = vmatprep.subr.bf16.mxu0 0
      %1059 = vmatpush1.bf16.xpose.msra.mxu0 0
      %1060 = vmatprep.subr.bf16.mxu0 0
      %1061 = vmatpush1.bf16.xpose.msra.mxu0 0
      %1062 = vmatprep.subr.bf16.mxu0 0
      %1063 = vmatpush1.bf16.xpose.msra.mxu0 0
      %1064 = vmatprep.subr.bf16.mxu0 0
      %1065 = vmatpush1.bf16.xpose.msra.mxu0 0
      %1066 = vmatprep.subr.bf16.mxu0 0
      %1067 = vmatpush1.bf16.xpose.msra.mxu0 0
      %1068 = vmatprep.subr.bf16.mxu0 0
      %1069 = vmatpush1.bf16.xpose.msra.mxu0 0
      %1070 = vmatprep.mubr.bf16.mxu0 0
      %1071 = vmatmul.mubr.bf16.gmra.mrb[0].mxu0 %v936
      %v1072 = vpop.f32.mrb[0].mxu0
      %v1073 = vadd.f32 %v1032, %v1072
      %v1074 = vpop.f32.mrb[0].mxu0
      %v1075 = vpop.f32.mrb[0].mxu0
      %v1076 = vpop.f32.mrb[0].mxu0
      %1077 = vdwg.mxu0
      %v1078 = vmul.f32 %v1073, 0.35355338
      %v1079 = vadd.f32 %v1078, %v648
      %v1080 = vsel %vm498, %v1079, -inf
      %1081 = vmax.xlane.f32.xlu0 %v1080
      %v1082 = vpop.xlane.xlu0 %1081
      %v1083 = vsub.f32 %v1079, %v1082
      %v1084 = vmul.f32 %v1083, 1.442695
      %v1085 = vpow.pop %v1084
      %v1086 = vsel %vm498, %v1085, 0.0
      %1087 = vadd.xlane.f32.xlu0 %v1086
      %v1088 = vpop.xlane.xlu0 %1087
      %v1089 = vrcp.pop %v1088
      %v1090 = vmul.f32 %v1085, %v1089
      %v1091 = vpack.c.bf16 %v1090, %v1090
      %1092 = vrot.lane.b32.xlu0 %v878, 112
      %v1093 = vpop.permute.xlu0 %1092
      %v1095 = vsel %vm498, %v1091, 0
      %v1098 = vsel %vm666, %v1093, 0
      %1100 = vmatprep.subr.bf16.mxu0 0
      %1101 = vmatpush1.bf16.msra.mxu0 %v1098
      %1102 = vmatprep.subr.bf16.mxu0 0
      %1103 = vmatpush1.bf16.msra.mxu0 0
      %1104 = vmatprep.subr.bf16.mxu0 0
      %1105 = vmatpush1.bf16.msra.mxu0 0
      %1106 = vmatprep.subr.bf16.mxu0 0
      %1107 = vmatpush1.bf16.msra.mxu0 0
      %1108 = vmatprep.subr.bf16.mxu0 0
      %1109 = vmatpush1.bf16.msra.mxu0 0
      %1110 = vmatprep.subr.bf16.mxu0 0
      %1111 = vmatpush1.bf16.msra.mxu0 0
      %1112 = vmatprep.subr.bf16.mxu0 0
      %1113 = vmatpush1.bf16.msra.mxu0 0
      %1114 = vmatprep.subr.bf16.mxu0 0
      %1115 = vmatpush1.bf16.msra.mxu0 0
      %1116 = vmatprep.subr.bf16.mxu0 0
      %1117 = vmatpush1.bf16.msra.mxu0 0
      %1118 = vmatprep.subr.bf16.mxu0 0
      %1119 = vmatpush1.bf16.msra.mxu0 0
      %1120 = vmatprep.subr.bf16.mxu0 0
      %1121 = vmatpush1.bf16.msra.mxu0 0
      %1122 = vmatprep.subr.bf16.mxu0 0
      %1123 = vmatpush1.bf16.msra.mxu0 0
      %1124 = vmatprep.subr.bf16.mxu0 0
      %1125 = vmatpush1.bf16.msra.mxu0 0
      %1126 = vmatprep.subr.bf16.mxu0 0
      %1127 = vmatpush1.bf16.msra.mxu0 0
      %1128 = vmatprep.subr.bf16.mxu0 0
      %1129 = vmatpush1.bf16.msra.mxu0 0
      %1130 = vmatprep.subr.bf16.mxu0 0
      %1131 = vmatpush1.bf16.msra.mxu0 0
      %1132 = vmatprep.mubr.bf16.mxu0 0
      %1133 = vmatmul.mubr.bf16.gmra.mrb[0].mxu0 %v1095
      %v1134 = vpop.f32.mrb[0].mxu0
      %v1135 = vadd.f32 0.0, %v1134
      %v1136 = vpop.f32.mrb[0].mxu0
      %v1137 = vpop.f32.mrb[0].mxu0
      %v1138 = vpop.f32.mrb[0].mxu0
      %1139 = vdwg.mxu0
      %1141 = vrot.lane.b32.xlu0 %v1135, 16
      %v1142 = vpop.permute.xlu0 %1141
      %vm1144 = vcmask 195712
      %1145 = vst.msk [vmem:[#allocation2] sm:$0xff] %vm1144, %v1142
      %1146 = vrot.lane.b32.xlu0 %v713, 104
      %v1147 = vpop.permute.xlu0 %1146
      %v1149 = vsel %vm498, %v1147, 0
      %1151 = vmatprep.subr.bf16.mxu0 0
      %1152 = vmatpush1.bf16.xpose.msra.mxu0 %v503
      %1153 = vmatprep.subr.bf16.mxu0 0
      %1154 = vmatpush1.bf16.xpose.msra.mxu0 0
      %1155 = vmatprep.subr.bf16.mxu0 0
      %1156 = vmatpush1.bf16.xpose.msra.mxu0 0
      %1157 = vmatprep.subr.bf16.mxu0 0
      %1158 = vmatpush1.bf16.xpose.msra.mxu0 0
      %1159 = vmatprep.subr.bf16.mxu0 0
      %1160 = vmatpush1.bf16.xpose.msra.mxu0 0
      %1161 = vmatprep.subr.bf16.mxu0 0
      %1162 = vmatpush1.bf16.xpose.msra.mxu0 0
      %1163 = vmatprep.subr.bf16.mxu0 0
      %1164 = vmatpush1.bf16.xpose.msra.mxu0 0
      %1165 = vmatprep.subr.bf16.mxu0 0
      %1166 = vmatpush1.bf16.xpose.msra.mxu0 0
      %1167 = vmatprep.subr.bf16.mxu0 0
      %1168 = vmatpush1.bf16.xpose.msra.mxu0 0
      %1169 = vmatprep.subr.bf16.mxu0 0
      %1170 = vmatpush1.bf16.xpose.msra.mxu0 0
      %1171 = vmatprep.subr.bf16.mxu0 0
      %1172 = vmatpush1.bf16.xpose.msra.mxu0 0
      %1173 = vmatprep.subr.bf16.mxu0 0
      %1174 = vmatpush1.bf16.xpose.msra.mxu0 0
      %1175 = vmatprep.subr.bf16.mxu0 0
      %1176 = vmatpush1.bf16.xpose.msra.mxu0 0
      %1177 = vmatprep.subr.bf16.mxu0 0
      %1178 = vmatpush1.bf16.xpose.msra.mxu0 0
      %1179 = vmatprep.subr.bf16.mxu0 0
      %1180 = vmatpush1.bf16.xpose.msra.mxu0 0
      %1181 = vmatprep.subr.bf16.mxu0 0
      %1182 = vmatpush1.bf16.xpose.msra.mxu0 0
      %1183 = vmatprep.mubr.bf16.mxu0 0
      %1184 = vmatmul.mubr.bf16.gmra.mrb[0].mxu0 %v1149
      %v1185 = vpop.f32.mrb[0].mxu0
      %v1186 = vadd.f32 0.0, %v1185
      %v1187 = vpop.f32.mrb[0].mxu0
      %v1188 = vpop.f32.mrb[0].mxu0
      %v1189 = vpop.f32.mrb[0].mxu0
      %1190 = vdwg.mxu0
      %1192 = vset.pattern.permute.xlu0 0
      %1193 = vperm.xlu0 %1192, %v1186
      %v1194 = vpop.permute.xlu0 %1193
      %v1196 = vsel %vm481, %v1194, 0.0
      %v1197 = vadd.f32 %v1196, 0.0
      %1198 = vset.pattern.permute.xlu0 1
      %1199 = vperm.xlu0 %1198, %v1186
      %v1200 = vpop.permute.xlu0 %1199
      %v1202 = vsel %vm482, %v1200, 0.0
      %v1203 = vadd.f32 %v1197, %v1202
      %1204 = vset.pattern.permute.xlu0 2
      %1205 = vperm.xlu0 %1204, %v1186
      %v1206 = vpop.permute.xlu0 %1205
      %v1208 = vsel %vm483, %v1206, 0.0
      %v1209 = vadd.f32 %v1203, %v1208
      %1210 = vset.pattern.permute.xlu0 3
      %1211 = vperm.xlu0 %1210, %v1186
      %v1212 = vpop.permute.xlu0 %1211
      %v1214 = vsel %vm484, %v1212, 0.0
      %v1215 = vadd.f32 %v1209, %v1214
      %1216 = vset.pattern.permute.xlu0 4
      %1217 = vperm.xlu0 %1216, %v1186
      %v1218 = vpop.permute.xlu0 %1217
      %v1220 = vsel %vm485, %v1218, 0.0
      %v1221 = vadd.f32 %v1215, %v1220
      %1222 = vset.pattern.permute.xlu0 5
      %1223 = vperm.xlu0 %1222, %v1186
      %v1224 = vpop.permute.xlu0 %1223
      %v1226 = vsel %vm486, %v1224, 0.0
      %v1227 = vadd.f32 %v1221, %v1226
      %1228 = vset.pattern.permute.xlu0 6
      %1229 = vperm.xlu0 %1228, %v1186
      %v1230 = vpop.permute.xlu0 %1229
      %v1232 = vsel %vm487, %v1230, 0.0
      %v1233 = vadd.f32 %v1227, %v1232
      %1234 = vset.pattern.permute.xlu0 7
      %1235 = vperm.xlu0 %1234, %v1186
      %v1236 = vpop.permute.xlu0 %1235
      %v1238 = vsel %vm488, %v1236, 0.0
      %v1239 = vadd.f32 %v1233, %v1238
      %1240 = vset.pattern.permute.xlu0 8
      %1241 = vperm.xlu0 %1240, %v1186
      %v1242 = vpop.permute.xlu0 %1241
      %v1244 = vsel %vm489, %v1242, 0.0
      %v1245 = vadd.f32 %v1239, %v1244
      %1246 = vrot.lane.b32.xlu0 %v816, 104
      %v1247 = vpop.permute.xlu0 %1246
      %v1249 = vsel %vm498, %v1247, 0
      %1251 = vmatprep.subr.bf16.mxu0 0
      %1252 = vmatpush1.bf16.xpose.msra.mxu0 %v1249
      %1253 = vmatprep.subr.bf16.mxu0 0
      %1254 = vmatpush1.bf16.xpose.msra.mxu0 0
      %1255 = vmatprep.subr.bf16.mxu0 0
      %1256 = vmatpush1.bf16.xpose.msra.mxu0 0
      %1257 = vmatprep.subr.bf16.mxu0 0
      %1258 = vmatpush1.bf16.xpose.msra.mxu0 0
      %1259 = vmatprep.subr.bf16.mxu0 0
      %1260 = vmatpush1.bf16.xpose.msra.mxu0 0
      %1261 = vmatprep.subr.bf16.mxu0 0
      %1262 = vmatpush1.bf16.xpose.msra.mxu0 0
      %1263 = vmatprep.subr.bf16.mxu0 0
      %1264 = vmatpush1.bf16.xpose.msra.mxu0 0
      %1265 = vmatprep.subr.bf16.mxu0 0
      %1266 = vmatpush1.bf16.xpose.msra.mxu0 0
      %1267 = vmatprep.subr.bf16.mxu0 0
      %1268 = vmatpush1.bf16.xpose.msra.mxu0 0
      %1269 = vmatprep.subr.bf16.mxu0 0
      %1270 = vmatpush1.bf16.xpose.msra.mxu0 0
      %1271 = vmatprep.subr.bf16.mxu0 0
      %1272 = vmatpush1.bf16.xpose.msra.mxu0 0
      %1273 = vmatprep.subr.bf16.mxu0 0
      %1274 = vmatpush1.bf16.xpose.msra.mxu0 0
      %1275 = vmatprep.subr.bf16.mxu0 0
      %1276 = vmatpush1.bf16.xpose.msra.mxu0 0
      %1277 = vmatprep.subr.bf16.mxu0 0
      %1278 = vmatpush1.bf16.xpose.msra.mxu0 0
      %1279 = vmatprep.subr.bf16.mxu0 0
      %1280 = vmatpush1.bf16.xpose.msra.mxu0 0
      %1281 = vmatprep.subr.bf16.mxu0 0
      %1282 = vmatpush1.bf16.xpose.msra.mxu0 0
      %1283 = vmatprep.mubr.bf16.mxu0 0
      %1284 = vmatmul.mubr.bf16.gmra.mrb[0].mxu0 %v1149
      %v1285 = vpop.f32.mrb[0].mxu0
      %v1286 = vadd.f32 %v1245, %v1285
      %v1287 = vpop.f32.mrb[0].mxu0
      %v1288 = vpop.f32.mrb[0].mxu0
      %v1289 = vpop.f32.mrb[0].mxu0
      %1290 = vdwg.mxu0
      %v1291 = vmul.f32 %v1286, 0.35355338
      %v1292 = vadd.f32 %v1291, %v648
      %v1293 = vsel %vm498, %v1292, -inf
      %1294 = vmax.xlane.f32.xlu0 %v1293
      %v1295 = vpop.xlane.xlu0 %1294
      %v1296 = vsub.f32 %v1292, %v1295
      %v1297 = vmul.f32 %v1296, 1.442695
      %v1298 = vpow.pop %v1297
      %v1299 = vsel %vm498, %v1298, 0.0
      %1300 = vadd.xlane.f32.xlu0 %v1299
      %v1301 = vpop.xlane.xlu0 %1300
      %v1302 = vrcp.pop %v1301
      %v1303 = vmul.f32 %v1298, %v1302
      %v1304 = vpack.c.bf16 %v1303, %v1303
      %1305 = vrot.lane.b32.xlu0 %v878, 104
      %v1306 = vpop.permute.xlu0 %1305
      %v1308 = vsel %vm498, %v1304, 0
      %v1311 = vsel %vm666, %v1306, 0
      %1313 = vmatprep.subr.bf16.mxu0 0
      %1314 = vmatpush1.bf16.msra.mxu0 %v1311
      %1315 = vmatprep.subr.bf16.mxu0 0
      %1316 = vmatpush1.bf16.msra.mxu0 0
      %1317 = vmatprep.subr.bf16.mxu0 0
      %1318 = vmatpush1.bf16.msra.mxu0 0
      %1319 = vmatprep.subr.bf16.mxu0 0
      %1320 = vmatpush1.bf16.msra.mxu0 0
      %1321 = vmatprep.subr.bf16.mxu0 0
      %1322 = vmatpush1.bf16.msra.mxu0 0
      %1323 = vmatprep.subr.bf16.mxu0 0
      %1324 = vmatpush1.bf16.msra.mxu0 0
      %1325 = vmatprep.subr.bf16.mxu0 0
      %1326 = vmatpush1.bf16.msra.mxu0 0
      %1327 = vmatprep.subr.bf16.mxu0 0
      %1328 = vmatpush1.bf16.msra.mxu0 0
      %1329 = vmatprep.subr.bf16.mxu0 0
      %1330 = vmatpush1.bf16.msra.mxu0 0
      %1331 = vmatprep.subr.bf16.mxu0 0
      %1332 = vmatpush1.bf16.msra.mxu0 0
      %1333 = vmatprep.subr.bf16.mxu0 0
      %1334 = vmatpush1.bf16.msra.mxu0 0
      %1335 = vmatprep.subr.bf16.mxu0 0
      %1336 = vmatpush1.bf16.msra.mxu0 0
      %1337 = vmatprep.subr.bf16.mxu0 0
      %1338 = vmatpush1.bf16.msra.mxu0 0
      %1339 = vmatprep.subr.bf16.mxu0 0
      %1340 = vmatpush1.bf16.msra.mxu0 0
      %1341 = vmatprep.subr.bf16.mxu0 0
      %1342 = vmatpush1.bf16.msra.mxu0 0
      %1343 = vmatprep.subr.bf16.mxu0 0
      %1344 = vmatpush1.bf16.msra.mxu0 0
      %1345 = vmatprep.mubr.bf16.mxu0 0
      %1346 = vmatmul.mubr.bf16.gmra.mrb[0].mxu0 %v1308
      %v1347 = vpop.f32.mrb[0].mxu0
      %v1348 = vadd.f32 0.0, %v1347
      %v1349 = vpop.f32.mrb[0].mxu0
      %v1350 = vpop.f32.mrb[0].mxu0
      %v1351 = vpop.f32.mrb[0].mxu0
      %1352 = vdwg.mxu0
      %1354 = vrot.lane.b32.xlu0 %v1348, 24
      %v1355 = vpop.permute.xlu0 %1354
      %vm1357 = vcmask 261312
      %1358 = vst.msk [vmem:[#allocation2] sm:$0xff] %vm1357, %v1355
      %v1359 = vld [vmem:[#allocation2] sm:$0xff]
      %v1360 = vpack.c.bf16 %v1359, %v1359
      %v1361 = vld [vmem:[%s6] sm:$0xf]
      %v1362 = vld [vmem:[%s6 + $0x4] sm:$0xf]
      %v1363 = vld [vmem:[%s6 + $0x8] sm:$0xf]
      %v1364 = vld [vmem:[%s6 + $0xc] sm:$0xf]
      %v1365 = vld [vmem:[%s7] sm:$0x1]
      %v1367 = vlaneseq
      %v1368 = vshrl.u32 %v1367, 7
      %v1369 = vsub.s32 0, %v1368
      %v1370 = vrot.slane %v1365, %v1369
      %v1376 = vunpack.c.l.b16 %v1361
      %v1377 = vunpack.c.l.b16 %v1362
      %v1378 = vunpack.c.l.b16 %v1363
      %v1379 = vunpack.c.l.b16 %v1364
      %v1380 = vpack.c.b16 %v1377, %v1376
      %v1381 = vpack.c.b16 %v1379, %v1378
      %vm1384 = vcmask 261120
      %v1386 = vsel %vm1384, %v1360, 0
      %1388 = vmatprep.subr.bf16.mxu0 0
      %1389 = vmatpush1.bf16.msra.mxu0 %v1380
      %1390 = vmatprep.subr.bf16.mxu0 0
      %1391 = vmatpush1.bf16.msra.mxu0 %v1381
      %1392 = vmatprep.subr.bf16.mxu0 0
      %1393 = vmatpush1.bf16.msra.mxu0 0
      %1394 = vmatprep.subr.bf16.mxu0 0
      %1395 = vmatpush1.bf16.msra.mxu0 0
      %1396 = vmatprep.subr.bf16.mxu0 0
      %1397 = vmatpush1.bf16.msra.mxu0 0
      %1398 = vmatprep.subr.bf16.mxu0 0
      %1399 = vmatpush1.bf16.msra.mxu0 0
      %1400 = vmatprep.subr.bf16.mxu0 0
      %1401 = vmatpush1.bf16.msra.mxu0 0
      %1402 = vmatprep.subr.bf16.mxu0 0
      %1403 = vmatpush1.bf16.msra.mxu0 0
      %1404 = vmatprep.subr.bf16.mxu0 0
      %1405 = vmatpush1.bf16.msra.mxu0 0
      %1406 = vmatprep.subr.bf16.mxu0 0
      %1407 = vmatpush1.bf16.msra.mxu0 0
      %1408 = vmatprep.subr.bf16.mxu0 0
      %1409 = vmatpush1.bf16.msra.mxu0 0
      %1410 = vmatprep.subr.bf16.mxu0 0
      %1411 = vmatpush1.bf16.msra.mxu0 0
      %1412 = vmatprep.subr.bf16.mxu0 0
      %1413 = vmatpush1.bf16.msra.mxu0 0
      %1414 = vmatprep.subr.bf16.mxu0 0
      %1415 = vmatpush1.bf16.msra.mxu0 0
      %1416 = vmatprep.subr.bf16.mxu0 0
      %1417 = vmatpush1.bf16.msra.mxu0 0
      %1418 = vmatprep.subr.bf16.mxu0 0
      %1419 = vmatpush1.bf16.msra.mxu0 0
      %1420 = vmatprep.mubr.bf16.mxu0 0
      %1421 = vmatmul.mubr.bf16.gmra.mrb[0].mxu0 %v1386
      %v1422 = vpop.f32.mrb[0].mxu0
      %v1423 = vadd.f32 %v1370, %v1422
      %v1424 = vpop.f32.mrb[0].mxu0
      %v1425 = vpop.f32.mrb[0].mxu0
      %v1426 = vpop.f32.mrb[0].mxu0
      %1427 = vdwg.mxu0
      %v1428 = vld [vmem:[%s451] sm:$0xff]
      %v1429 = vadd.f32 %v1423, %v1428
      %v1430 = vld [vmem:[%s8] sm:$0x1]
      %v1431 = vld [vmem:[%s9] sm:$0x1]
      %v1432 = vsel %vm1384, %v1429, 0.0
      %1433 = vadd.xlane.f32.xlu0 %v1432
      %v1434 = vpop.xlane.xlu0 %1433
      %v1435 = vrcp.pop 32.0
      %v1436 = vmul.f32 %v1434, %v1435
      %v1437 = vsub.f32 %v1429, %v1436
      %v1438 = vmul.f32 %v1437, %v1437
      %v1439 = vsel %vm1384, %v1438, 0.0
      %1440 = vadd.xlane.f32.xlu0 %v1439
      %v1441 = vpop.xlane.xlu0 %1440
      %v1442 = vmul.f32 %v1441, %v1435
      %v1443 = vadd.f32 %v1442, 1e-05
      %v1444 = vrsqrt.pop %v1443
      %v1445 = vmul.f32 %v1437, %v1444
      %v1447 = vlaneseq
      %v1448 = vshrl.u32 %v1447, 7
      %v1449 = vsub.s32 0, %v1448
      %v1450 = vrot.slane %v1430, %v1449
      %v1452 = vmul.f32 %v1445, %v1450
      %v1454 = vlaneseq
      %v1455 = vshrl.u32 %v1454, 7
      %v1456 = vsub.s32 0, %v1455
      %v1457 = vrot.slane %v1431, %v1456
      %v1459 = vadd.f32 %v1452, %v1457
      %1460 = vst.msk [vmem:[%s461] sm:$0xff] %vm1384, %v1459
      %p1461 = scmp.lt.s32.totalorder %s25, 1
      %s1462 = scalar_select %p1461, %s25, 1
      %p1463 = scmp.lt.s32.totalorder %s26, 0
      %s1464 = scalar_select %p1463, %s26, 0
      %s1465 = sadd.s32 %s1464, %s1462
      %s1466 = smul.addr %s1465, 8
      %s1467 = scalar_lea.vmem %s10, %s1466
      // Predicated region
      $region61: #{run.7} parent=59 // pred_check
        %p1468 = pneg %p292
      $region62: #{run.7} parent=59 // pred_check_branch
        %1470 = sbr.rel (%p1468) target = $region64
      $region63: #{run.7} parent=59 // pred_region
        _
      $region64: #{run.7} parent=59 // pred_fallthru
        _
    $region60: #{run.7} parent=5 // pred_fallthru
      _
    %p1471 = scmp.le.s32.totalorder 2, %s16
    // Predicated region
    $region65: #{run.7} parent=5 // pred_check
      %p1472 = pneg %p1471
    $region66: #{run.7} parent=5 // pred_check_branch
      %1474 = sbr.rel (%p1472) target = $region68
    $region67: #{run.7} parent=5 // pred_region
      %s1475 = ssub.s32 %s16, 2
      // Predicated region
      $region69: #{run.7} parent=67 // pred_check
        %p1476 = pneg %p298
      $region70: #{run.7} parent=67 // pred_check_branch
        %1478 = sbr.rel (%p1476) target = $region72
      $region71: #{run.7} parent=67 // pred_region
        %p1479 = scmp.lt.s32.totalorder %s27, 1
        %s1480 = scalar_select %p1479, %s27, 1
        %p1481 = scmp.lt.s32.totalorder %s28, 0
        %s1482 = scalar_select %p1481, %s28, 0
        %s1483 = sadd.s32 %s1482, %s1480
        %s1484 = smul.addr %s1483, 8
        %s1485 = scalar_lea.vmem %s10, %s1484
      $region72: #{run.7} parent=67 // pred_fallthru
        _
    $region68: #{run.7} parent=5 // pred_fallthru
      _
  $region6: #{run.7} parent=0 // loop_footer
    %s20 = sadd.s32 1, %s16
  $region7: #{run.7} parent=0 // loop_footer_branch
    %15 = sbr.rel target = $region3
  $region8: #{run.7} parent=0 // loop_exit
    _

</llo_original>
